<compile_context>
chip_gen: v7x
topology: tpu7x:2x2x1
jax: 0.10.0
libtpu: 0.0.40
codegen_flags: <defaults>
</compile_context>

<pallas_src>
import jax
import jax.numpy as jnp
from jax.experimental import pallas as pl
from jax.experimental.pallas import tpu as pltpu

LANE = 128


def _round_up(x, m):
    return ((x + m - 1) // m) * m


def _bucket_rows(n):
    # Bucket row counts to a small fixed set (128, 256, 512, ...) so the jitted
    # core compiles once per bucket and MXU M-tiles are full 128-row slabs.
    n = max(int(n), 1)
    if n <= 128:
        return 128
    return _round_up(n, 256)


def _pad2(a, rows, cols):
    return jnp.pad(a, ((0, rows - a.shape[0]), (0, cols - a.shape[1])))


def _device_vmem_budget():
    # Device-aware scoped-VMEM budget (bytes). 128 MiB physical on v4/v5e/v6e,
    # 64 MiB per TensorCore on v7x-class; conservative fallback otherwise.
    kind = ""
    try:
        kind = jax.devices()[0].device_kind.lower()
    except Exception:
        pass
    if "v7" in kind:
        return 48 * 1024 * 1024
    if ("v4" in kind) or ("v5" in kind) or ("v6" in kind):
        return 96 * 1024 * 1024
    return 32 * 1024 * 1024


def _pick_p_tile(h_pad, m_pad, c_pad, p_pad, tr, budget):
    """Largest pooling-dim tile whose rel-kernel VMEM footprint fits `budget`.

    tp == p_pad  -> weights fully resident (single-buffered, DMA'd once).
    tp <  p_pad  -> P-tiled with double-buffered weight tiles (v7x-style).
    """
    cands = [p_pad] + [t for t in (4096, 2048, 1024, 512, 256, 128)
                       if t < p_pad and p_pad % t == 0]
    for tp in cands:
        wbufs = 1 if tp == p_pad else 2
        w_bytes = wbufs * 2 * tp * (2 * h_pad + m_pad + c_pad)        # bf16 weights
        act_bytes = 2 * tr * ((2 * h_pad + m_pad) * 2 + c_pad * 4)    # dbl-buffered
        out_bytes = 2 * tr * c_pad * 4                                # f32 output
        tmp_bytes = 3 * tr * tp * 4                                   # prod/vis/gated
        if w_bytes + act_bytes + out_bytes + tmp_bytes + (2 << 20) <= budget:
            return tp
    return cands[-1]


# ----------------------------------------------------------------------------
# Kernel 1: fused context projections (one wide MXU matmul, split on store)
#   y = x @ [W_obj | W_head | W_tail] + [b_obj | b_head | b_tail]
#   obj_dists = y[:, :C]   head_rep = y[:, C:C+H]   tail_rep = y[:, C+H:]
# ----------------------------------------------------------------------------
def _ctx_kernel(x_ref, w_ref, b_ref, obj_ref, head_ref, tail_ref):
    y = jnp.dot(x_ref[...], w_ref[...],
                preferred_element_type=jnp.float32) + b_ref[...]
    co = obj_ref.shape[-1]
    h = head_ref.shape[-1]
    obj_ref[...] = y[:, :co].astype(obj_ref.dtype)
    head_ref[...] = y[:, co:co + h].astype(head_ref.dtype)
    tail_ref[...] = y[:, co + h:].astype(tail_ref.dtype)


def ctx_fused(x, w_cat, b_cat, obj_cols, head_cols, *, tn, vmem_limit, single_buf):
    n_pad, d_pad = x.shape
    cat_cols = w_cat.shape[1]
    row = lambda i: (i, 0)
    const = lambda i: (0, 0)
    w_mode = pl.Buffered(1) if single_buf else None
    return pl.pallas_call(
        _ctx_kernel,
        out_shape=(
            jax.ShapeDtypeStruct((n_pad, obj_cols), jnp.float32),    # obj_dists
            jax.ShapeDtypeStruct((n_pad, head_cols), jnp.bfloat16),  # head_rep
            jax.ShapeDtypeStruct((n_pad, head_cols), jnp.bfloat16),  # tail_rep
        ),
        grid=(n_pad // tn,),
        in_specs=[
            pl.BlockSpec((tn, d_pad), row),
            pl.BlockSpec((d_pad, cat_cols), const, pipeline_mode=w_mode),
            pl.BlockSpec((1, cat_cols), const, pipeline_mode=w_mode),
        ],
        out_specs=(
            pl.BlockSpec((tn, obj_cols), row),
            pl.BlockSpec((tn, head_cols), row),
            pl.BlockSpec((tn, head_cols), row),
        ),
        compiler_params=pltpu.CompilerParams(
            dimension_semantics=("parallel",),
            vmem_limit_bytes=vmem_limit),
    )(x, w_cat, b_cat)


# ----------------------------------------------------------------------------
# Kernel 2: fused relation head, grid = (row tiles, P tiles), P accumulated
#   prod_p  = head @ Wc_h[:,p] + tail @ Wc_t[:,p] + bc[p]
#   vis_p   = union @ Wu[:,p] + bu[p]
#   rel    += (prod_p * vis_p) @ Wr[p,:]        (init: freq_bias + br at p==0)
# ----------------------------------------------------------------------------
def _rel_kernel(hp_ref, tp_ref, un_ref, fb_ref,
                wch_ref, wct_ref, bc_ref, wu_ref, bu_ref, wr_ref, br_ref,
                o_ref):
    p = pl.program_id(1)

    @pl.when(p == 0)
    def _():
        o_ref[...] = fb_ref[...] + br_ref[...]

    prod = (
        jnp.dot(hp_ref[...], wch_ref[...], preferred_element_type=jnp.float32)
        + jnp.dot(tp_ref[...], wct_ref[...], preferred_element_type=jnp.float32)
        + bc_ref[...]
    )
    vis = (
        jnp.dot(un_ref[...], wu_ref[...], preferred_element_type=jnp.float32)
        + bu_ref[...]
    )
    gated = (prod * vis).astype(jnp.bfloat16)          # f32 gating on VPU
    o_ref[...] += jnp.dot(gated, wr_ref[...], preferred_element_type=jnp.float32)


def rel_fused(head_pair, tail_pair, union, freq,
              wc_h, wc_t, bc, wu, bu, wr, br, *, tr, tp, vmem_limit, single_buf):
    r_pad, h_pad = head_pair.shape
    m_pad = union.shape[1]
    p_pad = wc_h.shape[1]
    c_pad = wr.shape[1]
    p_steps = p_pad // tp

    row = lambda i, p: (i, 0)
    wcol = lambda i, p: (0, p)
    wrow = lambda i, p: (p, 0)
    const = lambda i, p: (0, 0)
    # Weights are single-buffered only when they are truly grid-constant
    # (no P tiling); with P tiling they keep default buffering so the next
    # weight tile DMA overlaps compute.
    w_mode = pl.Buffered(1) if (single_buf and p_steps == 1) else None
    b_mode = pl.Buffered(1) if single_buf else None     # br is always constant

    return pl.pallas_call(
        _rel_kernel,
        out_shape=jax.ShapeDtypeStruct((r_pad, c_pad), jnp.float32),
        grid=(r_pad // tr, p_steps),
        in_specs=[
            pl.BlockSpec((tr, h_pad), row),                            # head_pair bf16
            pl.BlockSpec((tr, h_pad), row),                            # tail_pair bf16
            pl.BlockSpec((tr, m_pad), row),                            # union bf16
            pl.BlockSpec((tr, c_pad), row),                            # freq bias f32
            pl.BlockSpec((h_pad, tp), wcol, pipeline_mode=w_mode),     # wc_h
            pl.BlockSpec((h_pad, tp), wcol, pipeline_mode=w_mode),     # wc_t
            pl.BlockSpec((1, tp), wcol, pipeline_mode=w_mode),         # bc
            pl.BlockSpec((m_pad, tp), wcol, pipeline_mode=w_mode),     # wu
            pl.BlockSpec((1, tp), wcol, pipeline_mode=w_mode),         # bu
            pl.BlockSpec((tp, c_pad), wrow, pipeline_mode=w_mode),     # wr
            pl.BlockSpec((1, c_pad), const, pipeline_mode=b_mode),     # br
        ],
        out_specs=pl.BlockSpec((tr, c_pad), row),
        compiler_params=pltpu.CompilerParams(
            dimension_semantics=("parallel", "arbitrary"),
            vmem_limit_bytes=vmem_limit),
    )(head_pair, tail_pair, union, freq, wc_h, wc_t, bc, wu, bu, wr, br)


# ----------------------------------------------------------------------------
# MotifPredictor (JAX / Pallas version)
# ----------------------------------------------------------------------------
class MotifPredictorPallas:
    def __init__(self, key, in_channels, hidden_dim, pooling_dim,
                 mlp_head_dim, num_obj_cls, num_rel_cls,
                 use_vision=True, use_bias=True):
        self.in_channels = in_channels
        self.hidden_dim = hidden_dim
        self.pooling_dim = pooling_dim
        self.mlp_head_dim = mlp_head_dim
        self.num_obj_cls = num_obj_cls
        self.num_rel_cls = num_rel_cls
        self.use_vision = use_vision
        self.use_bias = use_bias
        self.union_single_not_match = (pooling_dim != mlp_head_dim)
        # TODO(synk): only the use_vision + up_dim branch of the reference
        # forward is implemented in the fused kernel.
        assert self.use_vision and self.union_single_not_match

        ks = jax.random.split(key, 8)

        def xavier(k, shape):
            fan_in, fan_out = shape
            lim = (6.0 / (fan_in + fan_out)) ** 0.5
            return jax.random.uniform(k, shape, jnp.float32, -lim, lim)

        # TODO(synk): LSTMContext replaced by linear projections (see header).
        w_ctx_obj = xavier(ks[0], (in_channels, num_obj_cls))
        b_ctx_obj = jnp.zeros((num_obj_cls,), jnp.float32)
        w_ctx_edge = xavier(ks[1], (in_channels, hidden_dim))
        b_ctx_edge = jnp.zeros((hidden_dim,), jnp.float32)

        std = 10.0 * (1.0 / hidden_dim) ** 0.5
        w_post_emb = std * jax.random.normal(
            ks[2], (hidden_dim, hidden_dim * 2), jnp.float32)
        b_post_emb = jnp.zeros((hidden_dim * 2,), jnp.float32)

        w_post_cat = xavier(ks[3], (hidden_dim * 2, pooling_dim))
        b_post_cat = jnp.zeros((pooling_dim,), jnp.float32)

        w_rel = xavier(ks[4], (pooling_dim, num_rel_cls))
        b_rel = jnp.zeros((num_rel_cls,), jnp.float32)

        w_up = xavier(ks[5], (mlp_head_dim, pooling_dim))
        b_up = jnp.zeros((pooling_dim,), jnp.float32)

        # Compose ctx_edge -> post_emb (no nonlinearity between the linear
        # stand-ins) and split into head / tail projections.
        w_edge = w_ctx_edge @ w_post_emb                       # (D, 2H)
        b_edge = b_ctx_edge @ w_post_emb + b_post_emb          # (2H,)

        # Padded lane dims.
        self._dp = _round_up(in_channels, LANE)
        self._hp = _round_up(hidden_dim, LANE)
        self._pp = _round_up(pooling_dim, LANE)
        self._mp = _round_up(mlp_head_dim, LANE)
        self._cop = _round_up(num_obj_cls, LANE)
        self._crp = _round_up(num_rel_cls, LANE)

        bf = jnp.bfloat16
        # Context kernel: one column-concatenated weight [W_obj | W_head | W_tail]
        w_obj_p = _pad2(w_ctx_obj, self._dp, self._cop)
        w_head_p = _pad2(w_edge[:, :hidden_dim], self._dp, self._hp)
        w_tail_p = _pad2(w_edge[:, hidden_dim:], self._dp, self._hp)
        self.w_ctx_cat = jnp.concatenate(
            [w_obj_p, w_head_p, w_tail_p], axis=1).astype(bf)
        b_obj_p = _pad2(b_ctx_obj.reshape(1, -1), 1, self._cop)
        b_head_p = _pad2(b_edge[:hidden_dim].reshape(1, -1), 1, self._hp)
        b_tail_p = _pad2(b_edge[hidden_dim:].reshape(1, -1), 1, self._hp)
        self.b_ctx_cat = jnp.concatenate([b_obj_p, b_head_p, b_tail_p], axis=1)

        # Relation kernel weights (post_cat pre-split into head/tail halves).
        self.wc_h_p = _pad2(w_post_cat[:hidden_dim], self._hp, self._pp).astype(bf)
        self.wc_t_p = _pad2(w_post_cat[hidden_dim:], self._hp, self._pp).astype(bf)
        self.bc_p = _pad2(b_post_cat.reshape(1, -1), 1, self._pp)
        self.wu_p = _pad2(w_up, self._mp, self._pp).astype(bf)
        self.bu_p = _pad2(b_up.reshape(1, -1), 1, self._pp)
        self.wr_p = _pad2(w_rel, self._pp, self._crp).astype(bf)
        self.br_p = _pad2(b_rel.reshape(1, -1), 1, self._crp)

        if self.use_bias:
            freq_table = 0.1 * jax.random.normal(
                ks[6], (num_obj_cls * num_obj_cls, num_rel_cls), jnp.float32)
            self.freq_p = _pad2(freq_table, num_obj_cls * num_obj_cls, self._crp)

        self._vmem_budget = _device_vmem_budget()
        self._single_buf = True   # flips to False if pl.Buffered(1) is rejected

        # Jitted padded core (static tile sizes -> one compile per row bucket).
        self._core = jax.jit(self._core_impl,
                             static_argnames=("tn", "tr", "single_buf"))

    # ------------------------------------------------------------------ core
    def _core_impl(self, x_pad, sub_idx, obj_idx, union_pad, *, tn, tr, single_buf):
        obj_dists, head_rep, tail_rep = ctx_fused(
            x_pad, self.w_ctx_cat, self.b_ctx_cat, self._cop, self._hp,
            tn=tn, vmem_limit=self._vmem_budget, single_buf=single_buf)

        # Non-background argmax decode (as in LSTMContext sgdet decoding).
        obj_preds = jnp.argmax(
            obj_dists[:, 1:self.num_obj_cls], axis=-1).astype(jnp.int32) + 1

        # TODO(synk): pair / freq gather kept in XLA (jnp.take) rather than an
        # in-kernel scalar-prefetch gather, for lowering robustness.
        head_pair = jnp.take(head_rep, sub_idx, axis=0)          # (Rp, Hp) bf16
        tail_pair = jnp.take(tail_rep, obj_idx, axis=0)          # (Rp, Hp) bf16
        sub_pred = jnp.take(obj_preds, sub_idx, axis=0)
        obj_pred = jnp.take(obj_preds, obj_idx, axis=0)

        if self.use_bias:
            fb_idx = sub_pred * self.num_obj_cls + obj_pred
            freq = jnp.take(self.freq_p, fb_idx, axis=0)         # (Rp, Crp) f32
        else:
            freq = jnp.zeros((sub_idx.shape[0], self._crp), jnp.float32)

        tp = _pick_p_tile(self._hp, self._mp, self._crp, self._pp, tr,
                          self._vmem_budget)
        rel_dists = rel_fused(
            head_pair, tail_pair, union_pad, freq,
            self.wc_h_p, self.wc_t_p, self.bc_p,
            self.wu_p, self.bu_p, self.wr_p, self.br_p,
            tr=tr, tp=tp, vmem_limit=self._vmem_budget, single_buf=single_buf)
        return obj_dists, rel_dists

    def _run_core(self, x_pad, sub_pad, obj_pad, union_pad, tn, tr):
        if self._single_buf:
            try:
                return self._core(x_pad, sub_pad, obj_pad, union_pad,
                                  tn=tn, tr=tr, single_buf=True)
            except Exception:
                # Fall back to default (double) buffering of weight blocks.
                self._single_buf = False
        return self._core(x_pad, sub_pad, obj_pad, union_pad,
                          tn=tn, tr=tr, single_buf=False)

    # --------------------------------------------------------------- forward
    def __call__(self, num_objs, rel_pair_idxs, roi_features, union_features):
        """num_objs: list[int]; rel_pair_idxs: list of (R_i, 2) int32 arrays
        (per-image local object indices); roi_features: (sum(num_objs), in_ch);
        union_features: (sum(R_i), mlp_head_dim)."""
        n_obj = int(roi_features.shape[0])
        num_rels = [int(r.shape[0]) for r in rel_pair_idxs]
        n_rel = sum(num_rels)

        # Global pair indices (cheap Python glue over small per-image lists).
        offsets = [0]
        for n in num_objs[:-1]:
            offsets.append(offsets[-1] + int(n))
        sub_list, obj_list = [], []
        for off, pair_idx in zip(offsets, rel_pair_idxs):
            if int(pair_idx.shape[0]) == 0:
                continue
            sub_list.append(off + pair_idx[:, 0].astype(jnp.int32))
            obj_list.append(off + pair_idx[:, 1].astype(jnp.int32))
        if sub_list:
            sub_idx = jnp.concatenate(sub_list, axis=0)
            obj_idx = jnp.concatenate(obj_list, axis=0)
        else:
            sub_idx = jnp.zeros((0,), jnp.int32)
            obj_idx = jnp.zeros((0,), jnp.int32)

        # Bucketed row padding (few static shapes -> few compiles, M-tiles >=128).
        n_pad = _bucket_rows(n_obj)
        r_pad = _bucket_rows(n_rel)
        tn = min(n_pad, 256)
        tr = min(r_pad, 256)

        # bf16 before pad: one pass, half the bytes, no f32 round trip.
        x_pad = _pad2(roi_features.astype(jnp.bfloat16), n_pad, self._dp)
        union_pad = _pad2(union_features.astype(jnp.bfloat16), r_pad, self._mp)
        sub_pad = jnp.pad(sub_idx, (0, r_pad - n_rel))
        obj_pad = jnp.pad(obj_idx, (0, r_pad - n_rel))

        obj_dists_pad, rel_dists_pad = self._run_core(
            x_pad, sub_pad, obj_pad, union_pad, tn, tr)

        obj_dists = obj_dists_pad[:n_obj, :self.num_obj_cls]
        rel_dists = rel_dists_pad[:n_rel, :self.num_rel_cls]

        # Per-image splits.
        obj_splits, r = [], 0
        for n in num_objs:
            obj_splits.append(obj_dists[r:r + n]); r += n
        rel_splits, r = [], 0
        for n in num_rels:
            rel_splits.append(rel_dists[r:r + n]); r += n
        add_losses = {}
        return obj_splits, rel_splits, add_losses


# ----------------------------------------------------------------------------
if __name__ == "__main__":
    key = jax.random.PRNGKey(0)
    k_model, k_roi, k_union = jax.random.split(key, 3)

    # small config
    in_channels = 64
    hidden_dim = 32
    pooling_dim = 64
    mlp_head_dim = 48          # != pooling_dim -> exercises up_dim path
    num_obj_cls = 16
    num_rel_cls = 8

    num_objs = [5, 3]                                # 2 images
    rel_pair_idxs = [
        jnp.array([[0, 1], [1, 2], [3, 4], [2, 0]], dtype=jnp.int32),
        jnp.array([[0, 2], [1, 0]], dtype=jnp.int32),
    ]
    total_obj = sum(num_objs)
    total_rel = sum(int(r.shape[0]) for r in rel_pair_idxs)

    roi_features = jax.random.normal(k_roi, (total_obj, in_channels), jnp.float32)
    union_features = jax.random.normal(k_union, (total_rel, mlp_head_dim), jnp.float32)

    model = MotifPredictorPallas(
        k_model, in_channels, hidden_dim, pooling_dim, mlp_head_dim,
        num_obj_cls, num_rel_cls, use_vision=True, use_bias=True)

    obj_dists, rel_dists, add_losses = model(
        num_objs, rel_pair_idxs, roi_features, union_features)

    jax.block_until_ready(obj_dists)
    jax.block_until_ready(rel_dists)

    # sanity on shapes
    assert [d.shape for d in obj_dists] == [(5, num_obj_cls), (3, num_obj_cls)]
    assert [d.shape for d in rel_dists] == [(4, num_rel_cls), (2, num_rel_cls)]
    assert add_losses == {}
    assert all(bool(jnp.all(jnp.isfinite(d))) for d in obj_dists)
    assert all(bool(jnp.all(jnp.isfinite(d))) for d in rel_dists)
    print("KERNEL_OK")
</pallas_src>

<mosaic_0001>
module attributes {stable_mosaic.version = 11 : i64} {
  func.func @_ctx_kernel(%arg0: i32, %arg1: memref<128x128xbf16, #tpu.memory_space<vmem>>, %arg2: memref<128x384xbf16, #tpu.memory_space<vmem>>, %arg3: memref<1x384xf32, #tpu.memory_space<vmem>>, %arg4: memref<128x128xf32, #tpu.memory_space<vmem>>, %arg5: memref<128x128xbf16, #tpu.memory_space<vmem>>, %arg6: memref<128x128xbf16, #tpu.memory_space<vmem>>) attributes {dimension_semantics = [#tpu.dimension_semantics<parallel>], iteration_bounds = array<i64: 1>, scalar_prefetch = 0 : i64, scratch_operands = 0 : i64, tpu.core_type = #tpu.core_type<tc>, window_params = [{transform_indices = @transform_0, window_bounds = array<i64: 128, 128>}, {pipeline_mode = #tpu.pipeline_mode<synchronous>, transform_indices = @transform_1, window_bounds = array<i64: 128, 384>}, {pipeline_mode = #tpu.pipeline_mode<synchronous>, transform_indices = @transform_2, window_bounds = array<i64: 1, 384>}, {transform_indices = @transform_3, window_bounds = array<i64: 128, 128>}, {transform_indices = @transform_4, window_bounds = array<i64: 128, 128>}, {transform_indices = @transform_5, window_bounds = array<i64: 128, 128>}]} {
    %c0 = arith.constant 0 : index
    %c0_0 = arith.constant 0 : index
    %0 = vector.load %arg1[%c0, %c0_0] : memref<128x128xbf16, #tpu.memory_space<vmem>>, vector<128x128xbf16>
    %c0_1 = arith.constant 0 : index
    %c0_2 = arith.constant 0 : index
    %1 = vector.load %arg2[%c0_1, %c0_2] : memref<128x384xbf16, #tpu.memory_space<vmem>>, vector<128x384xbf16>
    %cst = arith.constant dense<0.000000e+00> : vector<128x384xf32>
    %2 = tpu.matmul %0, %1, %cst {dimension_numbers = #tpu.dot_dimension_numbers<[1], [0], [0], [1], [0, 0, 1, 1], [], []>} : vector<128x128xbf16>, vector<128x384xbf16>, vector<128x384xf32> -> vector<128x384xf32>
    %c0_3 = arith.constant 0 : index
    %c0_4 = arith.constant 0 : index
    %3 = vector.load %arg3[%c0_3, %c0_4] : memref<1x384xf32, #tpu.memory_space<vmem>>, vector<1x384xf32>
    %4 = vector.broadcast %3 : vector<1x384xf32> to vector<128x384xf32>
    %5 = arith.addf %2, %4 : vector<128x384xf32>
    %6 = vector.extract_strided_slice %5 {offsets = [0, 0], sizes = [128, 128], strides = [1, 1]} : vector<128x384xf32> to vector<128x128xf32>
    %c0_5 = arith.constant 0 : index
    %c0_6 = arith.constant 0 : index
    %7 = vector.load %arg4[%c0_5, %c0_6] : memref<128x128xf32, #tpu.memory_space<vmem>>, vector<128x128xf32>
    tpu.vector_store %arg4[%c0_5, %c0_6], %6 {strides = array<i32>} : memref<128x128xf32, #tpu.memory_space<vmem>>, vector<128x128xf32>,
    %8 = vector.extract_strided_slice %5 {offsets = [0, 128], sizes = [128, 128], strides = [1, 1]} : vector<128x384xf32> to vector<128x128xf32>
    %9 = arith.truncf %8 : vector<128x128xf32> to vector<128x128xbf16>
    %c0_7 = arith.constant 0 : index
    %c0_8 = arith.constant 0 : index
    %10 = vector.load %arg5[%c0_7, %c0_8] : memref<128x128xbf16, #tpu.memory_space<vmem>>, vector<128x128xbf16>
    tpu.vector_store %arg5[%c0_7, %c0_8], %9 {strides = array<i32>} : memref<128x128xbf16, #tpu.memory_space<vmem>>, vector<128x128xbf16>,
    %11 = vector.extract_strided_slice %5 {offsets = [0, 256], sizes = [128, 128], strides = [1, 1]} : vector<128x384xf32> to vector<128x128xf32>
    %12 = arith.truncf %11 : vector<128x128xf32> to vector<128x128xbf16>
    %c0_9 = arith.constant 0 : index
    %c0_10 = arith.constant 0 : index
    %13 = vector.load %arg6[%c0_9, %c0_10] : memref<128x128xbf16, #tpu.memory_space<vmem>>, vector<128x128xbf16>
    tpu.vector_store %arg6[%c0_9, %c0_10], %12 {strides = array<i32>} : memref<128x128xbf16, #tpu.memory_space<vmem>>, vector<128x128xbf16>,
    return
  }
  func.func @transform_0(%arg0: i32) -> (i32, i32) {
    %c0_i32 = arith.constant 0 : i32
    %c0_i32_0 = arith.constant 0 : i32
    return %arg0, %c0_i32 : i32, i32
  }
  func.func @transform_1(%arg0: i32) -> (i32, i32) {
    %c0_i32 = arith.constant 0 : i32
    %c0_i32_0 = arith.constant 0 : i32
    %c0_i32_1 = arith.constant 0 : i32
    return %c0_i32, %c0_i32_0 : i32, i32
  }
  func.func @transform_2(%arg0: i32) -> (i32, i32) {
    %c0_i32 = arith.constant 0 : i32
    %c0_i32_0 = arith.constant 0 : i32
    %c0_i32_1 = arith.constant 0 : i32
    return %c0_i32, %c0_i32_0 : i32, i32
  }
  func.func @transform_3(%arg0: i32) -> (i32, i32) {
    %c0_i32 = arith.constant 0 : i32
    %c0_i32_0 = arith.constant 0 : i32
    return %arg0, %c0_i32 : i32, i32
  }
  func.func @transform_4(%arg0: i32) -> (i32, i32) {
    %c0_i32 = arith.constant 0 : i32
    %c0_i32_0 = arith.constant 0 : i32
    return %arg0, %c0_i32 : i32, i32
  }
  func.func @transform_5(%arg0: i32) -> (i32, i32) {
    %c0_i32 = arith.constant 0 : i32
    %c0_i32_0 = arith.constant 0 : i32
    return %arg0, %c0_i32 : i32, i32
  }
}

module attributes {stable_mosaic.version = 11 : i64} {
  func.func @_rel_kernel(%arg0: i32, %arg1: i32, %arg2: memref<128x128xbf16, #tpu.memory_space<vmem>>, %arg3: memref<128x128xbf16, #tpu.memory_space<vmem>>, %arg4: memref<128x128xbf16, #tpu.memory_space<vmem>>, %arg5: memref<128x128xf32, #tpu.memory_space<vmem>>, %arg6: memref<128x128xbf16, #tpu.memory_space<vmem>>, %arg7: memref<128x128xbf16, #tpu.memory_space<vmem>>, %arg8: memref<1x128xf32, #tpu.memory_space<vmem>>, %arg9: memref<128x128xbf16, #tpu.memory_space<vmem>>, %arg10: memref<1x128xf32, #tpu.memory_space<vmem>>, %arg11: memref<128x128xbf16, #tpu.memory_space<vmem>>, %arg12: memref<1x128xf32, #tpu.memory_space<vmem>>, %arg13: memref<128x128xf32, #tpu.memory_space<vmem>>) attributes {dimension_semantics = [#tpu.dimension_semantics<parallel>, #tpu.dimension_semantics<arbitrary>], iteration_bounds = array<i64: 1, 1>, scalar_prefetch = 0 : i64, scratch_operands = 0 : i64, tpu.core_type = #tpu.core_type<tc>, window_params = [{transform_indices = @transform_0, window_bounds = array<i64: 128, 128>}, {transform_indices = @transform_1, window_bounds = array<i64: 128, 128>}, {transform_indices = @transform_2, window_bounds = array<i64: 128, 128>}, {transform_indices = @transform_3, window_bounds = array<i64: 128, 128>}, {pipeline_mode = #tpu.pipeline_mode<synchronous>, transform_indices = @transform_4, window_bounds = array<i64: 128, 128>}, {pipeline_mode = #tpu.pipeline_mode<synchronous>, transform_indices = @transform_5, window_bounds = array<i64: 128, 128>}, {pipeline_mode = #tpu.pipeline_mode<synchronous>, transform_indices = @transform_6, window_bounds = array<i64: 1, 128>}, {pipeline_mode = #tpu.pipeline_mode<synchronous>, transform_indices = @transform_7, window_bounds = array<i64: 128, 128>}, {pipeline_mode = #tpu.pipeline_mode<synchronous>, transform_indices = @transform_8, window_bounds = array<i64: 1, 128>}, {pipeline_mode = #tpu.pipeline_mode<synchronous>, transform_indices = @transform_9, window_bounds = array<i64: 128, 128>}, {pipeline_mode = #tpu.pipeline_mode<synchronous>, transform_indices = @transform_10, window_bounds = array<i64: 1, 128>}, {transform_indices = @transform_11, window_bounds = array<i64: 128, 128>}]} {
    %c0_i32 = arith.constant 0 : i32
    %0 = arith.cmpi eq, %arg1, %c0_i32 : i32
    %1 = arith.extui %0 : i1 to i32
    %c0_i32_0 = arith.constant 0 : i32
    %2 = arith.cmpi ne, %1, %c0_i32_0 : i32
    scf.if %2 {
      %c0_25 = arith.constant 0 : index
      %c0_26 = arith.constant 0 : index
      %26 = vector.load %arg5[%c0_25, %c0_26] : memref<128x128xf32, #tpu.memory_space<vmem>>, vector<128x128xf32>
      %c0_27 = arith.constant 0 : index
      %c0_28 = arith.constant 0 : index
      %27 = vector.load %arg12[%c0_27, %c0_28] : memref<1x128xf32, #tpu.memory_space<vmem>>, vector<1x128xf32>
      %28 = vector.broadcast %27 : vector<1x128xf32> to vector<128x128xf32>
      %29 = arith.addf %26, %28 : vector<128x128xf32>
      %c0_29 = arith.constant 0 : index
      %c0_30 = arith.constant 0 : index
      %30 = vector.load %arg13[%c0_29, %c0_30] : memref<128x128xf32, #tpu.memory_space<vmem>>, vector<128x128xf32>
      tpu.vector_store %arg13[%c0_29, %c0_30], %29 {strides = array<i32>} : memref<128x128xf32, #tpu.memory_space<vmem>>, vector<128x128xf32>,
    } else {
    }
    %c0 = arith.constant 0 : index
    %c0_1 = arith.constant 0 : index
    %3 = vector.load %arg2[%c0, %c0_1] : memref<128x128xbf16, #tpu.memory_space<vmem>>, vector<128x128xbf16>
    %c0_2 = arith.constant 0 : index
    %c0_3 = arith.constant 0 : index
    %4 = vector.load %arg6[%c0_2, %c0_3] : memref<128x128xbf16, #tpu.memory_space<vmem>>, vector<128x128xbf16>
    %cst = arith.constant dense<0.000000e+00> : vector<128x128xf32>
    %5 = tpu.matmul %3, %4, %cst {dimension_numbers = #tpu.dot_dimension_numbers<[1], [0], [0], [1], [0, 0, 1, 1], [], []>} : vector<128x128xbf16>, vector<128x128xbf16>, vector<128x128xf32> -> vector<128x128xf32>
    %c0_4 = arith.constant 0 : index
    %c0_5 = arith.constant 0 : index
    %6 = vector.load %arg3[%c0_4, %c0_5] : memref<128x128xbf16, #tpu.memory_space<vmem>>, vector<128x128xbf16>
    %c0_6 = arith.constant 0 : index
    %c0_7 = arith.constant 0 : index
    %7 = vector.load %arg7[%c0_6, %c0_7] : memref<128x128xbf16, #tpu.memory_space<vmem>>, vector<128x128xbf16>
    %cst_8 = arith.constant dense<0.000000e+00> : vector<128x128xf32>
    %8 = tpu.matmul %6, %7, %cst_8 {dimension_numbers = #tpu.dot_dimension_numbers<[1], [0], [0], [1], [0, 0, 1, 1], [], []>} : vector<128x128xbf16>, vector<128x128xbf16>, vector<128x128xf32> -> vector<128x128xf32>
    %9 = arith.addf %5, %8 : vector<128x128xf32>
    %c0_9 = arith.constant 0 : index
    %c0_10 = arith.constant 0 : index
    %10 = vector.load %arg8[%c0_9, %c0_10] : memref<1x128xf32, #tpu.memory_space<vmem>>, vector<1x128xf32>
    %11 = vector.broadcast %10 : vector<1x128xf32> to vector<128x128xf32>
    %12 = arith.addf %9, %11 : vector<128x128xf32>
    %c0_11 = arith.constant 0 : index
    %c0_12 = arith.constant 0 : index
    %13 = vector.load %arg4[%c0_11, %c0_12] : memref<128x128xbf16, #tpu.memory_space<vmem>>, vector<128x128xbf16>
    %c0_13 = arith.constant 0 : index
    %c0_14 = arith.constant 0 : index
    %14 = vector.load %arg9[%c0_13, %c0_14] : memref<128x128xbf16, #tpu.memory_space<vmem>>, vector<128x128xbf16>
    %cst_15 = arith.constant dense<0.000000e+00> : vector<128x128xf32>
    %15 = tpu.matmul %13, %14, %cst_15 {dimension_numbers = #tpu.dot_dimension_numbers<[1], [0], [0], [1], [0, 0, 1, 1], [], []>} : vector<128x128xbf16>, vector<128x128xbf16>, vector<128x128xf32> -> vector<128x128xf32>
    %c0_16 = arith.constant 0 : index
    %c0_17 = arith.constant 0 : index
    %16 = vector.load %arg10[%c0_16, %c0_17] : memref<1x128xf32, #tpu.memory_space<vmem>>, vector<1x128xf32>
    %17 = vector.broadcast %16 : vector<1x128xf32> to vector<128x128xf32>
    %18 = arith.addf %15, %17 : vector<128x128xf32>
    %19 = arith.mulf %12, %18 : vector<128x128xf32>
    %20 = arith.truncf %19 : vector<128x128xf32> to vector<128x128xbf16>
    %c0_18 = arith.constant 0 : index
    %c0_19 = arith.constant 0 : index
    %21 = vector.load %arg13[%c0_18, %c0_19] : memref<128x128xf32, #tpu.memory_space<vmem>>, vector<128x128xf32>
    %c0_20 = arith.constant 0 : index
    %c0_21 = arith.constant 0 : index
    %22 = vector.load %arg11[%c0_20, %c0_21] : memref<128x128xbf16, #tpu.memory_space<vmem>>, vector<128x128xbf16>
    %cst_22 = arith.constant dense<0.000000e+00> : vector<128x128xf32>
    %23 = tpu.matmul %20, %22, %cst_22 {dimension_numbers = #tpu.dot_dimension_numbers<[1], [0], [0], [1], [0, 0, 1, 1], [], []>} : vector<128x128xbf16>, vector<128x128xbf16>, vector<128x128xf32> -> vector<128x128xf32>
    %24 = arith.addf %21, %23 : vector<128x128xf32>
    %c0_23 = arith.constant 0 : index
    %c0_24 = arith.constant 0 : index
    %25 = vector.load %arg13[%c0_23, %c0_24] : memref<128x128xf32, #tpu.memory_space<vmem>>, vector<128x128xf32>
    tpu.vector_store %arg13[%c0_23, %c0_24], %24 {strides = array<i32>} : memref<128x128xf32, #tpu.memory_space<vmem>>, vector<128x128xf32>,
    return
  }
  func.func @transform_0(%arg0: i32, %arg1: i32) -> (i32, i32) {
    %c0_i32 = arith.constant 0 : i32
    %c0_i32_0 = arith.constant 0 : i32
    return %arg0, %c0_i32 : i32, i32
  }
  func.func @transform_1(%arg0: i32, %arg1: i32) -> (i32, i32) {
    %c0_i32 = arith.constant 0 : i32
    %c0_i32_0 = arith.constant 0 : i32
    return %arg0, %c0_i32 : i32, i32
  }
  func.func @transform_2(%arg0: i32, %arg1: i32) -> (i32, i32) {
    %c0_i32 = arith.constant 0 : i32
    %c0_i32_0 = arith.constant 0 : i32
    return %arg0, %c0_i32 : i32, i32
  }
  func.func @transform_3(%arg0: i32, %arg1: i32) -> (i32, i32) {
    %c0_i32 = arith.constant 0 : i32
    %c0_i32_0 = arith.constant 0 : i32
    return %arg0, %c0_i32 : i32, i32
  }
  func.func @transform_4(%arg0: i32, %arg1: i32) -> (i32, i32) {
    %c0_i32 = arith.constant 0 : i32
    %c0_i32_0 = arith.constant 0 : i32
    return %c0_i32, %arg1 : i32, i32
  }
  func.func @transform_5(%arg0: i32, %arg1: i32) -> (i32, i32) {
    %c0_i32 = arith.constant 0 : i32
    %c0_i32_0 = arith.constant 0 : i32
    return %c0_i32, %arg1 : i32, i32
  }
  func.func @transform_6(%arg0: i32, %arg1: i32) -> (i32, i32) {
    %c0_i32 = arith.constant 0 : i32
    %c0_i32_0 = arith.constant 0 : i32
    return %c0_i32, %arg1 : i32, i32
  }
  func.func @transform_7(%arg0: i32, %arg1: i32) -> (i32, i32) {
    %c0_i32 = arith.constant 0 : i32
    %c0_i32_0 = arith.constant 0 : i32
    return %c0_i32, %arg1 : i32, i32
  }
  func.func @transform_8(%arg0: i32, %arg1: i32) -> (i32, i32) {
    %c0_i32 = arith.constant 0 : i32
    %c0_i32_0 = arith.constant 0 : i32
    return %c0_i32, %arg1 : i32, i32
  }
  func.func @transform_9(%arg0: i32, %arg1: i32) -> (i32, i32) {
    %c0_i32 = arith.constant 0 : i32
    %c0_i32_0 = arith.constant 0 : i32
    return %arg1, %c0_i32 : i32, i32
  }
  func.func @transform_10(%arg0: i32, %arg1: i32) -> (i32, i32) {
    %c0_i32 = arith.constant 0 : i32
    %c0_i32_0 = arith.constant 0 : i32
    %c0_i32_1 = arith.constant 0 : i32
    return %c0_i32, %c0_i32_0 : i32, i32
  }
  func.func @transform_11(%arg0: i32, %arg1: i32) -> (i32, i32) {
    %c0_i32 = arith.constant 0 : i32
    %c0_i32_0 = arith.constant 0 : i32
    return %arg0, %c0_i32 : i32, i32
  }
}

module attributes {stable_mosaic.version = 11 : i64} {
  func.func @_ctx_kernel(%arg0: i32, %arg1: memref<128x128xbf16, #tpu.memory_space<vmem>>, %arg2: memref<128x384xbf16, #tpu.memory_space<vmem>>, %arg3: memref<1x384xf32, #tpu.memory_space<vmem>>, %arg4: memref<128x128xf32, #tpu.memory_space<vmem>>, %arg5: memref<128x128xbf16, #tpu.memory_space<vmem>>, %arg6: memref<128x128xbf16, #tpu.memory_space<vmem>>) attributes {dimension_semantics = [#tpu.dimension_semantics<parallel>], iteration_bounds = array<i64: 1>, scalar_prefetch = 0 : i64, scratch_operands = 0 : i64, tpu.core_type = #tpu.core_type<tc>, window_params = [{transform_indices = @transform_0, window_bounds = array<i64: 128, 128>}, {pipeline_mode = #tpu.pipeline_mode<synchronous>, transform_indices = @transform_1, window_bounds = array<i64: 128, 384>}, {pipeline_mode = #tpu.pipeline_mode<synchronous>, transform_indices = @transform_2, window_bounds = array<i64: 1, 384>}, {transform_indices = @transform_3, window_bounds = array<i64: 128, 128>}, {transform_indices = @transform_4, window_bounds = array<i64: 128, 128>}, {transform_indices = @transform_5, window_bounds = array<i64: 128, 128>}]} {
    %c0 = arith.constant 0 : index
    %c0_0 = arith.constant 0 : index
    %0 = vector.load %arg1[%c0, %c0_0] : memref<128x128xbf16, #tpu.memory_space<vmem>>, vector<128x128xbf16>
    %c0_1 = arith.constant 0 : index
    %c0_2 = arith.constant 0 : index
    %1 = vector.load %arg2[%c0_1, %c0_2] : memref<128x384xbf16, #tpu.memory_space<vmem>>, vector<128x384xbf16>
    %cst = arith.constant dense<0.000000e+00> : vector<128x384xf32>
    %2 = tpu.matmul %0, %1, %cst {dimension_numbers = #tpu.dot_dimension_numbers<[1], [0], [0], [1], [0, 0, 1, 1], [], []>} : vector<128x128xbf16>, vector<128x384xbf16>, vector<128x384xf32> -> vector<128x384xf32>
    %c0_3 = arith.constant 0 : index
    %c0_4 = arith.constant 0 : index
    %3 = vector.load %arg3[%c0_3, %c0_4] : memref<1x384xf32, #tpu.memory_space<vmem>>, vector<1x384xf32>
    %4 = vector.broadcast %3 : vector<1x384xf32> to vector<128x384xf32>
    %5 = arith.addf %2, %4 : vector<128x384xf32>
    %6 = vector.extract_strided_slice %5 {offsets = [0, 0], sizes = [128, 128], strides = [1, 1]} : vector<128x384xf32> to vector<128x128xf32>
    %c0_5 = arith.constant 0 : index
    %c0_6 = arith.constant 0 : index
    %7 = vector.load %arg4[%c0_5, %c0_6] : memref<128x128xf32, #tpu.memory_space<vmem>>, vector<128x128xf32>
    tpu.vector_store %arg4[%c0_5, %c0_6], %6 {strides = array<i32>} : memref<128x128xf32, #tpu.memory_space<vmem>>, vector<128x128xf32>,
    %8 = vector.extract_strided_slice %5 {offsets = [0, 128], sizes = [128, 128], strides = [1, 1]} : vector<128x384xf32> to vector<128x128xf32>
    %9 = arith.truncf %8 : vector<128x128xf32> to vector<128x128xbf16>
    %c0_7 = arith.constant 0 : index
    %c0_8 = arith.constant 0 : index
    %10 = vector.load %arg5[%c0_7, %c0_8] : memref<128x128xbf16, #tpu.memory_space<vmem>>, vector<128x128xbf16>
    tpu.vector_store %arg5[%c0_7, %c0_8], %9 {strides = array<i32>} : memref<128x128xbf16, #tpu.memory_space<vmem>>, vector<128x128xbf16>,
    %11 = vector.extract_strided_slice %5 {offsets = [0, 256], sizes = [128, 128], strides = [1, 1]} : vector<128x384xf32> to vector<128x128xf32>
    %12 = arith.truncf %11 : vector<128x128xf32> to vector<128x128xbf16>
    %c0_9 = arith.constant 0 : index
    %c0_10 = arith.constant 0 : index
    %13 = vector.load %arg6[%c0_9, %c0_10] : memref<128x128xbf16, #tpu.memory_space<vmem>>, vector<128x128xbf16>
    tpu.vector_store %arg6[%c0_9, %c0_10], %12 {strides = array<i32>} : memref<128x128xbf16, #tpu.memory_space<vmem>>, vector<128x128xbf16>,
    return
  }
  func.func @transform_0(%arg0: i32) -> (i32, i32) {
    %c0_i32 = arith.constant 0 : i32
    %c0_i32_0 = arith.constant 0 : i32
    return %arg0, %c0_i32 : i32, i32
  }
  func.func @transform_1(%arg0: i32) -> (i32, i32) {
    %c0_i32 = arith.constant 0 : i32
    %c0_i32_0 = arith.constant 0 : i32
    %c0_i32_1 = arith.constant 0 : i32
    return %c0_i32, %c0_i32_0 : i32, i32
  }
  func.func @transform_2(%arg0: i32) -> (i32, i32) {
    %c0_i32 = arith.constant 0 : i32
    %c0_i32_0 = arith.constant 0 : i32
    %c0_i32_1 = arith.constant 0 : i32
    return %c0_i32, %c0_i32_0 : i32, i32
  }
  func.func @transform_3(%arg0: i32) -> (i32, i32) {
    %c0_i32 = arith.constant 0 : i32
    %c0_i32_0 = arith.constant 0 : i32
    return %arg0, %c0_i32 : i32, i32
  }
  func.func @transform_4(%arg0: i32) -> (i32, i32) {
    %c0_i32 = arith.constant 0 : i32
    %c0_i32_0 = arith.constant 0 : i32
    return %arg0, %c0_i32 : i32, i32
  }
  func.func @transform_5(%arg0: i32) -> (i32, i32) {
    %c0_i32 = arith.constant 0 : i32
    %c0_i32_0 = arith.constant 0 : i32
    return %arg0, %c0_i32 : i32, i32
  }
}

module attributes {stable_mosaic.version = 11 : i64} {
  func.func @_rel_kernel(%arg0: i32, %arg1: i32, %arg2: memref<128x128xbf16, #tpu.memory_space<vmem>>, %arg3: memref<128x128xbf16, #tpu.memory_space<vmem>>, %arg4: memref<128x128xbf16, #tpu.memory_space<vmem>>, %arg5: memref<128x128xf32, #tpu.memory_space<vmem>>, %arg6: memref<128x128xbf16, #tpu.memory_space<vmem>>, %arg7: memref<128x128xbf16, #tpu.memory_space<vmem>>, %arg8: memref<1x128xf32, #tpu.memory_space<vmem>>, %arg9: memref<128x128xbf16, #tpu.memory_space<vmem>>, %arg10: memref<1x128xf32, #tpu.memory_space<vmem>>, %arg11: memref<128x128xbf16, #tpu.memory_space<vmem>>, %arg12: memref<1x128xf32, #tpu.memory_space<vmem>>, %arg13: memref<128x128xf32, #tpu.memory_space<vmem>>) attributes {dimension_semantics = [#tpu.dimension_semantics<parallel>, #tpu.dimension_semantics<arbitrary>], iteration_bounds = array<i64: 1, 1>, scalar_prefetch = 0 : i64, scratch_operands = 0 : i64, tpu.core_type = #tpu.core_type<tc>, window_params = [{transform_indices = @transform_0, window_bounds = array<i64: 128, 128>}, {transform_indices = @transform_1, window_bounds = array<i64: 128, 128>}, {transform_indices = @transform_2, window_bounds = array<i64: 128, 128>}, {transform_indices = @transform_3, window_bounds = array<i64: 128, 128>}, {transform_indices = @transform_4, window_bounds = array<i64: 128, 128>}, {transform_indices = @transform_5, window_bounds = array<i64: 128, 128>}, {transform_indices = @transform_6, window_bounds = array<i64: 1, 128>}, {transform_indices = @transform_7, window_bounds = array<i64: 128, 128>}, {transform_indices = @transform_8, window_bounds = array<i64: 1, 128>}, {transform_indices = @transform_9, window_bounds = array<i64: 128, 128>}, {pipeline_mode = #tpu.pipeline_mode<synchronous>, transform_indices = @transform_10, window_bounds = array<i64: 1, 128>}, {transform_indices = @transform_11, window_bounds = array<i64: 128, 128>}]} {
    %c0_i32 = arith.constant 0 : i32
    %0 = arith.cmpi eq, %arg1, %c0_i32 : i32
    %1 = arith.extui %0 : i1 to i32
    %c0_i32_0 = arith.constant 0 : i32
    %2 = arith.cmpi ne, %1, %c0_i32_0 : i32
    scf.if %2 {
      %c0_25 = arith.constant 0 : index
      %c0_26 = arith.constant 0 : index
      %26 = vector.load %arg5[%c0_25, %c0_26] : memref<128x128xf32, #tpu.memory_space<vmem>>, vector<128x128xf32>
      %c0_27 = arith.constant 0 : index
      %c0_28 = arith.constant 0 : index
      %27 = vector.load %arg12[%c0_27, %c0_28] : memref<1x128xf32, #tpu.memory_space<vmem>>, vector<1x128xf32>
      %28 = vector.broadcast %27 : vector<1x128xf32> to vector<128x128xf32>
      %29 = arith.addf %26, %28 : vector<128x128xf32>
      %c0_29 = arith.constant 0 : index
      %c0_30 = arith.constant 0 : index
      %30 = vector.load %arg13[%c0_29, %c0_30] : memref<128x128xf32, #tpu.memory_space<vmem>>, vector<128x128xf32>
      tpu.vector_store %arg13[%c0_29, %c0_30], %29 {strides = array<i32>} : memref<128x128xf32, #tpu.memory_space<vmem>>, vector<128x128xf32>,
    } else {
    }
    %c0 = arith.constant 0 : index
    %c0_1 = arith.constant 0 : index
    %3 = vector.load %arg2[%c0, %c0_1] : memref<128x128xbf16, #tpu.memory_space<vmem>>, vector<128x128xbf16>
    %c0_2 = arith.constant 0 : index
    %c0_3 = arith.constant 0 : index
    %4 = vector.load %arg6[%c0_2, %c0_3] : memref<128x128xbf16, #tpu.memory_space<vmem>>, vector<128x128xbf16>
    %cst = arith.constant dense<0.000000e+00> : vector<128x128xf32>
    %5 = tpu.matmul %3, %4, %cst {dimension_numbers = #tpu.dot_dimension_numbers<[1], [0], [0], [1], [0, 0, 1, 1], [], []>} : vector<128x128xbf16>, vector<128x128xbf16>, vector<128x128xf32> -> vector<128x128xf32>
    %c0_4 = arith.constant 0 : index
    %c0_5 = arith.constant 0 : index
    %6 = vector.load %arg3[%c0_4, %c0_5] : memref<128x128xbf16, #tpu.memory_space<vmem>>, vector<128x128xbf16>
    %c0_6 = arith.constant 0 : index
    %c0_7 = arith.constant 0 : index
    %7 = vector.load %arg7[%c0_6, %c0_7] : memref<128x128xbf16, #tpu.memory_space<vmem>>, vector<128x128xbf16>
    %cst_8 = arith.constant dense<0.000000e+00> : vector<128x128xf32>
    %8 = tpu.matmul %6, %7, %cst_8 {dimension_numbers = #tpu.dot_dimension_numbers<[1], [0], [0], [1], [0, 0, 1, 1], [], []>} : vector<128x128xbf16>, vector<128x128xbf16>, vector<128x128xf32> -> vector<128x128xf32>
    %9 = arith.addf %5, %8 : vector<128x128xf32>
    %c0_9 = arith.constant 0 : index
    %c0_10 = arith.constant 0 : index
    %10 = vector.load %arg8[%c0_9, %c0_10] : memref<1x128xf32, #tpu.memory_space<vmem>>, vector<1x128xf32>
    %11 = vector.broadcast %10 : vector<1x128xf32> to vector<128x128xf32>
    %12 = arith.addf %9, %11 : vector<128x128xf32>
    %c0_11 = arith.constant 0 : index
    %c0_12 = arith.constant 0 : index
    %13 = vector.load %arg4[%c0_11, %c0_12] : memref<128x128xbf16, #tpu.memory_space<vmem>>, vector<128x128xbf16>
    %c0_13 = arith.constant 0 : index
    %c0_14 = arith.constant 0 : index
    %14 = vector.load %arg9[%c0_13, %c0_14] : memref<128x128xbf16, #tpu.memory_space<vmem>>, vector<128x128xbf16>
    %cst_15 = arith.constant dense<0.000000e+00> : vector<128x128xf32>
    %15 = tpu.matmul %13, %14, %cst_15 {dimension_numbers = #tpu.dot_dimension_numbers<[1], [0], [0], [1], [0, 0, 1, 1], [], []>} : vector<128x128xbf16>, vector<128x128xbf16>, vector<128x128xf32> -> vector<128x128xf32>
    %c0_16 = arith.constant 0 : index
    %c0_17 = arith.constant 0 : index
    %16 = vector.load %arg10[%c0_16, %c0_17] : memref<1x128xf32, #tpu.memory_space<vmem>>, vector<1x128xf32>
    %17 = vector.broadcast %16 : vector<1x128xf32> to vector<128x128xf32>
    %18 = arith.addf %15, %17 : vector<128x128xf32>
    %19 = arith.mulf %12, %18 : vector<128x128xf32>
    %20 = arith.truncf %19 : vector<128x128xf32> to vector<128x128xbf16>
    %c0_18 = arith.constant 0 : index
    %c0_19 = arith.constant 0 : index
    %21 = vector.load %arg13[%c0_18, %c0_19] : memref<128x128xf32, #tpu.memory_space<vmem>>, vector<128x128xf32>
    %c0_20 = arith.constant 0 : index
    %c0_21 = arith.constant 0 : index
    %22 = vector.load %arg11[%c0_20, %c0_21] : memref<128x128xbf16, #tpu.memory_space<vmem>>, vector<128x128xbf16>
    %cst_22 = arith.constant dense<0.000000e+00> : vector<128x128xf32>
    %23 = tpu.matmul %20, %22, %cst_22 {dimension_numbers = #tpu.dot_dimension_numbers<[1], [0], [0], [1], [0, 0, 1, 1], [], []>} : vector<128x128xbf16>, vector<128x128xbf16>, vector<128x128xf32> -> vector<128x128xf32>
    %24 = arith.addf %21, %23 : vector<128x128xf32>
    %c0_23 = arith.constant 0 : index
    %c0_24 = arith.constant 0 : index
    %25 = vector.load %arg13[%c0_23, %c0_24] : memref<128x128xf32, #tpu.memory_space<vmem>>, vector<128x128xf32>
    tpu.vector_store %arg13[%c0_23, %c0_24], %24 {strides = array<i32>} : memref<128x128xf32, #tpu.memory_space<vmem>>, vector<128x128xf32>,
    return
  }
  func.func @transform_0(%arg0: i32, %arg1: i32) -> (i32, i32) {
    %c0_i32 = arith.constant 0 : i32
    %c0_i32_0 = arith.constant 0 : i32
    return %arg0, %c0_i32 : i32, i32
  }
  func.func @transform_1(%arg0: i32, %arg1: i32) -> (i32, i32) {
    %c0_i32 = arith.constant 0 : i32
    %c0_i32_0 = arith.constant 0 : i32
    return %arg0, %c0_i32 : i32, i32
  }
  func.func @transform_2(%arg0: i32, %arg1: i32) -> (i32, i32) {
    %c0_i32 = arith.constant 0 : i32
    %c0_i32_0 = arith.constant 0 : i32
    return %arg0, %c0_i32 : i32, i32
  }
  func.func @transform_3(%arg0: i32, %arg1: i32) -> (i32, i32) {
    %c0_i32 = arith.constant 0 : i32
    %c0_i32_0 = arith.constant 0 : i32
    return %arg0, %c0_i32 : i32, i32
  }
  func.func @transform_4(%arg0: i32, %arg1: i32) -> (i32, i32) {
    %c0_i32 = arith.constant 0 : i32
    %c0_i32_0 = arith.constant 0 : i32
    return %c0_i32, %arg1 : i32, i32
  }
  func.func @transform_5(%arg0: i32, %arg1: i32) -> (i32, i32) {
    %c0_i32 = arith.constant 0 : i32
    %c0_i32_0 = arith.constant 0 : i32
    return %c0_i32, %arg1 : i32, i32
  }
  func.func @transform_6(%arg0: i32, %arg1: i32) -> (i32, i32) {
    %c0_i32 = arith.constant 0 : i32
    %c0_i32_0 = arith.constant 0 : i32
    return %c0_i32, %arg1 : i32, i32
  }
  func.func @transform_7(%arg0: i32, %arg1: i32) -> (i32, i32) {
    %c0_i32 = arith.constant 0 : i32
    %c0_i32_0 = arith.constant 0 : i32
    return %c0_i32, %arg1 : i32, i32
  }
  func.func @transform_8(%arg0: i32, %arg1: i32) -> (i32, i32) {
    %c0_i32 = arith.constant 0 : i32
    %c0_i32_0 = arith.constant 0 : i32
    return %c0_i32, %arg1 : i32, i32
  }
  func.func @transform_9(%arg0: i32, %arg1: i32) -> (i32, i32) {
    %c0_i32 = arith.constant 0 : i32
    %c0_i32_0 = arith.constant 0 : i32
    return %arg1, %c0_i32 : i32, i32
  }
  func.func @transform_10(%arg0: i32, %arg1: i32) -> (i32, i32) {
    %c0_i32 = arith.constant 0 : i32
    %c0_i32_0 = arith.constant 0 : i32
    %c0_i32_1 = arith.constant 0 : i32
    return %c0_i32, %c0_i32_0 : i32, i32
  }
  func.func @transform_11(%arg0: i32, %arg1: i32) -> (i32, i32) {
    %c0_i32 = arith.constant 0 : i32
    %c0_i32_0 = arith.constant 0 : i32
    return %arg0, %c0_i32 : i32, i32
  }
}

</mosaic_0001>

<llo_original>
// kernel: _core_impl.2
$region0: #{_core_impl.2}
  #allocation0 [shape = 'u32[]', space=smem, size = 0x4, offset = 0x4, fixed_abs, tag = 'smem constant byte address 0x4 - core index']
  #allocation1 [shape = 'u32[144,128]{1,0:T(1,128)}', space=vmem, size = 0x12000, scoped, tag = 'internal scratch']
  %s0 = inlined_call_operand.vmem [shape: bf16[128,128], index: 0, kind: input, shape index: {}]
  %s1 = inlined_call_operand.vmem [shape: bf16[128,384], index: 1, kind: input, shape index: {}]
  %s2 = inlined_call_operand.vmem [shape: f32[1,384], index: 2, kind: input, shape index: {}]
  %s3 = inlined_call_operand.vmem [shape: f32[128,128], index: 3, kind: output, shape index: {0}]
  %s4 = inlined_call_operand.vmem [shape: bf16[128,128], index: 4, kind: output, shape index: {1}]
  %s5 = inlined_call_operand.vmem [shape: bf16[128,128], index: 5, kind: output, shape index: {2}]
  %6 = xla_tuple %s3, %s4, %s5
  %s7 = sld [smem:[#allocation0]]
  $region38: #{_core_impl.2} parent=0
    _
  %s9 = ssub.s32 1, %s7
  %s10 = scalar_select 0, %s9, %s7
  // Predicated region
  $region2: #{_core_impl.2} parent=0 // pred_check
    _
  $region3: #{_core_impl.2} parent=0 // pred_check_branch
    %12 = sbr.rel (0) target = $region5
  $region4: #{_core_impl.2} parent=0 // pred_region
    _
  $region5: #{_core_impl.2} parent=0 // pred_fallthru
    _
  // Predicated region
  $region6: #{_core_impl.2} parent=0 // pred_check
    _
  $region7: #{_core_impl.2} parent=0 // pred_check_branch
    %14 = sbr.rel (0) target = $region9
  $region8: #{_core_impl.2} parent=0 // pred_region
    _
  $region9: #{_core_impl.2} parent=0 // pred_fallthru
    _
  // Predicated region
  $region10: #{_core_impl.2} parent=0 // pred_check
    _
  $region11: #{_core_impl.2} parent=0 // pred_check_branch
    %16 = sbr.rel (0) target = $region13
  $region12: #{_core_impl.2} parent=0 // pred_region
    _
  $region13: #{_core_impl.2} parent=0 // pred_fallthru
    _
  %v18 = vld [vmem:[%s0] sm:$0xf]
  %v19 = vld [vmem:[%s0 + $0x4] sm:$0xf]
  %v20 = vld [vmem:[%s0 + $0x8] sm:$0xf]
  %v21 = vld [vmem:[%s0 + $0xc] sm:$0xf]
  %v22 = vld [vmem:[%s0 + $0x10] sm:$0xf]
  %v23 = vld [vmem:[%s0 + $0x14] sm:$0xf]
  %v24 = vld [vmem:[%s0 + $0x18] sm:$0xf]
  %v25 = vld [vmem:[%s0 + $0x1c] sm:$0xf]
  %v26 = vld [vmem:[%s0 + $0x20] sm:$0xf]
  %v27 = vld [vmem:[%s0 + $0x24] sm:$0xf]
  %v28 = vld [vmem:[%s0 + $0x28] sm:$0xf]
  %v29 = vld [vmem:[%s0 + $0x2c] sm:$0xf]
  %v30 = vld [vmem:[%s0 + $0x30] sm:$0xf]
  %v31 = vld [vmem:[%s0 + $0x34] sm:$0xf]
  %v32 = vld [vmem:[%s0 + $0x38] sm:$0xf]
  %v33 = vld [vmem:[%s0 + $0x3c] sm:$0xf]
  %v34 = vld [vmem:[%s1] sm:$0xff]
  %v35 = vld [vmem:[%s1 + $0x8] sm:$0xf]
  %v36 = vld [vmem:[%s1 + $0xc] sm:$0xff]
  %v37 = vld [vmem:[%s1 + $0x14] sm:$0xf]
  %v38 = vld [vmem:[%s1 + $0x18] sm:$0xff]
  %v39 = vld [vmem:[%s1 + $0x20] sm:$0xf]
  %v40 = vld [vmem:[%s1 + $0x24] sm:$0xff]
  %v41 = vld [vmem:[%s1 + $0x2c] sm:$0xf]
  %v42 = vld [vmem:[%s1 + $0x30] sm:$0xff]
  %v43 = vld [vmem:[%s1 + $0x38] sm:$0xf]
  %v44 = vld [vmem:[%s1 + $0x3c] sm:$0xff]
  %v45 = vld [vmem:[%s1 + $0x44] sm:$0xf]
  %v46 = vld [vmem:[%s1 + $0x48] sm:$0xff]
  %v47 = vld [vmem:[%s1 + $0x50] sm:$0xf]
  %v48 = vld [vmem:[%s1 + $0x54] sm:$0xff]
  %v49 = vld [vmem:[%s1 + $0x5c] sm:$0xf]
  %v50 = vld [vmem:[%s1 + $0x60] sm:$0xff]
  %v51 = vld [vmem:[%s1 + $0x68] sm:$0xf]
  %v52 = vld [vmem:[%s1 + $0x6c] sm:$0xff]
  %v53 = vld [vmem:[%s1 + $0x74] sm:$0xf]
  %v54 = vld [vmem:[%s1 + $0x78] sm:$0xff]
  %v55 = vld [vmem:[%s1 + $0x80] sm:$0xf]
  %v56 = vld [vmem:[%s1 + $0x84] sm:$0xff]
  %v57 = vld [vmem:[%s1 + $0x8c] sm:$0xf]
  %v58 = vld [vmem:[%s1 + $0x90] sm:$0xff]
  %v59 = vld [vmem:[%s1 + $0x98] sm:$0xf]
  %v60 = vld [vmem:[%s1 + $0x9c] sm:$0xff]
  %v61 = vld [vmem:[%s1 + $0xa4] sm:$0xf]
  %v62 = vld [vmem:[%s1 + $0xa8] sm:$0xff]
  %v63 = vld [vmem:[%s1 + $0xb0] sm:$0xf]
  %v64 = vld [vmem:[%s1 + $0xb4] sm:$0xff]
  %v65 = vld [vmem:[%s1 + $0xbc] sm:$0xf]
  %v66 = vld [vmem:[%s2] sm:$0x7]
  %v68 = vlaneseq
  %v69 = vshrl.u32 %v68, 7
  %v70 = vsub.s32 0, %v69
  %v71 = vrot.slane %v66, %v70
  %v72 = vlaneseq
  %v73 = vshrl.u32 %v72, 7
  %v74 = vsub.s32 1, %v73
  %v75 = vrot.slane %v66, %v74
  %v76 = vlaneseq
  %v77 = vshrl.u32 %v76, 7
  %v78 = vsub.s32 2, %v77
  %v79 = vrot.slane %v66, %v78
  %v99 = vunpack.c.l.b16 %v18
  %v100 = vunpack.c.l.b16 %v19
  %v101 = vunpack.c.l.b16 %v20
  %v102 = vunpack.c.l.b16 %v21
  %v103 = vunpack.c.l.b16 %v22
  %v104 = vunpack.c.l.b16 %v23
  %v105 = vunpack.c.l.b16 %v24
  %v106 = vunpack.c.l.b16 %v25
  %v107 = vunpack.c.l.b16 %v26
  %v108 = vunpack.c.l.b16 %v27
  %v109 = vunpack.c.l.b16 %v28
  %v110 = vunpack.c.l.b16 %v29
  %v111 = vunpack.c.l.b16 %v30
  %v112 = vunpack.c.l.b16 %v31
  %v113 = vunpack.c.l.b16 %v32
  %v114 = vunpack.c.l.b16 %v33
  %v115 = vpack.c.b16 %v100, %v99
  %v116 = vpack.c.b16 %v102, %v101
  %v117 = vpack.c.b16 %v104, %v103
  %v118 = vpack.c.b16 %v106, %v105
  %v119 = vpack.c.b16 %v108, %v107
  %v120 = vpack.c.b16 %v110, %v109
  %v121 = vpack.c.b16 %v112, %v111
  %v122 = vpack.c.b16 %v114, %v113
  %v163 = vunpack.c.l.b16 %v34
  %v164 = vunpack.c.h.b16 %v34
  %v165 = vunpack.c.l.b16 %v35
  %v166 = vunpack.c.l.b16 %v36
  %v167 = vunpack.c.h.b16 %v36
  %v168 = vunpack.c.l.b16 %v37
  %v169 = vunpack.c.l.b16 %v38
  %v170 = vunpack.c.h.b16 %v38
  %v171 = vunpack.c.l.b16 %v39
  %v172 = vunpack.c.l.b16 %v40
  %v173 = vunpack.c.h.b16 %v40
  %v174 = vunpack.c.l.b16 %v41
  %v175 = vunpack.c.l.b16 %v42
  %v176 = vunpack.c.h.b16 %v42
  %v177 = vunpack.c.l.b16 %v43
  %v178 = vunpack.c.l.b16 %v44
  %v179 = vunpack.c.h.b16 %v44
  %v180 = vunpack.c.l.b16 %v45
  %v181 = vunpack.c.l.b16 %v46
  %v182 = vunpack.c.h.b16 %v46
  %v183 = vunpack.c.l.b16 %v47
  %v184 = vunpack.c.l.b16 %v48
  %v185 = vunpack.c.h.b16 %v48
  %v186 = vunpack.c.l.b16 %v49
  %v187 = vunpack.c.l.b16 %v50
  %v188 = vunpack.c.h.b16 %v50
  %v189 = vunpack.c.l.b16 %v51
  %v190 = vunpack.c.l.b16 %v52
  %v191 = vunpack.c.h.b16 %v52
  %v192 = vunpack.c.l.b16 %v53
  %v193 = vunpack.c.l.b16 %v54
  %v194 = vunpack.c.h.b16 %v54
  %v195 = vunpack.c.l.b16 %v55
  %v196 = vunpack.c.l.b16 %v56
  %v197 = vunpack.c.h.b16 %v56
  %v198 = vunpack.c.l.b16 %v57
  %v199 = vunpack.c.l.b16 %v58
  %v200 = vunpack.c.h.b16 %v58
  %v201 = vunpack.c.l.b16 %v59
  %v202 = vunpack.c.l.b16 %v60
  %v203 = vunpack.c.h.b16 %v60
  %v204 = vunpack.c.l.b16 %v61
  %v205 = vunpack.c.l.b16 %v62
  %v206 = vunpack.c.h.b16 %v62
  %v207 = vunpack.c.l.b16 %v63
  %v208 = vunpack.c.l.b16 %v64
  %v209 = vunpack.c.h.b16 %v64
  %v210 = vunpack.c.l.b16 %v65
  %v211 = vpack.c.b16 %v166, %v163
  %v212 = vpack.c.b16 %v167, %v164
  %v213 = vpack.c.b16 %v168, %v165
  %v214 = vpack.c.b16 %v172, %v169
  %v215 = vpack.c.b16 %v173, %v170
  %v216 = vpack.c.b16 %v174, %v171
  %v217 = vpack.c.b16 %v178, %v175
  %v218 = vpack.c.b16 %v179, %v176
  %v219 = vpack.c.b16 %v180, %v177
  %v220 = vpack.c.b16 %v184, %v181
  %v221 = vpack.c.b16 %v185, %v182
  %v222 = vpack.c.b16 %v186, %v183
  %v223 = vpack.c.b16 %v190, %v187
  %v224 = vpack.c.b16 %v191, %v188
  %v225 = vpack.c.b16 %v192, %v189
  %v226 = vpack.c.b16 %v196, %v193
  %v227 = vpack.c.b16 %v197, %v194
  %v228 = vpack.c.b16 %v198, %v195
  %v229 = vpack.c.b16 %v202, %v199
  %v230 = vpack.c.b16 %v203, %v200
  %v231 = vpack.c.b16 %v204, %v201
  %v232 = vpack.c.b16 %v208, %v205
  %v233 = vpack.c.b16 %v209, %v206
  %v234 = vpack.c.b16 %v210, %v207
  %259 = vmatprep.subr.bf16.mxu0 %v212
  %260 = vmatpush1.bf16.msra.mxu0 %v211
  %261 = vmatprep.subr.bf16.mxu0 %v215
  %262 = vmatpush1.bf16.msra.mxu0 %v214
  %263 = vmatprep.subr.bf16.mxu0 %v218
  %264 = vmatpush1.bf16.msra.mxu0 %v217
  %265 = vmatprep.subr.bf16.mxu0 %v221
  %266 = vmatpush1.bf16.msra.mxu0 %v220
  %267 = vmatprep.subr.bf16.mxu0 %v224
  %268 = vmatpush1.bf16.msra.mxu0 %v223
  %269 = vmatprep.subr.bf16.mxu0 %v227
  %270 = vmatpush1.bf16.msra.mxu0 %v226
  %271 = vmatprep.subr.bf16.mxu0 %v230
  %272 = vmatpush1.bf16.msra.mxu0 %v229
  %273 = vmatprep.subr.bf16.mxu0 %v233
  %274 = vmatpush1.bf16.msra.mxu0 %v232
  %275 = vmatprep.subr.bf16.mxu0 0
  %276 = vmatpush1.bf16.msra.mxu0 0
  %277 = vmatprep.subr.bf16.mxu0 0
  %278 = vmatpush1.bf16.msra.mxu0 0
  %279 = vmatprep.subr.bf16.mxu0 0
  %280 = vmatpush1.bf16.msra.mxu0 0
  %281 = vmatprep.subr.bf16.mxu0 0
  %282 = vmatpush1.bf16.msra.mxu0 0
  %283 = vmatprep.subr.bf16.mxu0 0
  %284 = vmatpush1.bf16.msra.mxu0 0
  %285 = vmatprep.subr.bf16.mxu0 0
  %286 = vmatpush1.bf16.msra.mxu0 0
  %287 = vmatprep.subr.bf16.mxu0 0
  %288 = vmatpush1.bf16.msra.mxu0 0
  %289 = vmatprep.subr.bf16.mxu0 0
  %290 = vmatpush1.bf16.msra.mxu0 0
  %291 = vmatprep.mubr.bf16.mxu0 0
  %292 = vmatmul.mubr.bf16.gmra.mrb[0].mxu0 %v115
  %v293 = vpop.f32.mrb[0].mxu0
  %v294 = vadd.f32 %v71, %v293
  %v295 = vpop.f32.mrb[0].mxu0
  %v296 = vadd.f32 %v75, %v295
  %v297 = vpop.f32.mrb[0].mxu0
  %v298 = vadd.f32 %v71, %v297
  %v299 = vpop.f32.mrb[0].mxu0
  %v300 = vadd.f32 %v75, %v299
  %301 = vmatprep.mubr.bf16.mxu0 0
  %302 = vmatmul.mubr.bf16.gmra.mrb[0].mxu0 %v116
  %v303 = vpop.f32.mrb[0].mxu0
  %v304 = vadd.f32 %v71, %v303
  %v305 = vpop.f32.mrb[0].mxu0
  %v306 = vadd.f32 %v75, %v305
  %v307 = vpop.f32.mrb[0].mxu0
  %v308 = vadd.f32 %v71, %v307
  %v309 = vpop.f32.mrb[0].mxu0
  %v310 = vadd.f32 %v75, %v309
  %311 = vmatprep.mubr.bf16.mxu0 0
  %312 = vmatmul.mubr.bf16.gmra.mrb[0].mxu0 %v117
  %v313 = vpop.f32.mrb[0].mxu0
  %v314 = vadd.f32 %v71, %v313
  %v315 = vpop.f32.mrb[0].mxu0
  %v316 = vadd.f32 %v75, %v315
  %v317 = vpop.f32.mrb[0].mxu0
  %v318 = vadd.f32 %v71, %v317
  %v319 = vpop.f32.mrb[0].mxu0
  %v320 = vadd.f32 %v75, %v319
  %321 = vmatprep.mubr.bf16.mxu0 0
  %322 = vmatmul.mubr.bf16.gmra.mrb[0].mxu0 %v118
  %v323 = vpop.f32.mrb[0].mxu0
  %v324 = vadd.f32 %v71, %v323
  %v325 = vpop.f32.mrb[0].mxu0
  %v326 = vadd.f32 %v75, %v325
  %v327 = vpop.f32.mrb[0].mxu0
  %v328 = vadd.f32 %v71, %v327
  %v329 = vpop.f32.mrb[0].mxu0
  %v330 = vadd.f32 %v75, %v329
  %331 = vmatprep.mubr.bf16.mxu0 0
  %332 = vmatmul.mubr.bf16.gmra.mrb[0].mxu0 %v119
  %v333 = vpop.f32.mrb[0].mxu0
  %v334 = vadd.f32 %v71, %v333
  %v335 = vpop.f32.mrb[0].mxu0
  %v336 = vadd.f32 %v75, %v335
  %v337 = vpop.f32.mrb[0].mxu0
  %v338 = vadd.f32 %v71, %v337
  %v339 = vpop.f32.mrb[0].mxu0
  %v340 = vadd.f32 %v75, %v339
  %341 = vmatprep.mubr.bf16.mxu0 0
  %342 = vmatmul.mubr.bf16.gmra.mrb[0].mxu0 %v120
  %v343 = vpop.f32.mrb[0].mxu0
  %v344 = vadd.f32 %v71, %v343
  %v345 = vpop.f32.mrb[0].mxu0
  %v346 = vadd.f32 %v75, %v345
  %v347 = vpop.f32.mrb[0].mxu0
  %v348 = vadd.f32 %v71, %v347
  %v349 = vpop.f32.mrb[0].mxu0
  %v350 = vadd.f32 %v75, %v349
  %351 = vmatprep.mubr.bf16.mxu0 0
  %352 = vmatmul.mubr.bf16.gmra.mrb[0].mxu0 %v121
  %v353 = vpop.f32.mrb[0].mxu0
  %v354 = vadd.f32 %v71, %v353
  %v355 = vpop.f32.mrb[0].mxu0
  %v356 = vadd.f32 %v75, %v355
  %v357 = vpop.f32.mrb[0].mxu0
  %v358 = vadd.f32 %v71, %v357
  %v359 = vpop.f32.mrb[0].mxu0
  %v360 = vadd.f32 %v75, %v359
  %361 = vmatprep.mubr.bf16.mxu0 0
  %362 = vmatmul.mubr.bf16.gmra.mrb[0].mxu0 %v122
  %v363 = vpop.f32.mrb[0].mxu0
  %v364 = vadd.f32 %v71, %v363
  %v365 = vpop.f32.mrb[0].mxu0
  %v366 = vadd.f32 %v75, %v365
  %v367 = vpop.f32.mrb[0].mxu0
  %v368 = vadd.f32 %v71, %v367
  %v369 = vpop.f32.mrb[0].mxu0
  %v370 = vadd.f32 %v75, %v369
  %371 = vdwg.mxu0
  %372 = vmatprep.subr.bf16.mxu0 0
  %373 = vmatpush1.bf16.msra.mxu0 %v213
  %374 = vmatprep.subr.bf16.mxu0 0
  %375 = vmatpush1.bf16.msra.mxu0 %v216
  %376 = vmatprep.subr.bf16.mxu0 0
  %377 = vmatpush1.bf16.msra.mxu0 %v219
  %378 = vmatprep.subr.bf16.mxu0 0
  %379 = vmatpush1.bf16.msra.mxu0 %v222
  %380 = vmatprep.subr.bf16.mxu0 0
  %381 = vmatpush1.bf16.msra.mxu0 %v225
  %382 = vmatprep.subr.bf16.mxu0 0
  %383 = vmatpush1.bf16.msra.mxu0 %v228
  %384 = vmatprep.subr.bf16.mxu0 0
  %385 = vmatpush1.bf16.msra.mxu0 %v231
  %386 = vmatprep.subr.bf16.mxu0 0
  %387 = vmatpush1.bf16.msra.mxu0 %v234
  %388 = vmatprep.subr.bf16.mxu0 0
  %389 = vmatpush1.bf16.msra.mxu0 0
  %390 = vmatprep.subr.bf16.mxu0 0
  %391 = vmatpush1.bf16.msra.mxu0 0
  %392 = vmatprep.subr.bf16.mxu0 0
  %393 = vmatpush1.bf16.msra.mxu0 0
  %394 = vmatprep.subr.bf16.mxu0 0
  %395 = vmatpush1.bf16.msra.mxu0 0
  %396 = vmatprep.subr.bf16.mxu0 0
  %397 = vmatpush1.bf16.msra.mxu0 0
  %398 = vmatprep.subr.bf16.mxu0 0
  %399 = vmatpush1.bf16.msra.mxu0 0
  %400 = vmatprep.subr.bf16.mxu0 0
  %401 = vmatpush1.bf16.msra.mxu0 0
  %402 = vmatprep.subr.bf16.mxu0 0
  %403 = vmatpush1.bf16.msra.mxu0 0
  %404 = vmatprep.mubr.bf16.mxu0 0
  %405 = vmatmul.mubr.bf16.gmra.mrb[0].mxu0 %v115
  %v406 = vpop.f32.mrb[0].mxu0
  %v407 = vadd.f32 %v79, %v406
  %v408 = vpop.f32.mrb[0].mxu0
  %v409 = vpop.f32.mrb[0].mxu0
  %v410 = vadd.f32 %v79, %v409
  %v411 = vpop.f32.mrb[0].mxu0
  %412 = vmatprep.mubr.bf16.mxu0 0
  %413 = vmatmul.mubr.bf16.gmra.mrb[0].mxu0 %v116
  %v414 = vpop.f32.mrb[0].mxu0
  %v415 = vadd.f32 %v79, %v414
  %v416 = vpop.f32.mrb[0].mxu0
  %v417 = vpop.f32.mrb[0].mxu0
  %v418 = vadd.f32 %v79, %v417
  %v419 = vpop.f32.mrb[0].mxu0
  %420 = vmatprep.mubr.bf16.mxu0 0
  %421 = vmatmul.mubr.bf16.gmra.mrb[0].mxu0 %v117
  %v422 = vpop.f32.mrb[0].mxu0
  %v423 = vadd.f32 %v79, %v422
  %v424 = vpop.f32.mrb[0].mxu0
  %v425 = vpop.f32.mrb[0].mxu0
  %v426 = vadd.f32 %v79, %v425
  %v427 = vpop.f32.mrb[0].mxu0
  %428 = vmatprep.mubr.bf16.mxu0 0
  %429 = vmatmul.mubr.bf16.gmra.mrb[0].mxu0 %v118
  %v430 = vpop.f32.mrb[0].mxu0
  %v431 = vadd.f32 %v79, %v430
  %v432 = vpop.f32.mrb[0].mxu0
  %v433 = vpop.f32.mrb[0].mxu0
  %v434 = vadd.f32 %v79, %v433
  %v435 = vpop.f32.mrb[0].mxu0
  %436 = vmatprep.mubr.bf16.mxu0 0
  %437 = vmatmul.mubr.bf16.gmra.mrb[0].mxu0 %v119
  %v438 = vpop.f32.mrb[0].mxu0
  %v439 = vadd.f32 %v79, %v438
  %v440 = vpop.f32.mrb[0].mxu0
  %v441 = vpop.f32.mrb[0].mxu0
  %v442 = vadd.f32 %v79, %v441
  %v443 = vpop.f32.mrb[0].mxu0
  %444 = vmatprep.mubr.bf16.mxu0 0
  %445 = vmatmul.mubr.bf16.gmra.mrb[0].mxu0 %v120
  %v446 = vpop.f32.mrb[0].mxu0
  %v447 = vadd.f32 %v79, %v446
  %v448 = vpop.f32.mrb[0].mxu0
  %v449 = vpop.f32.mrb[0].mxu0
  %v450 = vadd.f32 %v79, %v449
  %v451 = vpop.f32.mrb[0].mxu0
  %452 = vmatprep.mubr.bf16.mxu0 0
  %453 = vmatmul.mubr.bf16.gmra.mrb[0].mxu0 %v121
  %v454 = vpop.f32.mrb[0].mxu0
  %v455 = vadd.f32 %v79, %v454
  %v456 = vpop.f32.mrb[0].mxu0
  %v457 = vpop.f32.mrb[0].mxu0
  %v458 = vadd.f32 %v79, %v457
  %v459 = vpop.f32.mrb[0].mxu0
  %460 = vmatprep.mubr.bf16.mxu0 0
  %461 = vmatmul.mubr.bf16.gmra.mrb[0].mxu0 %v122
  %v462 = vpop.f32.mrb[0].mxu0
  %v463 = vadd.f32 %v79, %v462
  %v464 = vpop.f32.mrb[0].mxu0
  %v465 = vpop.f32.mrb[0].mxu0
  %v466 = vadd.f32 %v79, %v465
  %v467 = vpop.f32.mrb[0].mxu0
  %468 = vdwg.mxu0
  %469 = vst [vmem:[%s3] sm:$0xff] %v294
  %470 = vst [vmem:[%s3 + $0x8] sm:$0xff] %v298
  %471 = vst [vmem:[%s3 + $0x10] sm:$0xff] %v304
  %472 = vst [vmem:[%s3 + $0x18] sm:$0xff] %v308
  %473 = vst [vmem:[%s3 + $0x20] sm:$0xff] %v314
  %474 = vst [vmem:[%s3 + $0x28] sm:$0xff] %v318
  %475 = vst [vmem:[%s3 + $0x30] sm:$0xff] %v324
  %476 = vst [vmem:[%s3 + $0x38] sm:$0xff] %v328
  %477 = vst [vmem:[%s3 + $0x40] sm:$0xff] %v334
  %478 = vst [vmem:[%s3 + $0x48] sm:$0xff] %v338
  %479 = vst [vmem:[%s3 + $0x50] sm:$0xff] %v344
  %480 = vst [vmem:[%s3 + $0x58] sm:$0xff] %v348
  %481 = vst [vmem:[%s3 + $0x60] sm:$0xff] %v354
  %482 = vst [vmem:[%s3 + $0x68] sm:$0xff] %v358
  %483 = vst [vmem:[%s3 + $0x70] sm:$0xff] %v364
  %484 = vst [vmem:[%s3 + $0x78] sm:$0xff] %v368
  %v485 = vpack.c.bf16 %v300, %v296
  %v486 = vpack.c.bf16 %v310, %v306
  %v487 = vpack.c.bf16 %v320, %v316
  %v488 = vpack.c.bf16 %v330, %v326
  %v489 = vpack.c.bf16 %v340, %v336
  %v490 = vpack.c.bf16 %v350, %v346
  %v491 = vpack.c.bf16 %v360, %v356
  %v492 = vpack.c.bf16 %v370, %v366
  %v501 = vunpack.c.l.b16 %v485
  %v502 = vunpack.c.h.b16 %v485
  %v503 = vunpack.c.l.b16 %v486
  %v504 = vunpack.c.h.b16 %v486
  %v505 = vunpack.c.l.b16 %v487
  %v506 = vunpack.c.h.b16 %v487
  %v507 = vunpack.c.l.b16 %v488
  %v508 = vunpack.c.h.b16 %v488
  %v509 = vunpack.c.l.b16 %v489
  %v510 = vunpack.c.h.b16 %v489
  %v511 = vunpack.c.l.b16 %v490
  %v512 = vunpack.c.h.b16 %v490
  %v513 = vunpack.c.l.b16 %v491
  %v514 = vunpack.c.h.b16 %v491
  %v515 = vunpack.c.l.b16 %v492
  %v516 = vunpack.c.h.b16 %v492
  %v517 = vpack.c.b16 %v501, %v501
  %v518 = vpack.c.b16 %v502, %v502
  %v519 = vpack.c.b16 %v503, %v503
  %v520 = vpack.c.b16 %v504, %v504
  %v521 = vpack.c.b16 %v505, %v505
  %v522 = vpack.c.b16 %v506, %v506
  %v523 = vpack.c.b16 %v507, %v507
  %v524 = vpack.c.b16 %v508, %v508
  %v525 = vpack.c.b16 %v509, %v509
  %v526 = vpack.c.b16 %v510, %v510
  %v527 = vpack.c.b16 %v511, %v511
  %v528 = vpack.c.b16 %v512, %v512
  %v529 = vpack.c.b16 %v513, %v513
  %v530 = vpack.c.b16 %v514, %v514
  %v531 = vpack.c.b16 %v515, %v515
  %v532 = vpack.c.b16 %v516, %v516
  %549 = vst [vmem:[%s4] sm:$0xf] %v517
  %550 = vst [vmem:[%s4 + $0x4] sm:$0xf] %v518
  %551 = vst [vmem:[%s4 + $0x8] sm:$0xf] %v519
  %552 = vst [vmem:[%s4 + $0xc] sm:$0xf] %v520
  %553 = vst [vmem:[%s4 + $0x10] sm:$0xf] %v521
  %554 = vst [vmem:[%s4 + $0x14] sm:$0xf] %v522
  %555 = vst [vmem:[%s4 + $0x18] sm:$0xf] %v523
  %556 = vst [vmem:[%s4 + $0x1c] sm:$0xf] %v524
  %557 = vst [vmem:[%s4 + $0x20] sm:$0xf] %v525
  %558 = vst [vmem:[%s4 + $0x24] sm:$0xf] %v526
  %559 = vst [vmem:[%s4 + $0x28] sm:$0xf] %v527
  %560 = vst [vmem:[%s4 + $0x2c] sm:$0xf] %v528
  %561 = vst [vmem:[%s4 + $0x30] sm:$0xf] %v529
  %562 = vst [vmem:[%s4 + $0x34] sm:$0xf] %v530
  %563 = vst [vmem:[%s4 + $0x38] sm:$0xf] %v531
  %564 = vst [vmem:[%s4 + $0x3c] sm:$0xf] %v532
  %v565 = vpack.c.bf16 %v410, %v407
  %v566 = vpack.c.bf16 %v418, %v415
  %v567 = vpack.c.bf16 %v426, %v423
  %v568 = vpack.c.bf16 %v434, %v431
  %v569 = vpack.c.bf16 %v442, %v439
  %v570 = vpack.c.bf16 %v450, %v447
  %v571 = vpack.c.bf16 %v458, %v455
  %v572 = vpack.c.bf16 %v466, %v463
  %v581 = vunpack.c.l.b16 %v565
  %v582 = vunpack.c.h.b16 %v565
  %v583 = vunpack.c.l.b16 %v566
  %v584 = vunpack.c.h.b16 %v566
  %v585 = vunpack.c.l.b16 %v567
  %v586 = vunpack.c.h.b16 %v567
  %v587 = vunpack.c.l.b16 %v568
  %v588 = vunpack.c.h.b16 %v568
  %v589 = vunpack.c.l.b16 %v569
  %v590 = vunpack.c.h.b16 %v569
  %v591 = vunpack.c.l.b16 %v570
  %v592 = vunpack.c.h.b16 %v570
  %v593 = vunpack.c.l.b16 %v571
  %v594 = vunpack.c.h.b16 %v571
  %v595 = vunpack.c.l.b16 %v572
  %v596 = vunpack.c.h.b16 %v572
  %v597 = vpack.c.b16 %v581, %v581
  %v598 = vpack.c.b16 %v582, %v582
  %v599 = vpack.c.b16 %v583, %v583
  %v600 = vpack.c.b16 %v584, %v584
  %v601 = vpack.c.b16 %v585, %v585
  %v602 = vpack.c.b16 %v586, %v586
  %v603 = vpack.c.b16 %v587, %v587
  %v604 = vpack.c.b16 %v588, %v588
  %v605 = vpack.c.b16 %v589, %v589
  %v606 = vpack.c.b16 %v590, %v590
  %v607 = vpack.c.b16 %v591, %v591
  %v608 = vpack.c.b16 %v592, %v592
  %v609 = vpack.c.b16 %v593, %v593
  %v610 = vpack.c.b16 %v594, %v594
  %v611 = vpack.c.b16 %v595, %v595
  %v612 = vpack.c.b16 %v596, %v596
  %629 = vst [vmem:[%s5] sm:$0xf] %v597
  %630 = vst [vmem:[%s5 + $0x4] sm:$0xf] %v598
  %631 = vst [vmem:[%s5 + $0x8] sm:$0xf] %v599
  %632 = vst [vmem:[%s5 + $0xc] sm:$0xf] %v600
  %633 = vst [vmem:[%s5 + $0x10] sm:$0xf] %v601
  %634 = vst [vmem:[%s5 + $0x14] sm:$0xf] %v602
  %635 = vst [vmem:[%s5 + $0x18] sm:$0xf] %v603
  %636 = vst [vmem:[%s5 + $0x1c] sm:$0xf] %v604
  %637 = vst [vmem:[%s5 + $0x20] sm:$0xf] %v605
  %638 = vst [vmem:[%s5 + $0x24] sm:$0xf] %v606
  %639 = vst [vmem:[%s5 + $0x28] sm:$0xf] %v607
  %640 = vst [vmem:[%s5 + $0x2c] sm:$0xf] %v608
  %641 = vst [vmem:[%s5 + $0x30] sm:$0xf] %v609
  %642 = vst [vmem:[%s5 + $0x34] sm:$0xf] %v610
  %643 = vst [vmem:[%s5 + $0x38] sm:$0xf] %v611
  %644 = vst [vmem:[%s5 + $0x3c] sm:$0xf] %v612
  // Predicated region
  $region14: #{_core_impl.2} parent=0 // pred_check
    _
  $region15: #{_core_impl.2} parent=0 // pred_check_branch
    %646 = sbr.rel (0) target = $region17
  $region16: #{_core_impl.2} parent=0 // pred_region
    _
  $region17: #{_core_impl.2} parent=0 // pred_fallthru
    _
  // Predicated region
  $region18: #{_core_impl.2} parent=0 // pred_check
    _
  $region19: #{_core_impl.2} parent=0 // pred_check_branch
    %648 = sbr.rel (0) target = $region21
  $region20: #{_core_impl.2} parent=0 // pred_region
    _
  $region21: #{_core_impl.2} parent=0 // pred_fallthru
    _
  // Predicated region
  $region22: #{_core_impl.2} parent=0 // pred_check
    _
  $region23: #{_core_impl.2} parent=0 // pred_check_branch
    %650 = sbr.rel (0) target = $region25
  $region24: #{_core_impl.2} parent=0 // pred_region
    _
  $region25: #{_core_impl.2} parent=0 // pred_fallthru
    _
  // Predicated region
  $region26: #{_core_impl.2} parent=0 // pred_check
    _
  $region27: #{_core_impl.2} parent=0 // pred_check_branch
    %652 = sbr.rel (0) target = $region29
  $region28: #{_core_impl.2} parent=0 // pred_region
    _
  $region29: #{_core_impl.2} parent=0 // pred_fallthru
    _
  // Predicated region
  $region30: #{_core_impl.2} parent=0 // pred_check
    _
  $region31: #{_core_impl.2} parent=0 // pred_check_branch
    %654 = sbr.rel (0) target = $region33
  $region32: #{_core_impl.2} parent=0 // pred_region
    _
  $region33: #{_core_impl.2} parent=0 // pred_fallthru
    _
  // Predicated region
  $region34: #{_core_impl.2} parent=0 // pred_check
    _
  $region35: #{_core_impl.2} parent=0 // pred_check_branch
    %656 = sbr.rel (0) target = $region37
  $region36: #{_core_impl.2} parent=0 // pred_region
    _
  $region37: #{_core_impl.2} parent=0 // pred_fallthru
    _

// kernel: _core_impl.3
$region0: #{_core_impl.3}
  #allocation0 [shape = 'u32[]', space=smem, size = 0x4, offset = 0x4, fixed_abs, tag = 'smem constant byte address 0x4 - core index']
  #allocation1 [shape = 'u32[144,128]{1,0:T(1,128)}', space=vmem, size = 0x12000, scoped, tag = 'internal scratch']
  %s0 = inlined_call_operand.vmem [shape: bf16[128,128], index: 0, kind: input, shape index: {}]
  %s1 = inlined_call_operand.vmem [shape: bf16[128,128], index: 1, kind: input, shape index: {}]
  %s2 = inlined_call_operand.vmem [shape: bf16[128,128], index: 2, kind: input, shape index: {}]
  %s3 = inlined_call_operand.vmem [shape: f32[128,128], index: 3, kind: input, shape index: {}]
  %s4 = inlined_call_operand.vmem [shape: bf16[128,128], index: 4, kind: input, shape index: {}]
  %s5 = inlined_call_operand.vmem [shape: bf16[128,128], index: 5, kind: input, shape index: {}]
  %s6 = inlined_call_operand.vmem [shape: f32[1,128], index: 6, kind: input, shape index: {}, may-alias: {6,8,10}]
  %s7 = inlined_call_operand.vmem [shape: bf16[128,128], index: 7, kind: input, shape index: {}]
  %s8 = inlined_call_operand.vmem [shape: f32[1,128], index: 8, kind: input, shape index: {}, may-alias: {6,8,10}]
  %s9 = inlined_call_operand.vmem [shape: bf16[128,128], index: 9, kind: input, shape index: {}]
  %s10 = inlined_call_operand.vmem [shape: f32[1,128], index: 10, kind: input, shape index: {}, may-alias: {6,8,10}]
  %s11 = inlined_call_operand.hbm [shape: f32[128,128], index: 11, kind: output, shape index: {}]
  %s12 = sld [smem:[#allocation0]]
  $region58: #{_core_impl.3} parent=0
    _
  %s14 = ssub.s32 1, %s12
  %s15 = scalar_select 0, %s14, %s12
  $region1: #{_core_impl.3} parent=0
    #allocation2 [shape = 'u8[65536]{0}', space=vmem, size = 0x10000, scoped, tag = 'output window, operand 0, single buffered']
    #allocation3 [shape = 's32[1]{0}', space=sflag, size = 0x4, scoped, tag = 'scoped memory for _core_impl.3']
    %16 = vsyncpa [#allocation3], 0
    // Predicated region
    $region2: #{_core_impl.3} parent=1 // pred_check
      _
    $region3: #{_core_impl.3} parent=1 // pred_check_branch
      %18 = sbr.rel (0) target = $region5
    $region4: #{_core_impl.3} parent=1 // pred_region
      _
    $region5: #{_core_impl.3} parent=1 // pred_fallthru
      _
    // Predicated region
    $region6: #{_core_impl.3} parent=1 // pred_check
      _
    $region7: #{_core_impl.3} parent=1 // pred_check_branch
      %20 = sbr.rel (0) target = $region9
    $region8: #{_core_impl.3} parent=1 // pred_region
      _
    $region9: #{_core_impl.3} parent=1 // pred_fallthru
      _
    // Predicated region
    $region10: #{_core_impl.3} parent=1 // pred_check
      _
    $region11: #{_core_impl.3} parent=1 // pred_check_branch
      %22 = sbr.rel (0) target = $region13
    $region12: #{_core_impl.3} parent=1 // pred_region
      _
    $region13: #{_core_impl.3} parent=1 // pred_fallthru
      _
    // Predicated region
    $region14: #{_core_impl.3} parent=1 // pred_check
      _
    $region15: #{_core_impl.3} parent=1 // pred_check_branch
      %24 = sbr.rel (0) target = $region17
    $region16: #{_core_impl.3} parent=1 // pred_region
      _
    $region17: #{_core_impl.3} parent=1 // pred_fallthru
      _
    // Predicated region
    $region18: #{_core_impl.3} parent=1 // pred_check
      _
    $region19: #{_core_impl.3} parent=1 // pred_check_branch
      %26 = sbr.rel (0) target = $region21
    $region20: #{_core_impl.3} parent=1 // pred_region
      _
    $region21: #{_core_impl.3} parent=1 // pred_fallthru
      _
    // Predicated region
    $region22: #{_core_impl.3} parent=1 // pred_check
      _
    $region23: #{_core_impl.3} parent=1 // pred_check_branch
      %28 = sbr.rel (0) target = $region25
    $region24: #{_core_impl.3} parent=1 // pred_region
      _
    $region25: #{_core_impl.3} parent=1 // pred_fallthru
      _
    // Predicated region
    $region26: #{_core_impl.3} parent=1 // pred_check
      _
    $region27: #{_core_impl.3} parent=1 // pred_check_branch
      %30 = sbr.rel (0) target = $region29
    $region28: #{_core_impl.3} parent=1 // pred_region
      _
    $region29: #{_core_impl.3} parent=1 // pred_fallthru
      _
    // Predicated region
    $region30: #{_core_impl.3} parent=1 // pred_check
      _
    $region31: #{_core_impl.3} parent=1 // pred_check_branch
      %32 = sbr.rel (0) target = $region33
    $region32: #{_core_impl.3} parent=1 // pred_region
      _
    $region33: #{_core_impl.3} parent=1 // pred_fallthru
      _
    // Predicated region
    $region34: #{_core_impl.3} parent=1 // pred_check
      _
    $region35: #{_core_impl.3} parent=1 // pred_check_branch
      %34 = sbr.rel (0) target = $region37
    $region36: #{_core_impl.3} parent=1 // pred_region
      _
    $region37: #{_core_impl.3} parent=1 // pred_fallthru
      _
    // Predicated region
    $region38: #{_core_impl.3} parent=1 // pred_check
      _
    $region39: #{_core_impl.3} parent=1 // pred_check_branch
      %36 = sbr.rel (0) target = $region41
    $region40: #{_core_impl.3} parent=1 // pred_region
      _
    $region41: #{_core_impl.3} parent=1 // pred_fallthru
      _
    // Predicated region
    $region42: #{_core_impl.3} parent=1 // pred_check
      _
    $region43: #{_core_impl.3} parent=1 // pred_check_branch
      %38 = sbr.rel (0) target = $region45
    $region44: #{_core_impl.3} parent=1 // pred_region
      _
    $region45: #{_core_impl.3} parent=1 // pred_fallthru
      _
    %p40 = scmp.eq.s32.totalorder 0, 0
    // Predicated region
    $region46: #{_core_impl.3} parent=1 // pred_check
      %p41 = pneg %p40
    $region47: #{_core_impl.3} parent=1 // pred_check_branch
      %43 = sbr.rel (%p41) target = $region49
    $region48: #{_core_impl.3} parent=1 // pred_region
      %v44 = vld [vmem:[%s3] sm:$0xff]
      %v45 = vld [vmem:[%s3 + $0x8] sm:$0xff]
      %v46 = vld [vmem:[%s3 + $0x10] sm:$0xff]
      %v47 = vld [vmem:[%s3 + $0x18] sm:$0xff]
      %v48 = vld [vmem:[%s3 + $0x20] sm:$0xff]
      %v49 = vld [vmem:[%s3 + $0x28] sm:$0xff]
      %v50 = vld [vmem:[%s3 + $0x30] sm:$0xff]
      %v51 = vld [vmem:[%s3 + $0x38] sm:$0xff]
      %v52 = vld [vmem:[%s3 + $0x40] sm:$0xff]
      %v53 = vld [vmem:[%s3 + $0x48] sm:$0xff]
      %v54 = vld [vmem:[%s3 + $0x50] sm:$0xff]
      %v55 = vld [vmem:[%s3 + $0x58] sm:$0xff]
      %v56 = vld [vmem:[%s3 + $0x60] sm:$0xff]
      %v57 = vld [vmem:[%s3 + $0x68] sm:$0xff]
      %v58 = vld [vmem:[%s3 + $0x70] sm:$0xff]
      %v59 = vld [vmem:[%s3 + $0x78] sm:$0xff]
      %v60 = vld [vmem:[%s10] sm:$0x1]
      %v62 = vlaneseq
      %v63 = vshrl.u32 %v62, 7
      %v64 = vsub.s32 0, %v63
      %v65 = vrot.slane %v60, %v64
      %v67 = vadd.f32 %v44, %v65
      %v68 = vadd.f32 %v45, %v65
      %v69 = vadd.f32 %v46, %v65
      %v70 = vadd.f32 %v47, %v65
      %v71 = vadd.f32 %v48, %v65
      %v72 = vadd.f32 %v49, %v65
      %v73 = vadd.f32 %v50, %v65
      %v74 = vadd.f32 %v51, %v65
      %v75 = vadd.f32 %v52, %v65
      %v76 = vadd.f32 %v53, %v65
      %v77 = vadd.f32 %v54, %v65
      %v78 = vadd.f32 %v55, %v65
      %v79 = vadd.f32 %v56, %v65
      %v80 = vadd.f32 %v57, %v65
      %v81 = vadd.f32 %v58, %v65
      %v82 = vadd.f32 %v59, %v65
      %83 = vst [vmem:[#allocation2] sm:$0xff] %v67
      %84 = vst [vmem:[#allocation2 + $0x8] sm:$0xff] %v68
      %85 = vst [vmem:[#allocation2 + $0x10] sm:$0xff] %v69
      %86 = vst [vmem:[#allocation2 + $0x18] sm:$0xff] %v70
      %87 = vst [vmem:[#allocation2 + $0x20] sm:$0xff] %v71
      %88 = vst [vmem:[#allocation2 + $0x28] sm:$0xff] %v72
      %89 = vst [vmem:[#allocation2 + $0x30] sm:$0xff] %v73
      %90 = vst [vmem:[#allocation2 + $0x38] sm:$0xff] %v74
      %91 = vst [vmem:[#allocation2 + $0x40] sm:$0xff] %v75
      %92 = vst [vmem:[#allocation2 + $0x48] sm:$0xff] %v76
      %93 = vst [vmem:[#allocation2 + $0x50] sm:$0xff] %v77
      %94 = vst [vmem:[#allocation2 + $0x58] sm:$0xff] %v78
      %95 = vst [vmem:[#allocation2 + $0x60] sm:$0xff] %v79
      %96 = vst [vmem:[#allocation2 + $0x68] sm:$0xff] %v80
      %97 = vst [vmem:[#allocation2 + $0x70] sm:$0xff] %v81
      %98 = vst [vmem:[#allocation2 + $0x78] sm:$0xff] %v82
    $region49: #{_core_impl.3} parent=1 // pred_fallthru
      _
    %v99 = vld [vmem:[%s0] sm:$0xf]
    %v100 = vld [vmem:[%s0 + $0x4] sm:$0xf]
    %v101 = vld [vmem:[%s0 + $0x8] sm:$0xf]
    %v102 = vld [vmem:[%s0 + $0xc] sm:$0xf]
    %v103 = vld [vmem:[%s0 + $0x10] sm:$0xf]
    %v104 = vld [vmem:[%s0 + $0x14] sm:$0xf]
    %v105 = vld [vmem:[%s0 + $0x18] sm:$0xf]
    %v106 = vld [vmem:[%s0 + $0x1c] sm:$0xf]
    %v107 = vld [vmem:[%s0 + $0x20] sm:$0xf]
    %v108 = vld [vmem:[%s0 + $0x24] sm:$0xf]
    %v109 = vld [vmem:[%s0 + $0x28] sm:$0xf]
    %v110 = vld [vmem:[%s0 + $0x2c] sm:$0xf]
    %v111 = vld [vmem:[%s0 + $0x30] sm:$0xf]
    %v112 = vld [vmem:[%s0 + $0x34] sm:$0xf]
    %v113 = vld [vmem:[%s0 + $0x38] sm:$0xf]
    %v114 = vld [vmem:[%s0 + $0x3c] sm:$0xf]
    %v115 = vld [vmem:[%s4] sm:$0xf]
    %v116 = vld [vmem:[%s4 + $0x4] sm:$0xf]
    %v117 = vld [vmem:[%s4 + $0x8] sm:$0xf]
    %v118 = vld [vmem:[%s4 + $0xc] sm:$0xf]
    %v119 = vld [vmem:[%s4 + $0x10] sm:$0xf]
    %v120 = vld [vmem:[%s4 + $0x14] sm:$0xf]
    %v121 = vld [vmem:[%s4 + $0x18] sm:$0xf]
    %v122 = vld [vmem:[%s4 + $0x1c] sm:$0xf]
    %v123 = vld [vmem:[%s4 + $0x20] sm:$0xf]
    %v124 = vld [vmem:[%s4 + $0x24] sm:$0xf]
    %v125 = vld [vmem:[%s4 + $0x28] sm:$0xf]
    %v126 = vld [vmem:[%s4 + $0x2c] sm:$0xf]
    %v127 = vld [vmem:[%s4 + $0x30] sm:$0xf]
    %v128 = vld [vmem:[%s4 + $0x34] sm:$0xf]
    %v129 = vld [vmem:[%s4 + $0x38] sm:$0xf]
    %v130 = vld [vmem:[%s4 + $0x3c] sm:$0xf]
    %v131 = vld [vmem:[%s1] sm:$0xf]
    %v132 = vld [vmem:[%s1 + $0x4] sm:$0xf]
    %v133 = vld [vmem:[%s1 + $0x8] sm:$0xf]
    %v134 = vld [vmem:[%s1 + $0xc] sm:$0xf]
    %v135 = vld [vmem:[%s1 + $0x10] sm:$0xf]
    %v136 = vld [vmem:[%s1 + $0x14] sm:$0xf]
    %v137 = vld [vmem:[%s1 + $0x18] sm:$0xf]
    %v138 = vld [vmem:[%s1 + $0x1c] sm:$0xf]
    %v139 = vld [vmem:[%s1 + $0x20] sm:$0xf]
    %v140 = vld [vmem:[%s1 + $0x24] sm:$0xf]
    %v141 = vld [vmem:[%s1 + $0x28] sm:$0xf]
    %v142 = vld [vmem:[%s1 + $0x2c] sm:$0xf]
    %v143 = vld [vmem:[%s1 + $0x30] sm:$0xf]
    %v144 = vld [vmem:[%s1 + $0x34] sm:$0xf]
    %v145 = vld [vmem:[%s1 + $0x38] sm:$0xf]
    %v146 = vld [vmem:[%s1 + $0x3c] sm:$0xf]
    %v147 = vld [vmem:[%s5] sm:$0xf]
    %v148 = vld [vmem:[%s5 + $0x4] sm:$0xf]
    %v149 = vld [vmem:[%s5 + $0x8] sm:$0xf]
    %v150 = vld [vmem:[%s5 + $0xc] sm:$0xf]
    %v151 = vld [vmem:[%s5 + $0x10] sm:$0xf]
    %v152 = vld [vmem:[%s5 + $0x14] sm:$0xf]
    %v153 = vld [vmem:[%s5 + $0x18] sm:$0xf]
    %v154 = vld [vmem:[%s5 + $0x1c] sm:$0xf]
    %v155 = vld [vmem:[%s5 + $0x20] sm:$0xf]
    %v156 = vld [vmem:[%s5 + $0x24] sm:$0xf]
    %v157 = vld [vmem:[%s5 + $0x28] sm:$0xf]
    %v158 = vld [vmem:[%s5 + $0x2c] sm:$0xf]
    %v159 = vld [vmem:[%s5 + $0x30] sm:$0xf]
    %v160 = vld [vmem:[%s5 + $0x34] sm:$0xf]
    %v161 = vld [vmem:[%s5 + $0x38] sm:$0xf]
    %v162 = vld [vmem:[%s5 + $0x3c] sm:$0xf]
    %v179 = vunpack.c.l.b16 %v131
    %v180 = vunpack.c.l.b16 %v132
    %v181 = vunpack.c.l.b16 %v133
    %v182 = vunpack.c.l.b16 %v134
    %v183 = vunpack.c.l.b16 %v135
    %v184 = vunpack.c.l.b16 %v136
    %v185 = vunpack.c.l.b16 %v137
    %v186 = vunpack.c.l.b16 %v138
    %v187 = vunpack.c.l.b16 %v139
    %v188 = vunpack.c.l.b16 %v140
    %v189 = vunpack.c.l.b16 %v141
    %v190 = vunpack.c.l.b16 %v142
    %v191 = vunpack.c.l.b16 %v143
    %v192 = vunpack.c.l.b16 %v144
    %v193 = vunpack.c.l.b16 %v145
    %v194 = vunpack.c.l.b16 %v146
    %v195 = vpack.c.b16 %v180, %v179
    %v196 = vpack.c.b16 %v182, %v181
    %v197 = vpack.c.b16 %v184, %v183
    %v198 = vpack.c.b16 %v186, %v185
    %v199 = vpack.c.b16 %v188, %v187
    %v200 = vpack.c.b16 %v190, %v189
    %v201 = vpack.c.b16 %v192, %v191
    %v202 = vpack.c.b16 %v194, %v193
    %v227 = vunpack.c.l.b16 %v147
    %v228 = vunpack.c.l.b16 %v148
    %v229 = vunpack.c.l.b16 %v149
    %v230 = vunpack.c.l.b16 %v150
    %v231 = vunpack.c.l.b16 %v151
    %v232 = vunpack.c.l.b16 %v152
    %v233 = vunpack.c.l.b16 %v153
    %v234 = vunpack.c.l.b16 %v154
    %v235 = vunpack.c.l.b16 %v155
    %v236 = vunpack.c.l.b16 %v156
    %v237 = vunpack.c.l.b16 %v157
    %v238 = vunpack.c.l.b16 %v158
    %v239 = vunpack.c.l.b16 %v159
    %v240 = vunpack.c.l.b16 %v160
    %v241 = vunpack.c.l.b16 %v161
    %v242 = vunpack.c.l.b16 %v162
    %v243 = vpack.c.b16 %v228, %v227
    %v244 = vpack.c.b16 %v230, %v229
    %v245 = vpack.c.b16 %v232, %v231
    %v246 = vpack.c.b16 %v234, %v233
    %v247 = vpack.c.b16 %v236, %v235
    %v248 = vpack.c.b16 %v238, %v237
    %v249 = vpack.c.b16 %v240, %v239
    %v250 = vpack.c.b16 %v242, %v241
    %259 = vmatprep.subr.bf16.mxu0 0
    %260 = vmatpush1.bf16.msra.mxu0 %v243
    %261 = vmatprep.subr.bf16.mxu0 0
    %262 = vmatpush1.bf16.msra.mxu0 %v244
    %263 = vmatprep.subr.bf16.mxu0 0
    %264 = vmatpush1.bf16.msra.mxu0 %v245
    %265 = vmatprep.subr.bf16.mxu0 0
    %266 = vmatpush1.bf16.msra.mxu0 %v246
    %267 = vmatprep.subr.bf16.mxu0 0
    %268 = vmatpush1.bf16.msra.mxu0 %v247
    %269 = vmatprep.subr.bf16.mxu0 0
    %270 = vmatpush1.bf16.msra.mxu0 %v248
    %271 = vmatprep.subr.bf16.mxu0 0
    %272 = vmatpush1.bf16.msra.mxu0 %v249
    %273 = vmatprep.subr.bf16.mxu0 0
    %274 = vmatpush1.bf16.msra.mxu0 %v250
    %275 = vmatprep.subr.bf16.mxu0 0
    %276 = vmatpush1.bf16.msra.mxu0 0
    %277 = vmatprep.subr.bf16.mxu0 0
    %278 = vmatpush1.bf16.msra.mxu0 0
    %279 = vmatprep.subr.bf16.mxu0 0
    %280 = vmatpush1.bf16.msra.mxu0 0
    %281 = vmatprep.subr.bf16.mxu0 0
    %282 = vmatpush1.bf16.msra.mxu0 0
    %283 = vmatprep.subr.bf16.mxu0 0
    %284 = vmatpush1.bf16.msra.mxu0 0
    %285 = vmatprep.subr.bf16.mxu0 0
    %286 = vmatpush1.bf16.msra.mxu0 0
    %287 = vmatprep.subr.bf16.mxu0 0
    %288 = vmatpush1.bf16.msra.mxu0 0
    %289 = vmatprep.subr.bf16.mxu0 0
    %290 = vmatpush1.bf16.msra.mxu0 0
    %291 = vmatprep.mubr.bf16.mxu0 0
    %292 = vmatmul.mubr.bf16.gmra.mrb[0].mxu0 %v195
    %v293 = vpop.f32.mrb[0].mxu0
    %v294 = vadd.f32 0.0, %v293
    %v295 = vpop.f32.mrb[0].mxu0
    %v296 = vpop.f32.mrb[0].mxu0
    %v297 = vadd.f32 0.0, %v296
    %v298 = vpop.f32.mrb[0].mxu0
    %299 = vmatprep.mubr.bf16.mxu0 0
    %300 = vmatmul.mubr.bf16.gmra.mrb[0].mxu0 %v196
    %v301 = vpop.f32.mrb[0].mxu0
    %v302 = vadd.f32 0.0, %v301
    %v303 = vpop.f32.mrb[0].mxu0
    %v304 = vpop.f32.mrb[0].mxu0
    %v305 = vadd.f32 0.0, %v304
    %v306 = vpop.f32.mrb[0].mxu0
    %307 = vmatprep.mubr.bf16.mxu0 0
    %308 = vmatmul.mubr.bf16.gmra.mrb[0].mxu0 %v197
    %v309 = vpop.f32.mrb[0].mxu0
    %v310 = vadd.f32 0.0, %v309
    %v311 = vpop.f32.mrb[0].mxu0
    %v312 = vpop.f32.mrb[0].mxu0
    %v313 = vadd.f32 0.0, %v312
    %v314 = vpop.f32.mrb[0].mxu0
    %315 = vmatprep.mubr.bf16.mxu0 0
    %316 = vmatmul.mubr.bf16.gmra.mrb[0].mxu0 %v198
    %v317 = vpop.f32.mrb[0].mxu0
    %v318 = vadd.f32 0.0, %v317
    %v319 = vpop.f32.mrb[0].mxu0
    %v320 = vpop.f32.mrb[0].mxu0
    %v321 = vadd.f32 0.0, %v320
    %v322 = vpop.f32.mrb[0].mxu0
    %323 = vmatprep.mubr.bf16.mxu0 0
    %324 = vmatmul.mubr.bf16.gmra.mrb[0].mxu0 %v199
    %v325 = vpop.f32.mrb[0].mxu0
    %v326 = vadd.f32 0.0, %v325
    %v327 = vpop.f32.mrb[0].mxu0
    %v328 = vpop.f32.mrb[0].mxu0
    %v329 = vadd.f32 0.0, %v328
    %v330 = vpop.f32.mrb[0].mxu0
    %331 = vmatprep.mubr.bf16.mxu0 0
    %332 = vmatmul.mubr.bf16.gmra.mrb[0].mxu0 %v200
    %v333 = vpop.f32.mrb[0].mxu0
    %v334 = vadd.f32 0.0, %v333
    %v335 = vpop.f32.mrb[0].mxu0
    %v336 = vpop.f32.mrb[0].mxu0
    %v337 = vadd.f32 0.0, %v336
    %v338 = vpop.f32.mrb[0].mxu0
    %339 = vmatprep.mubr.bf16.mxu0 0
    %340 = vmatmul.mubr.bf16.gmra.mrb[0].mxu0 %v201
    %v341 = vpop.f32.mrb[0].mxu0
    %v342 = vadd.f32 0.0, %v341
    %v343 = vpop.f32.mrb[0].mxu0
    %v344 = vpop.f32.mrb[0].mxu0
    %v345 = vadd.f32 0.0, %v344
    %v346 = vpop.f32.mrb[0].mxu0
    %347 = vmatprep.mubr.bf16.mxu0 0
    %348 = vmatmul.mubr.bf16.gmra.mrb[0].mxu0 %v202
    %v349 = vpop.f32.mrb[0].mxu0
    %v350 = vadd.f32 0.0, %v349
    %v351 = vpop.f32.mrb[0].mxu0
    %v352 = vpop.f32.mrb[0].mxu0
    %v353 = vadd.f32 0.0, %v352
    %v354 = vpop.f32.mrb[0].mxu0
    %355 = vdwg.mxu0
    %v372 = vunpack.c.l.b16 %v99
    %v373 = vunpack.c.l.b16 %v100
    %v374 = vunpack.c.l.b16 %v101
    %v375 = vunpack.c.l.b16 %v102
    %v376 = vunpack.c.l.b16 %v103
    %v377 = vunpack.c.l.b16 %v104
    %v378 = vunpack.c.l.b16 %v105
    %v379 = vunpack.c.l.b16 %v106
    %v380 = vunpack.c.l.b16 %v107
    %v381 = vunpack.c.l.b16 %v108
    %v382 = vunpack.c.l.b16 %v109
    %v383 = vunpack.c.l.b16 %v110
    %v384 = vunpack.c.l.b16 %v111
    %v385 = vunpack.c.l.b16 %v112
    %v386 = vunpack.c.l.b16 %v113
    %v387 = vunpack.c.l.b16 %v114
    %v388 = vpack.c.b16 %v373, %v372
    %v389 = vpack.c.b16 %v375, %v374
    %v390 = vpack.c.b16 %v377, %v376
    %v391 = vpack.c.b16 %v379, %v378
    %v392 = vpack.c.b16 %v381, %v380
    %v393 = vpack.c.b16 %v383, %v382
    %v394 = vpack.c.b16 %v385, %v384
    %v395 = vpack.c.b16 %v387, %v386
    %v420 = vunpack.c.l.b16 %v115
    %v421 = vunpack.c.l.b16 %v116
    %v422 = vunpack.c.l.b16 %v117
    %v423 = vunpack.c.l.b16 %v118
    %v424 = vunpack.c.l.b16 %v119
    %v425 = vunpack.c.l.b16 %v120
    %v426 = vunpack.c.l.b16 %v121
    %v427 = vunpack.c.l.b16 %v122
    %v428 = vunpack.c.l.b16 %v123
    %v429 = vunpack.c.l.b16 %v124
    %v430 = vunpack.c.l.b16 %v125
    %v431 = vunpack.c.l.b16 %v126
    %v432 = vunpack.c.l.b16 %v127
    %v433 = vunpack.c.l.b16 %v128
    %v434 = vunpack.c.l.b16 %v129
    %v435 = vunpack.c.l.b16 %v130
    %v436 = vpack.c.b16 %v421, %v420
    %v437 = vpack.c.b16 %v423, %v422
    %v438 = vpack.c.b16 %v425, %v424
    %v439 = vpack.c.b16 %v427, %v426
    %v440 = vpack.c.b16 %v429, %v428
    %v441 = vpack.c.b16 %v431, %v430
    %v442 = vpack.c.b16 %v433, %v432
    %v443 = vpack.c.b16 %v435, %v434
    %452 = vmatprep.subr.bf16.mxu0 0
    %453 = vmatpush1.bf16.msra.mxu0 %v436
    %454 = vmatprep.subr.bf16.mxu0 0
    %455 = vmatpush1.bf16.msra.mxu0 %v437
    %456 = vmatprep.subr.bf16.mxu0 0
    %457 = vmatpush1.bf16.msra.mxu0 %v438
    %458 = vmatprep.subr.bf16.mxu0 0
    %459 = vmatpush1.bf16.msra.mxu0 %v439
    %460 = vmatprep.subr.bf16.mxu0 0
    %461 = vmatpush1.bf16.msra.mxu0 %v440
    %462 = vmatprep.subr.bf16.mxu0 0
    %463 = vmatpush1.bf16.msra.mxu0 %v441
    %464 = vmatprep.subr.bf16.mxu0 0
    %465 = vmatpush1.bf16.msra.mxu0 %v442
    %466 = vmatprep.subr.bf16.mxu0 0
    %467 = vmatpush1.bf16.msra.mxu0 %v443
    %468 = vmatprep.subr.bf16.mxu0 0
    %469 = vmatpush1.bf16.msra.mxu0 0
    %470 = vmatprep.subr.bf16.mxu0 0
    %471 = vmatpush1.bf16.msra.mxu0 0
    %472 = vmatprep.subr.bf16.mxu0 0
    %473 = vmatpush1.bf16.msra.mxu0 0
    %474 = vmatprep.subr.bf16.mxu0 0
    %475 = vmatpush1.bf16.msra.mxu0 0
    %476 = vmatprep.subr.bf16.mxu0 0
    %477 = vmatpush1.bf16.msra.mxu0 0
    %478 = vmatprep.subr.bf16.mxu0 0
    %479 = vmatpush1.bf16.msra.mxu0 0
    %480 = vmatprep.subr.bf16.mxu0 0
    %481 = vmatpush1.bf16.msra.mxu0 0
    %482 = vmatprep.subr.bf16.mxu0 0
    %483 = vmatpush1.bf16.msra.mxu0 0
    %484 = vmatprep.mubr.bf16.mxu0 0
    %485 = vmatmul.mubr.bf16.gmra.mrb[0].mxu0 %v388
    %v486 = vpop.f32.mrb[0].mxu0
    %v487 = vadd.f32 %v294, %v486
    %v488 = vpop.f32.mrb[0].mxu0
    %v489 = vpop.f32.mrb[0].mxu0
    %v490 = vadd.f32 %v297, %v489
    %v491 = vpop.f32.mrb[0].mxu0
    %492 = vmatprep.mubr.bf16.mxu0 0
    %493 = vmatmul.mubr.bf16.gmra.mrb[0].mxu0 %v389
    %v494 = vpop.f32.mrb[0].mxu0
    %v495 = vadd.f32 %v302, %v494
    %v496 = vpop.f32.mrb[0].mxu0
    %v497 = vpop.f32.mrb[0].mxu0
    %v498 = vadd.f32 %v305, %v497
    %v499 = vpop.f32.mrb[0].mxu0
    %500 = vmatprep.mubr.bf16.mxu0 0
    %501 = vmatmul.mubr.bf16.gmra.mrb[0].mxu0 %v390
    %v502 = vpop.f32.mrb[0].mxu0
    %v503 = vadd.f32 %v310, %v502
    %v504 = vpop.f32.mrb[0].mxu0
    %v505 = vpop.f32.mrb[0].mxu0
    %v506 = vadd.f32 %v313, %v505
    %v507 = vpop.f32.mrb[0].mxu0
    %508 = vmatprep.mubr.bf16.mxu0 0
    %509 = vmatmul.mubr.bf16.gmra.mrb[0].mxu0 %v391
    %v510 = vpop.f32.mrb[0].mxu0
    %v511 = vadd.f32 %v318, %v510
    %v512 = vpop.f32.mrb[0].mxu0
    %v513 = vpop.f32.mrb[0].mxu0
    %v514 = vadd.f32 %v321, %v513
    %v515 = vpop.f32.mrb[0].mxu0
    %516 = vmatprep.mubr.bf16.mxu0 0
    %517 = vmatmul.mubr.bf16.gmra.mrb[0].mxu0 %v392
    %v518 = vpop.f32.mrb[0].mxu0
    %v519 = vadd.f32 %v326, %v518
    %v520 = vpop.f32.mrb[0].mxu0
    %v521 = vpop.f32.mrb[0].mxu0
    %v522 = vadd.f32 %v329, %v521
    %v523 = vpop.f32.mrb[0].mxu0
    %524 = vmatprep.mubr.bf16.mxu0 0
    %525 = vmatmul.mubr.bf16.gmra.mrb[0].mxu0 %v393
    %v526 = vpop.f32.mrb[0].mxu0
    %v527 = vadd.f32 %v334, %v526
    %v528 = vpop.f32.mrb[0].mxu0
    %v529 = vpop.f32.mrb[0].mxu0
    %v530 = vadd.f32 %v337, %v529
    %v531 = vpop.f32.mrb[0].mxu0
    %532 = vmatprep.mubr.bf16.mxu0 0
    %533 = vmatmul.mubr.bf16.gmra.mrb[0].mxu0 %v394
    %v534 = vpop.f32.mrb[0].mxu0
    %v535 = vadd.f32 %v342, %v534
    %v536 = vpop.f32.mrb[0].mxu0
    %v537 = vpop.f32.mrb[0].mxu0
    %v538 = vadd.f32 %v345, %v537
    %v539 = vpop.f32.mrb[0].mxu0
    %540 = vmatprep.mubr.bf16.mxu0 0
    %541 = vmatmul.mubr.bf16.gmra.mrb[0].mxu0 %v395
    %v542 = vpop.f32.mrb[0].mxu0
    %v543 = vadd.f32 %v350, %v542
    %v544 = vpop.f32.mrb[0].mxu0
    %v545 = vpop.f32.mrb[0].mxu0
    %v546 = vadd.f32 %v353, %v545
    %v547 = vpop.f32.mrb[0].mxu0
    %548 = vdwg.mxu0
    %v549 = vld [vmem:[%s6] sm:$0x1]
    %v551 = vlaneseq
    %v552 = vshrl.u32 %v551, 7
    %v553 = vsub.s32 0, %v552
    %v554 = vrot.slane %v549, %v553
    %v556 = vadd.f32 %v487, %v554
    %v557 = vadd.f32 %v490, %v554
    %v558 = vadd.f32 %v495, %v554
    %v559 = vadd.f32 %v498, %v554
    %v560 = vadd.f32 %v503, %v554
    %v561 = vadd.f32 %v506, %v554
    %v562 = vadd.f32 %v511, %v554
    %v563 = vadd.f32 %v514, %v554
    %v564 = vadd.f32 %v519, %v554
    %v565 = vadd.f32 %v522, %v554
    %v566 = vadd.f32 %v527, %v554
    %v567 = vadd.f32 %v530, %v554
    %v568 = vadd.f32 %v535, %v554
    %v569 = vadd.f32 %v538, %v554
    %v570 = vadd.f32 %v543, %v554
    %v571 = vadd.f32 %v546, %v554
    %v572 = vld [vmem:[%s2] sm:$0xf]
    %v573 = vld [vmem:[%s2 + $0x4] sm:$0xf]
    %v574 = vld [vmem:[%s2 + $0x8] sm:$0xf]
    %v575 = vld [vmem:[%s2 + $0xc] sm:$0xf]
    %v576 = vld [vmem:[%s2 + $0x10] sm:$0xf]
    %v577 = vld [vmem:[%s2 + $0x14] sm:$0xf]
    %v578 = vld [vmem:[%s2 + $0x18] sm:$0xf]
    %v579 = vld [vmem:[%s2 + $0x1c] sm:$0xf]
    %v580 = vld [vmem:[%s2 + $0x20] sm:$0xf]
    %v581 = vld [vmem:[%s2 + $0x24] sm:$0xf]
    %v582 = vld [vmem:[%s2 + $0x28] sm:$0xf]
    %v583 = vld [vmem:[%s2 + $0x2c] sm:$0xf]
    %v584 = vld [vmem:[%s2 + $0x30] sm:$0xf]
    %v585 = vld [vmem:[%s2 + $0x34] sm:$0xf]
    %v586 = vld [vmem:[%s2 + $0x38] sm:$0xf]
    %v587 = vld [vmem:[%s2 + $0x3c] sm:$0xf]
    %v588 = vld [vmem:[%s7] sm:$0xf]
    %v589 = vld [vmem:[%s7 + $0x4] sm:$0xf]
    %v590 = vld [vmem:[%s7 + $0x8] sm:$0xf]
    %v591 = vld [vmem:[%s7 + $0xc] sm:$0xf]
    %v592 = vld [vmem:[%s7 + $0x10] sm:$0xf]
    %v593 = vld [vmem:[%s7 + $0x14] sm:$0xf]
    %v594 = vld [vmem:[%s7 + $0x18] sm:$0xf]
    %v595 = vld [vmem:[%s7 + $0x1c] sm:$0xf]
    %v596 = vld [vmem:[%s7 + $0x20] sm:$0xf]
    %v597 = vld [vmem:[%s7 + $0x24] sm:$0xf]
    %v598 = vld [vmem:[%s7 + $0x28] sm:$0xf]
    %v599 = vld [vmem:[%s7 + $0x2c] sm:$0xf]
    %v600 = vld [vmem:[%s7 + $0x30] sm:$0xf]
    %v601 = vld [vmem:[%s7 + $0x34] sm:$0xf]
    %v602 = vld [vmem:[%s7 + $0x38] sm:$0xf]
    %v603 = vld [vmem:[%s7 + $0x3c] sm:$0xf]
    %v604 = vld [vmem:[%s8] sm:$0x1]
    %v606 = vlaneseq
    %v607 = vshrl.u32 %v606, 7
    %v608 = vsub.s32 0, %v607
    %v609 = vrot.slane %v604, %v608
    %v627 = vunpack.c.l.b16 %v572
    %v628 = vunpack.c.l.b16 %v573
    %v629 = vunpack.c.l.b16 %v574
    %v630 = vunpack.c.l.b16 %v575
    %v631 = vunpack.c.l.b16 %v576
    %v632 = vunpack.c.l.b16 %v577
    %v633 = vunpack.c.l.b16 %v578
    %v634 = vunpack.c.l.b16 %v579
    %v635 = vunpack.c.l.b16 %v580
    %v636 = vunpack.c.l.b16 %v581
    %v637 = vunpack.c.l.b16 %v582
    %v638 = vunpack.c.l.b16 %v583
    %v639 = vunpack.c.l.b16 %v584
    %v640 = vunpack.c.l.b16 %v585
    %v641 = vunpack.c.l.b16 %v586
    %v642 = vunpack.c.l.b16 %v587
    %v643 = vpack.c.b16 %v628, %v627
    %v644 = vpack.c.b16 %v630, %v629
    %v645 = vpack.c.b16 %v632, %v631
    %v646 = vpack.c.b16 %v634, %v633
    %v647 = vpack.c.b16 %v636, %v635
    %v648 = vpack.c.b16 %v638, %v637
    %v649 = vpack.c.b16 %v640, %v639
    %v650 = vpack.c.b16 %v642, %v641
    %v675 = vunpack.c.l.b16 %v588
    %v676 = vunpack.c.l.b16 %v589
    %v677 = vunpack.c.l.b16 %v590
    %v678 = vunpack.c.l.b16 %v591
    %v679 = vunpack.c.l.b16 %v592
    %v680 = vunpack.c.l.b16 %v593
    %v681 = vunpack.c.l.b16 %v594
    %v682 = vunpack.c.l.b16 %v595
    %v683 = vunpack.c.l.b16 %v596
    %v684 = vunpack.c.l.b16 %v597
    %v685 = vunpack.c.l.b16 %v598
    %v686 = vunpack.c.l.b16 %v599
    %v687 = vunpack.c.l.b16 %v600
    %v688 = vunpack.c.l.b16 %v601
    %v689 = vunpack.c.l.b16 %v602
    %v690 = vunpack.c.l.b16 %v603
    %v691 = vpack.c.b16 %v676, %v675
    %v692 = vpack.c.b16 %v678, %v677
    %v693 = vpack.c.b16 %v680, %v679
    %v694 = vpack.c.b16 %v682, %v681
    %v695 = vpack.c.b16 %v684, %v683
    %v696 = vpack.c.b16 %v686, %v685
    %v697 = vpack.c.b16 %v688, %v687
    %v698 = vpack.c.b16 %v690, %v689
    %707 = vmatprep.subr.bf16.mxu0 0
    %708 = vmatpush1.bf16.msra.mxu0 %v691
    %709 = vmatprep.subr.bf16.mxu0 0
    %710 = vmatpush1.bf16.msra.mxu0 %v692
    %711 = vmatprep.subr.bf16.mxu0 0
    %712 = vmatpush1.bf16.msra.mxu0 %v693
    %713 = vmatprep.subr.bf16.mxu0 0
    %714 = vmatpush1.bf16.msra.mxu0 %v694
    %715 = vmatprep.subr.bf16.mxu0 0
    %716 = vmatpush1.bf16.msra.mxu0 %v695
    %717 = vmatprep.subr.bf16.mxu0 0
    %718 = vmatpush1.bf16.msra.mxu0 %v696
    %719 = vmatprep.subr.bf16.mxu0 0
    %720 = vmatpush1.bf16.msra.mxu0 %v697
    %721 = vmatprep.subr.bf16.mxu0 0
    %722 = vmatpush1.bf16.msra.mxu0 %v698
    %723 = vmatprep.subr.bf16.mxu0 0
    %724 = vmatpush1.bf16.msra.mxu0 0
    %725 = vmatprep.subr.bf16.mxu0 0
    %726 = vmatpush1.bf16.msra.mxu0 0
    %727 = vmatprep.subr.bf16.mxu0 0
    %728 = vmatpush1.bf16.msra.mxu0 0
    %729 = vmatprep.subr.bf16.mxu0 0
    %730 = vmatpush1.bf16.msra.mxu0 0
    %731 = vmatprep.subr.bf16.mxu0 0
    %732 = vmatpush1.bf16.msra.mxu0 0
    %733 = vmatprep.subr.bf16.mxu0 0
    %734 = vmatpush1.bf16.msra.mxu0 0
    %735 = vmatprep.subr.bf16.mxu0 0
    %736 = vmatpush1.bf16.msra.mxu0 0
    %737 = vmatprep.subr.bf16.mxu0 0
    %738 = vmatpush1.bf16.msra.mxu0 0
    %739 = vmatprep.mubr.bf16.mxu0 0
    %740 = vmatmul.mubr.bf16.gmra.mrb[0].mxu0 %v643
    %v741 = vpop.f32.mrb[0].mxu0
    %v742 = vadd.f32 %v609, %v741
    %v743 = vpop.f32.mrb[0].mxu0
    %v744 = vpop.f32.mrb[0].mxu0
    %v745 = vadd.f32 %v609, %v744
    %v746 = vpop.f32.mrb[0].mxu0
    %747 = vmatprep.mubr.bf16.mxu0 0
    %748 = vmatmul.mubr.bf16.gmra.mrb[0].mxu0 %v644
    %v749 = vpop.f32.mrb[0].mxu0
    %v750 = vadd.f32 %v609, %v749
    %v751 = vpop.f32.mrb[0].mxu0
    %v752 = vpop.f32.mrb[0].mxu0
    %v753 = vadd.f32 %v609, %v752
    %v754 = vpop.f32.mrb[0].mxu0
    %755 = vmatprep.mubr.bf16.mxu0 0
    %756 = vmatmul.mubr.bf16.gmra.mrb[0].mxu0 %v645
    %v757 = vpop.f32.mrb[0].mxu0
    %v758 = vadd.f32 %v609, %v757
    %v759 = vpop.f32.mrb[0].mxu0
    %v760 = vpop.f32.mrb[0].mxu0
    %v761 = vadd.f32 %v609, %v760
    %v762 = vpop.f32.mrb[0].mxu0
    %763 = vmatprep.mubr.bf16.mxu0 0
    %764 = vmatmul.mubr.bf16.gmra.mrb[0].mxu0 %v646
    %v765 = vpop.f32.mrb[0].mxu0
    %v766 = vadd.f32 %v609, %v765
    %v767 = vpop.f32.mrb[0].mxu0
    %v768 = vpop.f32.mrb[0].mxu0
    %v769 = vadd.f32 %v609, %v768
    %v770 = vpop.f32.mrb[0].mxu0
    %771 = vmatprep.mubr.bf16.mxu0 0
    %772 = vmatmul.mubr.bf16.gmra.mrb[0].mxu0 %v647
    %v773 = vpop.f32.mrb[0].mxu0
    %v774 = vadd.f32 %v609, %v773
    %v775 = vpop.f32.mrb[0].mxu0
    %v776 = vpop.f32.mrb[0].mxu0
    %v777 = vadd.f32 %v609, %v776
    %v778 = vpop.f32.mrb[0].mxu0
    %779 = vmatprep.mubr.bf16.mxu0 0
    %780 = vmatmul.mubr.bf16.gmra.mrb[0].mxu0 %v648
    %v781 = vpop.f32.mrb[0].mxu0
    %v782 = vadd.f32 %v609, %v781
    %v783 = vpop.f32.mrb[0].mxu0
    %v784 = vpop.f32.mrb[0].mxu0
    %v785 = vadd.f32 %v609, %v784
    %v786 = vpop.f32.mrb[0].mxu0
    %787 = vmatprep.mubr.bf16.mxu0 0
    %788 = vmatmul.mubr.bf16.gmra.mrb[0].mxu0 %v649
    %v789 = vpop.f32.mrb[0].mxu0
    %v790 = vadd.f32 %v609, %v789
    %v791 = vpop.f32.mrb[0].mxu0
    %v792 = vpop.f32.mrb[0].mxu0
    %v793 = vadd.f32 %v609, %v792
    %v794 = vpop.f32.mrb[0].mxu0
    %795 = vmatprep.mubr.bf16.mxu0 0
    %796 = vmatmul.mubr.bf16.gmra.mrb[0].mxu0 %v650
    %v797 = vpop.f32.mrb[0].mxu0
    %v798 = vadd.f32 %v609, %v797
    %v799 = vpop.f32.mrb[0].mxu0
    %v800 = vpop.f32.mrb[0].mxu0
    %v801 = vadd.f32 %v609, %v800
    %v802 = vpop.f32.mrb[0].mxu0
    %803 = vdwg.mxu0
    %v804 = vmul.f32 %v556, %v742
    %v805 = vmul.f32 %v557, %v745
    %v806 = vmul.f32 %v558, %v750
    %v807 = vmul.f32 %v559, %v753
    %v808 = vmul.f32 %v560, %v758
    %v809 = vmul.f32 %v561, %v761
    %v810 = vmul.f32 %v562, %v766
    %v811 = vmul.f32 %v563, %v769
    %v812 = vmul.f32 %v564, %v774
    %v813 = vmul.f32 %v565, %v777
    %v814 = vmul.f32 %v566, %v782
    %v815 = vmul.f32 %v567, %v785
    %v816 = vmul.f32 %v568, %v790
    %v817 = vmul.f32 %v569, %v793
    %v818 = vmul.f32 %v570, %v798
    %v819 = vmul.f32 %v571, %v801
    %v820 = vpack.c.bf16 %v805, %v804
    %v821 = vpack.c.bf16 %v807, %v806
    %v822 = vpack.c.bf16 %v809, %v808
    %v823 = vpack.c.bf16 %v811, %v810
    %v824 = vpack.c.bf16 %v813, %v812
    %v825 = vpack.c.bf16 %v815, %v814
    %v826 = vpack.c.bf16 %v817, %v816
    %v827 = vpack.c.bf16 %v819, %v818
    %v828 = vld [vmem:[#allocation2] sm:$0xff]
    %v829 = vld [vmem:[#allocation2 + $0x8] sm:$0xff]
    %v830 = vld [vmem:[#allocation2 + $0x10] sm:$0xff]
    %v831 = vld [vmem:[#allocation2 + $0x18] sm:$0xff]
    %v832 = vld [vmem:[#allocation2 + $0x20] sm:$0xff]
    %v833 = vld [vmem:[#allocation2 + $0x28] sm:$0xff]
    %v834 = vld [vmem:[#allocation2 + $0x30] sm:$0xff]
    %v835 = vld [vmem:[#allocation2 + $0x38] sm:$0xff]
    %v836 = vld [vmem:[#allocation2 + $0x40] sm:$0xff]
    %v837 = vld [vmem:[#allocation2 + $0x48] sm:$0xff]
    %v838 = vld [vmem:[#allocation2 + $0x50] sm:$0xff]
    %v839 = vld [vmem:[#allocation2 + $0x58] sm:$0xff]
    %v840 = vld [vmem:[#allocation2 + $0x60] sm:$0xff]
    %v841 = vld [vmem:[#allocation2 + $0x68] sm:$0xff]
    %v842 = vld [vmem:[#allocation2 + $0x70] sm:$0xff]
    %v843 = vld [vmem:[#allocation2 + $0x78] sm:$0xff]
    %v844 = vld [vmem:[%s9] sm:$0xf]
    %v845 = vld [vmem:[%s9 + $0x4] sm:$0xf]
    %v846 = vld [vmem:[%s9 + $0x8] sm:$0xf]
    %v847 = vld [vmem:[%s9 + $0xc] sm:$0xf]
    %v848 = vld [vmem:[%s9 + $0x10] sm:$0xf]
    %v849 = vld [vmem:[%s9 + $0x14] sm:$0xf]
    %v850 = vld [vmem:[%s9 + $0x18] sm:$0xf]
    %v851 = vld [vmem:[%s9 + $0x1c] sm:$0xf]
    %v852 = vld [vmem:[%s9 + $0x20] sm:$0xf]
    %v853 = vld [vmem:[%s9 + $0x24] sm:$0xf]
    %v854 = vld [vmem:[%s9 + $0x28] sm:$0xf]
    %v855 = vld [vmem:[%s9 + $0x2c] sm:$0xf]
    %v856 = vld [vmem:[%s9 + $0x30] sm:$0xf]
    %v857 = vld [vmem:[%s9 + $0x34] sm:$0xf]
    %v858 = vld [vmem:[%s9 + $0x38] sm:$0xf]
    %v859 = vld [vmem:[%s9 + $0x3c] sm:$0xf]
    %v876 = vunpack.c.l.b16 %v844
    %v877 = vunpack.c.l.b16 %v845
    %v878 = vunpack.c.l.b16 %v846
    %v879 = vunpack.c.l.b16 %v847
    %v880 = vunpack.c.l.b16 %v848
    %v881 = vunpack.c.l.b16 %v849
    %v882 = vunpack.c.l.b16 %v850
    %v883 = vunpack.c.l.b16 %v851
    %v884 = vunpack.c.l.b16 %v852
    %v885 = vunpack.c.l.b16 %v853
    %v886 = vunpack.c.l.b16 %v854
    %v887 = vunpack.c.l.b16 %v855
    %v888 = vunpack.c.l.b16 %v856
    %v889 = vunpack.c.l.b16 %v857
    %v890 = vunpack.c.l.b16 %v858
    %v891 = vunpack.c.l.b16 %v859
    %v892 = vpack.c.b16 %v877, %v876
    %v893 = vpack.c.b16 %v879, %v878
    %v894 = vpack.c.b16 %v881, %v880
    %v895 = vpack.c.b16 %v883, %v882
    %v896 = vpack.c.b16 %v885, %v884
    %v897 = vpack.c.b16 %v887, %v886
    %v898 = vpack.c.b16 %v889, %v888
    %v899 = vpack.c.b16 %v891, %v890
    %908 = vmatprep.subr.bf16.mxu0 0
    %909 = vmatpush1.bf16.msra.mxu0 %v892
    %910 = vmatprep.subr.bf16.mxu0 0
    %911 = vmatpush1.bf16.msra.mxu0 %v893
    %912 = vmatprep.subr.bf16.mxu0 0
    %913 = vmatpush1.bf16.msra.mxu0 %v894
    %914 = vmatprep.subr.bf16.mxu0 0
    %915 = vmatpush1.bf16.msra.mxu0 %v895
    %916 = vmatprep.subr.bf16.mxu0 0
    %917 = vmatpush1.bf16.msra.mxu0 %v896
    %918 = vmatprep.subr.bf16.mxu0 0
    %919 = vmatpush1.bf16.msra.mxu0 %v897
    %920 = vmatprep.subr.bf16.mxu0 0
    %921 = vmatpush1.bf16.msra.mxu0 %v898
    %922 = vmatprep.subr.bf16.mxu0 0
    %923 = vmatpush1.bf16.msra.mxu0 %v899
    %924 = vmatprep.subr.bf16.mxu0 0
    %925 = vmatpush1.bf16.msra.mxu0 0
    %926 = vmatprep.subr.bf16.mxu0 0
    %927 = vmatpush1.bf16.msra.mxu0 0
    %928 = vmatprep.subr.bf16.mxu0 0
    %929 = vmatpush1.bf16.msra.mxu0 0
    %930 = vmatprep.subr.bf16.mxu0 0
    %931 = vmatpush1.bf16.msra.mxu0 0
    %932 = vmatprep.subr.bf16.mxu0 0
    %933 = vmatpush1.bf16.msra.mxu0 0
    %934 = vmatprep.subr.bf16.mxu0 0
    %935 = vmatpush1.bf16.msra.mxu0 0
    %936 = vmatprep.subr.bf16.mxu0 0
    %937 = vmatpush1.bf16.msra.mxu0 0
    %938 = vmatprep.subr.bf16.mxu0 0
    %939 = vmatpush1.bf16.msra.mxu0 0
    %940 = vmatprep.mubr.bf16.mxu0 0
    %941 = vmatmul.mubr.bf16.gmra.mrb[0].mxu0 %v820
    %v942 = vpop.f32.mrb[0].mxu0
    %v943 = vadd.f32 0.0, %v942
    %v944 = vpop.f32.mrb[0].mxu0
    %v945 = vpop.f32.mrb[0].mxu0
    %v946 = vadd.f32 0.0, %v945
    %v947 = vpop.f32.mrb[0].mxu0
    %948 = vmatprep.mubr.bf16.mxu0 0
    %949 = vmatmul.mubr.bf16.gmra.mrb[0].mxu0 %v821
    %v950 = vpop.f32.mrb[0].mxu0
    %v951 = vadd.f32 0.0, %v950
    %v952 = vpop.f32.mrb[0].mxu0
    %v953 = vpop.f32.mrb[0].mxu0
    %v954 = vadd.f32 0.0, %v953
    %v955 = vpop.f32.mrb[0].mxu0
    %956 = vmatprep.mubr.bf16.mxu0 0
    %957 = vmatmul.mubr.bf16.gmra.mrb[0].mxu0 %v822
    %v958 = vpop.f32.mrb[0].mxu0
    %v959 = vadd.f32 0.0, %v958
    %v960 = vpop.f32.mrb[0].mxu0
    %v961 = vpop.f32.mrb[0].mxu0
    %v962 = vadd.f32 0.0, %v961
    %v963 = vpop.f32.mrb[0].mxu0
    %964 = vmatprep.mubr.bf16.mxu0 0
    %965 = vmatmul.mubr.bf16.gmra.mrb[0].mxu0 %v823
    %v966 = vpop.f32.mrb[0].mxu0
    %v967 = vadd.f32 0.0, %v966
    %v968 = vpop.f32.mrb[0].mxu0
    %v969 = vpop.f32.mrb[0].mxu0
    %v970 = vadd.f32 0.0, %v969
    %v971 = vpop.f32.mrb[0].mxu0
    %972 = vmatprep.mubr.bf16.mxu0 0
    %973 = vmatmul.mubr.bf16.gmra.mrb[0].mxu0 %v824
    %v974 = vpop.f32.mrb[0].mxu0
    %v975 = vadd.f32 0.0, %v974
    %v976 = vpop.f32.mrb[0].mxu0
    %v977 = vpop.f32.mrb[0].mxu0
    %v978 = vadd.f32 0.0, %v977
    %v979 = vpop.f32.mrb[0].mxu0
    %980 = vmatprep.mubr.bf16.mxu0 0
    %981 = vmatmul.mubr.bf16.gmra.mrb[0].mxu0 %v825
    %v982 = vpop.f32.mrb[0].mxu0
    %v983 = vadd.f32 0.0, %v982
    %v984 = vpop.f32.mrb[0].mxu0
    %v985 = vpop.f32.mrb[0].mxu0
    %v986 = vadd.f32 0.0, %v985
    %v987 = vpop.f32.mrb[0].mxu0
    %988 = vmatprep.mubr.bf16.mxu0 0
    %989 = vmatmul.mubr.bf16.gmra.mrb[0].mxu0 %v826
    %v990 = vpop.f32.mrb[0].mxu0
    %v991 = vadd.f32 0.0, %v990
    %v992 = vpop.f32.mrb[0].mxu0
    %v993 = vpop.f32.mrb[0].mxu0
    %v994 = vadd.f32 0.0, %v993
    %v995 = vpop.f32.mrb[0].mxu0
    %996 = vmatprep.mubr.bf16.mxu0 0
    %997 = vmatmul.mubr.bf16.gmra.mrb[0].mxu0 %v827
    %v998 = vpop.f32.mrb[0].mxu0
    %v999 = vadd.f32 0.0, %v998
    %v1000 = vpop.f32.mrb[0].mxu0
    %v1001 = vpop.f32.mrb[0].mxu0
    %v1002 = vadd.f32 0.0, %v1001
    %v1003 = vpop.f32.mrb[0].mxu0
    %1004 = vdwg.mxu0
    %v1005 = vadd.f32 %v828, %v943
    %v1006 = vadd.f32 %v829, %v946
    %v1007 = vadd.f32 %v830, %v951
    %v1008 = vadd.f32 %v831, %v954
    %v1009 = vadd.f32 %v832, %v959
    %v1010 = vadd.f32 %v833, %v962
    %v1011 = vadd.f32 %v834, %v967
    %v1012 = vadd.f32 %v835, %v970
    %v1013 = vadd.f32 %v836, %v975
    %v1014 = vadd.f32 %v837, %v978
    %v1015 = vadd.f32 %v838, %v983
    %v1016 = vadd.f32 %v839, %v986
    %v1017 = vadd.f32 %v840, %v991
    %v1018 = vadd.f32 %v841, %v994
    %v1019 = vadd.f32 %v842, %v999
    %v1020 = vadd.f32 %v843, %v1002
    %1021 = vst [vmem:[#allocation2] sm:$0xff] %v1005
    %1022 = vst [vmem:[#allocation2 + $0x8] sm:$0xff] %v1006
    %1023 = vst [vmem:[#allocation2 + $0x10] sm:$0xff] %v1007
    %1024 = vst [vmem:[#allocation2 + $0x18] sm:$0xff] %v1008
    %1025 = vst [vmem:[#allocation2 + $0x20] sm:$0xff] %v1009
    %1026 = vst [vmem:[#allocation2 + $0x28] sm:$0xff] %v1010
    %1027 = vst [vmem:[#allocation2 + $0x30] sm:$0xff] %v1011
    %1028 = vst [vmem:[#allocation2 + $0x38] sm:$0xff] %v1012
    %1029 = vst [vmem:[#allocation2 + $0x40] sm:$0xff] %v1013
    %1030 = vst [vmem:[#allocation2 + $0x48] sm:$0xff] %v1014
    %1031 = vst [vmem:[#allocation2 + $0x50] sm:$0xff] %v1015
    %1032 = vst [vmem:[#allocation2 + $0x58] sm:$0xff] %v1016
    %1033 = vst [vmem:[#allocation2 + $0x60] sm:$0xff] %v1017
    %1034 = vst [vmem:[#allocation2 + $0x68] sm:$0xff] %v1018
    %1035 = vst [vmem:[#allocation2 + $0x70] sm:$0xff] %v1019
    %1036 = vst [vmem:[#allocation2 + $0x78] sm:$0xff] %v1020
    // Predicated region
    $region50: #{_core_impl.3} parent=1 // pred_check
      _
    $region51: #{_core_impl.3} parent=1 // pred_check_branch
      %1038 = sbr.rel (0) target = $region53
    $region52: #{_core_impl.3} parent=1 // pred_region
      %s1040 = ssub.s32 2048, 2048
      %1041 = vsyncadd [#allocation3], %s1040
      %s1042 = sshll.u32 [#allocation2], 4
      %s1043 = int_to_ptr.vmem [resolvable:$true] %s1042
      %1048 = dma.vmem_to_hbm [thread:$0]  %s1043, 2048, %s11, [#allocation3], 128, 128, 8
    $region53: #{_core_impl.3} parent=1 // pred_fallthru
      _
    // Predicated region
    $region54: #{_core_impl.3} parent=1 // pred_check
      _
    $region55: #{_core_impl.3} parent=1 // pred_check_branch
      %1050 = sbr.rel (0) target = $region57
    $region56: #{_core_impl.3} parent=1 // pred_region
      %1051 = dma.done [#allocation3], 2048
    $region57: #{_core_impl.3} parent=1 // pred_fallthru
      _
    %1052 = vsyncpa [#allocation3], 1

// kernel: _core_impl.2
$region0: #{_core_impl.2}
  #allocation0 [shape = 'u32[]', space=smem, size = 0x4, offset = 0x4, fixed_abs, tag = 'smem constant byte address 0x4 - core index']
  #allocation1 [shape = 'u32[144,128]{1,0:T(1,128)}', space=vmem, size = 0x12000, scoped, tag = 'internal scratch']
  %s0 = inlined_call_operand.vmem [shape: bf16[128,128], index: 0, kind: input, shape index: {}]
  %s1 = inlined_call_operand.vmem [shape: bf16[128,384], index: 1, kind: input, shape index: {}]
  %s2 = inlined_call_operand.vmem [shape: f32[1,384], index: 2, kind: input, shape index: {}]
  %s3 = inlined_call_operand.vmem [shape: f32[128,128], index: 3, kind: output, shape index: {0}]
  %s4 = inlined_call_operand.vmem [shape: bf16[128,128], index: 4, kind: output, shape index: {1}]
  %s5 = inlined_call_operand.vmem [shape: bf16[128,128], index: 5, kind: output, shape index: {2}]
  %6 = xla_tuple %s3, %s4, %s5
  %s7 = sld [smem:[#allocation0]]
  $region38: #{_core_impl.2} parent=0
    _
  %s9 = ssub.s32 1, %s7
  %s10 = scalar_select 0, %s9, %s7
  // Predicated region
  $region2: #{_core_impl.2} parent=0 // pred_check
    _
  $region3: #{_core_impl.2} parent=0 // pred_check_branch
    %12 = sbr.rel (0) target = $region5
  $region4: #{_core_impl.2} parent=0 // pred_region
    _
  $region5: #{_core_impl.2} parent=0 // pred_fallthru
    _
  // Predicated region
  $region6: #{_core_impl.2} parent=0 // pred_check
    _
  $region7: #{_core_impl.2} parent=0 // pred_check_branch
    %14 = sbr.rel (0) target = $region9
  $region8: #{_core_impl.2} parent=0 // pred_region
    _
  $region9: #{_core_impl.2} parent=0 // pred_fallthru
    _
  // Predicated region
  $region10: #{_core_impl.2} parent=0 // pred_check
    _
  $region11: #{_core_impl.2} parent=0 // pred_check_branch
    %16 = sbr.rel (0) target = $region13
  $region12: #{_core_impl.2} parent=0 // pred_region
    _
  $region13: #{_core_impl.2} parent=0 // pred_fallthru
    _
  %v18 = vld [vmem:[%s0] sm:$0xf]
  %v19 = vld [vmem:[%s0 + $0x4] sm:$0xf]
  %v20 = vld [vmem:[%s0 + $0x8] sm:$0xf]
  %v21 = vld [vmem:[%s0 + $0xc] sm:$0xf]
  %v22 = vld [vmem:[%s0 + $0x10] sm:$0xf]
  %v23 = vld [vmem:[%s0 + $0x14] sm:$0xf]
  %v24 = vld [vmem:[%s0 + $0x18] sm:$0xf]
  %v25 = vld [vmem:[%s0 + $0x1c] sm:$0xf]
  %v26 = vld [vmem:[%s0 + $0x20] sm:$0xf]
  %v27 = vld [vmem:[%s0 + $0x24] sm:$0xf]
  %v28 = vld [vmem:[%s0 + $0x28] sm:$0xf]
  %v29 = vld [vmem:[%s0 + $0x2c] sm:$0xf]
  %v30 = vld [vmem:[%s0 + $0x30] sm:$0xf]
  %v31 = vld [vmem:[%s0 + $0x34] sm:$0xf]
  %v32 = vld [vmem:[%s0 + $0x38] sm:$0xf]
  %v33 = vld [vmem:[%s0 + $0x3c] sm:$0xf]
  %v34 = vld [vmem:[%s1] sm:$0xff]
  %v35 = vld [vmem:[%s1 + $0x8] sm:$0xf]
  %v36 = vld [vmem:[%s1 + $0xc] sm:$0xff]
  %v37 = vld [vmem:[%s1 + $0x14] sm:$0xf]
  %v38 = vld [vmem:[%s1 + $0x18] sm:$0xff]
  %v39 = vld [vmem:[%s1 + $0x20] sm:$0xf]
  %v40 = vld [vmem:[%s1 + $0x24] sm:$0xff]
  %v41 = vld [vmem:[%s1 + $0x2c] sm:$0xf]
  %v42 = vld [vmem:[%s1 + $0x30] sm:$0xff]
  %v43 = vld [vmem:[%s1 + $0x38] sm:$0xf]
  %v44 = vld [vmem:[%s1 + $0x3c] sm:$0xff]
  %v45 = vld [vmem:[%s1 + $0x44] sm:$0xf]
  %v46 = vld [vmem:[%s1 + $0x48] sm:$0xff]
  %v47 = vld [vmem:[%s1 + $0x50] sm:$0xf]
  %v48 = vld [vmem:[%s1 + $0x54] sm:$0xff]
  %v49 = vld [vmem:[%s1 + $0x5c] sm:$0xf]
  %v50 = vld [vmem:[%s1 + $0x60] sm:$0xff]
  %v51 = vld [vmem:[%s1 + $0x68] sm:$0xf]
  %v52 = vld [vmem:[%s1 + $0x6c] sm:$0xff]
  %v53 = vld [vmem:[%s1 + $0x74] sm:$0xf]
  %v54 = vld [vmem:[%s1 + $0x78] sm:$0xff]
  %v55 = vld [vmem:[%s1 + $0x80] sm:$0xf]
  %v56 = vld [vmem:[%s1 + $0x84] sm:$0xff]
  %v57 = vld [vmem:[%s1 + $0x8c] sm:$0xf]
  %v58 = vld [vmem:[%s1 + $0x90] sm:$0xff]
  %v59 = vld [vmem:[%s1 + $0x98] sm:$0xf]
  %v60 = vld [vmem:[%s1 + $0x9c] sm:$0xff]
  %v61 = vld [vmem:[%s1 + $0xa4] sm:$0xf]
  %v62 = vld [vmem:[%s1 + $0xa8] sm:$0xff]
  %v63 = vld [vmem:[%s1 + $0xb0] sm:$0xf]
  %v64 = vld [vmem:[%s1 + $0xb4] sm:$0xff]
  %v65 = vld [vmem:[%s1 + $0xbc] sm:$0xf]
  %v66 = vld [vmem:[%s2] sm:$0x7]
  %v68 = vlaneseq
  %v69 = vshrl.u32 %v68, 7
  %v70 = vsub.s32 0, %v69
  %v71 = vrot.slane %v66, %v70
  %v72 = vlaneseq
  %v73 = vshrl.u32 %v72, 7
  %v74 = vsub.s32 1, %v73
  %v75 = vrot.slane %v66, %v74
  %v76 = vlaneseq
  %v77 = vshrl.u32 %v76, 7
  %v78 = vsub.s32 2, %v77
  %v79 = vrot.slane %v66, %v78
  %v99 = vunpack.c.l.b16 %v18
  %v100 = vunpack.c.l.b16 %v19
  %v101 = vunpack.c.l.b16 %v20
  %v102 = vunpack.c.l.b16 %v21
  %v103 = vunpack.c.l.b16 %v22
  %v104 = vunpack.c.l.b16 %v23
  %v105 = vunpack.c.l.b16 %v24
  %v106 = vunpack.c.l.b16 %v25
  %v107 = vunpack.c.l.b16 %v26
  %v108 = vunpack.c.l.b16 %v27
  %v109 = vunpack.c.l.b16 %v28
  %v110 = vunpack.c.l.b16 %v29
  %v111 = vunpack.c.l.b16 %v30
  %v112 = vunpack.c.l.b16 %v31
  %v113 = vunpack.c.l.b16 %v32
  %v114 = vunpack.c.l.b16 %v33
  %v115 = vpack.c.b16 %v100, %v99
  %v116 = vpack.c.b16 %v102, %v101
  %v117 = vpack.c.b16 %v104, %v103
  %v118 = vpack.c.b16 %v106, %v105
  %v119 = vpack.c.b16 %v108, %v107
  %v120 = vpack.c.b16 %v110, %v109
  %v121 = vpack.c.b16 %v112, %v111
  %v122 = vpack.c.b16 %v114, %v113
  %v163 = vunpack.c.l.b16 %v34
  %v164 = vunpack.c.h.b16 %v34
  %v165 = vunpack.c.l.b16 %v35
  %v166 = vunpack.c.l.b16 %v36
  %v167 = vunpack.c.h.b16 %v36
  %v168 = vunpack.c.l.b16 %v37
  %v169 = vunpack.c.l.b16 %v38
  %v170 = vunpack.c.h.b16 %v38
  %v171 = vunpack.c.l.b16 %v39
  %v172 = vunpack.c.l.b16 %v40
  %v173 = vunpack.c.h.b16 %v40
  %v174 = vunpack.c.l.b16 %v41
  %v175 = vunpack.c.l.b16 %v42
  %v176 = vunpack.c.h.b16 %v42
  %v177 = vunpack.c.l.b16 %v43
  %v178 = vunpack.c.l.b16 %v44
  %v179 = vunpack.c.h.b16 %v44
  %v180 = vunpack.c.l.b16 %v45
  %v181 = vunpack.c.l.b16 %v46
  %v182 = vunpack.c.h.b16 %v46
  %v183 = vunpack.c.l.b16 %v47
  %v184 = vunpack.c.l.b16 %v48
  %v185 = vunpack.c.h.b16 %v48
  %v186 = vunpack.c.l.b16 %v49
  %v187 = vunpack.c.l.b16 %v50
  %v188 = vunpack.c.h.b16 %v50
  %v189 = vunpack.c.l.b16 %v51
  %v190 = vunpack.c.l.b16 %v52
  %v191 = vunpack.c.h.b16 %v52
  %v192 = vunpack.c.l.b16 %v53
  %v193 = vunpack.c.l.b16 %v54
  %v194 = vunpack.c.h.b16 %v54
  %v195 = vunpack.c.l.b16 %v55
  %v196 = vunpack.c.l.b16 %v56
  %v197 = vunpack.c.h.b16 %v56
  %v198 = vunpack.c.l.b16 %v57
  %v199 = vunpack.c.l.b16 %v58
  %v200 = vunpack.c.h.b16 %v58
  %v201 = vunpack.c.l.b16 %v59
  %v202 = vunpack.c.l.b16 %v60
  %v203 = vunpack.c.h.b16 %v60
  %v204 = vunpack.c.l.b16 %v61
  %v205 = vunpack.c.l.b16 %v62
  %v206 = vunpack.c.h.b16 %v62
  %v207 = vunpack.c.l.b16 %v63
  %v208 = vunpack.c.l.b16 %v64
  %v209 = vunpack.c.h.b16 %v64
  %v210 = vunpack.c.l.b16 %v65
  %v211 = vpack.c.b16 %v166, %v163
  %v212 = vpack.c.b16 %v167, %v164
  %v213 = vpack.c.b16 %v168, %v165
  %v214 = vpack.c.b16 %v172, %v169
  %v215 = vpack.c.b16 %v173, %v170
  %v216 = vpack.c.b16 %v174, %v171
  %v217 = vpack.c.b16 %v178, %v175
  %v218 = vpack.c.b16 %v179, %v176
  %v219 = vpack.c.b16 %v180, %v177
  %v220 = vpack.c.b16 %v184, %v181
  %v221 = vpack.c.b16 %v185, %v182
  %v222 = vpack.c.b16 %v186, %v183
  %v223 = vpack.c.b16 %v190, %v187
  %v224 = vpack.c.b16 %v191, %v188
  %v225 = vpack.c.b16 %v192, %v189
  %v226 = vpack.c.b16 %v196, %v193
  %v227 = vpack.c.b16 %v197, %v194
  %v228 = vpack.c.b16 %v198, %v195
  %v229 = vpack.c.b16 %v202, %v199
  %v230 = vpack.c.b16 %v203, %v200
  %v231 = vpack.c.b16 %v204, %v201
  %v232 = vpack.c.b16 %v208, %v205
  %v233 = vpack.c.b16 %v209, %v206
  %v234 = vpack.c.b16 %v210, %v207
  %259 = vmatprep.subr.bf16.mxu0 %v212
  %260 = vmatpush1.bf16.msra.mxu0 %v211
  %261 = vmatprep.subr.bf16.mxu0 %v215
  %262 = vmatpush1.bf16.msra.mxu0 %v214
  %263 = vmatprep.subr.bf16.mxu0 %v218
  %264 = vmatpush1.bf16.msra.mxu0 %v217
  %265 = vmatprep.subr.bf16.mxu0 %v221
  %266 = vmatpush1.bf16.msra.mxu0 %v220
  %267 = vmatprep.subr.bf16.mxu0 %v224
  %268 = vmatpush1.bf16.msra.mxu0 %v223
  %269 = vmatprep.subr.bf16.mxu0 %v227
  %270 = vmatpush1.bf16.msra.mxu0 %v226
  %271 = vmatprep.subr.bf16.mxu0 %v230
  %272 = vmatpush1.bf16.msra.mxu0 %v229
  %273 = vmatprep.subr.bf16.mxu0 %v233
  %274 = vmatpush1.bf16.msra.mxu0 %v232
  %275 = vmatprep.subr.bf16.mxu0 0
  %276 = vmatpush1.bf16.msra.mxu0 0
  %277 = vmatprep.subr.bf16.mxu0 0
  %278 = vmatpush1.bf16.msra.mxu0 0
  %279 = vmatprep.subr.bf16.mxu0 0
  %280 = vmatpush1.bf16.msra.mxu0 0
  %281 = vmatprep.subr.bf16.mxu0 0
  %282 = vmatpush1.bf16.msra.mxu0 0
  %283 = vmatprep.subr.bf16.mxu0 0
  %284 = vmatpush1.bf16.msra.mxu0 0
  %285 = vmatprep.subr.bf16.mxu0 0
  %286 = vmatpush1.bf16.msra.mxu0 0
  %287 = vmatprep.subr.bf16.mxu0 0
  %288 = vmatpush1.bf16.msra.mxu0 0
  %289 = vmatprep.subr.bf16.mxu0 0
  %290 = vmatpush1.bf16.msra.mxu0 0
  %291 = vmatprep.mubr.bf16.mxu0 0
  %292 = vmatmul.mubr.bf16.gmra.mrb[0].mxu0 %v115
  %v293 = vpop.f32.mrb[0].mxu0
  %v294 = vadd.f32 %v71, %v293
  %v295 = vpop.f32.mrb[0].mxu0
  %v296 = vadd.f32 %v75, %v295
  %v297 = vpop.f32.mrb[0].mxu0
  %v298 = vadd.f32 %v71, %v297
  %v299 = vpop.f32.mrb[0].mxu0
  %v300 = vadd.f32 %v75, %v299
  %301 = vmatprep.mubr.bf16.mxu0 0
  %302 = vmatmul.mubr.bf16.gmra.mrb[0].mxu0 %v116
  %v303 = vpop.f32.mrb[0].mxu0
  %v304 = vadd.f32 %v71, %v303
  %v305 = vpop.f32.mrb[0].mxu0
  %v306 = vadd.f32 %v75, %v305
  %v307 = vpop.f32.mrb[0].mxu0
  %v308 = vadd.f32 %v71, %v307
  %v309 = vpop.f32.mrb[0].mxu0
  %v310 = vadd.f32 %v75, %v309
  %311 = vmatprep.mubr.bf16.mxu0 0
  %312 = vmatmul.mubr.bf16.gmra.mrb[0].mxu0 %v117
  %v313 = vpop.f32.mrb[0].mxu0
  %v314 = vadd.f32 %v71, %v313
  %v315 = vpop.f32.mrb[0].mxu0
  %v316 = vadd.f32 %v75, %v315
  %v317 = vpop.f32.mrb[0].mxu0
  %v318 = vadd.f32 %v71, %v317
  %v319 = vpop.f32.mrb[0].mxu0
  %v320 = vadd.f32 %v75, %v319
  %321 = vmatprep.mubr.bf16.mxu0 0
  %322 = vmatmul.mubr.bf16.gmra.mrb[0].mxu0 %v118
  %v323 = vpop.f32.mrb[0].mxu0
  %v324 = vadd.f32 %v71, %v323
  %v325 = vpop.f32.mrb[0].mxu0
  %v326 = vadd.f32 %v75, %v325
  %v327 = vpop.f32.mrb[0].mxu0
  %v328 = vadd.f32 %v71, %v327
  %v329 = vpop.f32.mrb[0].mxu0
  %v330 = vadd.f32 %v75, %v329
  %331 = vmatprep.mubr.bf16.mxu0 0
  %332 = vmatmul.mubr.bf16.gmra.mrb[0].mxu0 %v119
  %v333 = vpop.f32.mrb[0].mxu0
  %v334 = vadd.f32 %v71, %v333
  %v335 = vpop.f32.mrb[0].mxu0
  %v336 = vadd.f32 %v75, %v335
  %v337 = vpop.f32.mrb[0].mxu0
  %v338 = vadd.f32 %v71, %v337
  %v339 = vpop.f32.mrb[0].mxu0
  %v340 = vadd.f32 %v75, %v339
  %341 = vmatprep.mubr.bf16.mxu0 0
  %342 = vmatmul.mubr.bf16.gmra.mrb[0].mxu0 %v120
  %v343 = vpop.f32.mrb[0].mxu0
  %v344 = vadd.f32 %v71, %v343
  %v345 = vpop.f32.mrb[0].mxu0
  %v346 = vadd.f32 %v75, %v345
  %v347 = vpop.f32.mrb[0].mxu0
  %v348 = vadd.f32 %v71, %v347
  %v349 = vpop.f32.mrb[0].mxu0
  %v350 = vadd.f32 %v75, %v349
  %351 = vmatprep.mubr.bf16.mxu0 0
  %352 = vmatmul.mubr.bf16.gmra.mrb[0].mxu0 %v121
  %v353 = vpop.f32.mrb[0].mxu0
  %v354 = vadd.f32 %v71, %v353
  %v355 = vpop.f32.mrb[0].mxu0
  %v356 = vadd.f32 %v75, %v355
  %v357 = vpop.f32.mrb[0].mxu0
  %v358 = vadd.f32 %v71, %v357
  %v359 = vpop.f32.mrb[0].mxu0
  %v360 = vadd.f32 %v75, %v359
  %361 = vmatprep.mubr.bf16.mxu0 0
  %362 = vmatmul.mubr.bf16.gmra.mrb[0].mxu0 %v122
  %v363 = vpop.f32.mrb[0].mxu0
  %v364 = vadd.f32 %v71, %v363
  %v365 = vpop.f32.mrb[0].mxu0
  %v366 = vadd.f32 %v75, %v365
  %v367 = vpop.f32.mrb[0].mxu0
  %v368 = vadd.f32 %v71, %v367
  %v369 = vpop.f32.mrb[0].mxu0
  %v370 = vadd.f32 %v75, %v369
  %371 = vdwg.mxu0
  %372 = vmatprep.subr.bf16.mxu0 0
  %373 = vmatpush1.bf16.msra.mxu0 %v213
  %374 = vmatprep.subr.bf16.mxu0 0
  %375 = vmatpush1.bf16.msra.mxu0 %v216
  %376 = vmatprep.subr.bf16.mxu0 0
  %377 = vmatpush1.bf16.msra.mxu0 %v219
  %378 = vmatprep.subr.bf16.mxu0 0
  %379 = vmatpush1.bf16.msra.mxu0 %v222
  %380 = vmatprep.subr.bf16.mxu0 0
  %381 = vmatpush1.bf16.msra.mxu0 %v225
  %382 = vmatprep.subr.bf16.mxu0 0
  %383 = vmatpush1.bf16.msra.mxu0 %v228
  %384 = vmatprep.subr.bf16.mxu0 0
  %385 = vmatpush1.bf16.msra.mxu0 %v231
  %386 = vmatprep.subr.bf16.mxu0 0
  %387 = vmatpush1.bf16.msra.mxu0 %v234
  %388 = vmatprep.subr.bf16.mxu0 0
  %389 = vmatpush1.bf16.msra.mxu0 0
  %390 = vmatprep.subr.bf16.mxu0 0
  %391 = vmatpush1.bf16.msra.mxu0 0
  %392 = vmatprep.subr.bf16.mxu0 0
  %393 = vmatpush1.bf16.msra.mxu0 0
  %394 = vmatprep.subr.bf16.mxu0 0
  %395 = vmatpush1.bf16.msra.mxu0 0
  %396 = vmatprep.subr.bf16.mxu0 0
  %397 = vmatpush1.bf16.msra.mxu0 0
  %398 = vmatprep.subr.bf16.mxu0 0
  %399 = vmatpush1.bf16.msra.mxu0 0
  %400 = vmatprep.subr.bf16.mxu0 0
  %401 = vmatpush1.bf16.msra.mxu0 0
  %402 = vmatprep.subr.bf16.mxu0 0
  %403 = vmatpush1.bf16.msra.mxu0 0
  %404 = vmatprep.mubr.bf16.mxu0 0
  %405 = vmatmul.mubr.bf16.gmra.mrb[0].mxu0 %v115
  %v406 = vpop.f32.mrb[0].mxu0
  %v407 = vadd.f32 %v79, %v406
  %v408 = vpop.f32.mrb[0].mxu0
  %v409 = vpop.f32.mrb[0].mxu0
  %v410 = vadd.f32 %v79, %v409
  %v411 = vpop.f32.mrb[0].mxu0
  %412 = vmatprep.mubr.bf16.mxu0 0
  %413 = vmatmul.mubr.bf16.gmra.mrb[0].mxu0 %v116
  %v414 = vpop.f32.mrb[0].mxu0
  %v415 = vadd.f32 %v79, %v414
  %v416 = vpop.f32.mrb[0].mxu0
  %v417 = vpop.f32.mrb[0].mxu0
  %v418 = vadd.f32 %v79, %v417
  %v419 = vpop.f32.mrb[0].mxu0
  %420 = vmatprep.mubr.bf16.mxu0 0
  %421 = vmatmul.mubr.bf16.gmra.mrb[0].mxu0 %v117
  %v422 = vpop.f32.mrb[0].mxu0
  %v423 = vadd.f32 %v79, %v422
  %v424 = vpop.f32.mrb[0].mxu0
  %v425 = vpop.f32.mrb[0].mxu0
  %v426 = vadd.f32 %v79, %v425
  %v427 = vpop.f32.mrb[0].mxu0
  %428 = vmatprep.mubr.bf16.mxu0 0
  %429 = vmatmul.mubr.bf16.gmra.mrb[0].mxu0 %v118
  %v430 = vpop.f32.mrb[0].mxu0
  %v431 = vadd.f32 %v79, %v430
  %v432 = vpop.f32.mrb[0].mxu0
  %v433 = vpop.f32.mrb[0].mxu0
  %v434 = vadd.f32 %v79, %v433
  %v435 = vpop.f32.mrb[0].mxu0
  %436 = vmatprep.mubr.bf16.mxu0 0
  %437 = vmatmul.mubr.bf16.gmra.mrb[0].mxu0 %v119
  %v438 = vpop.f32.mrb[0].mxu0
  %v439 = vadd.f32 %v79, %v438
  %v440 = vpop.f32.mrb[0].mxu0
  %v441 = vpop.f32.mrb[0].mxu0
  %v442 = vadd.f32 %v79, %v441
  %v443 = vpop.f32.mrb[0].mxu0
  %444 = vmatprep.mubr.bf16.mxu0 0
  %445 = vmatmul.mubr.bf16.gmra.mrb[0].mxu0 %v120
  %v446 = vpop.f32.mrb[0].mxu0
  %v447 = vadd.f32 %v79, %v446
  %v448 = vpop.f32.mrb[0].mxu0
  %v449 = vpop.f32.mrb[0].mxu0
  %v450 = vadd.f32 %v79, %v449
  %v451 = vpop.f32.mrb[0].mxu0
  %452 = vmatprep.mubr.bf16.mxu0 0
  %453 = vmatmul.mubr.bf16.gmra.mrb[0].mxu0 %v121
  %v454 = vpop.f32.mrb[0].mxu0
  %v455 = vadd.f32 %v79, %v454
  %v456 = vpop.f32.mrb[0].mxu0
  %v457 = vpop.f32.mrb[0].mxu0
  %v458 = vadd.f32 %v79, %v457
  %v459 = vpop.f32.mrb[0].mxu0
  %460 = vmatprep.mubr.bf16.mxu0 0
  %461 = vmatmul.mubr.bf16.gmra.mrb[0].mxu0 %v122
  %v462 = vpop.f32.mrb[0].mxu0
  %v463 = vadd.f32 %v79, %v462
  %v464 = vpop.f32.mrb[0].mxu0
  %v465 = vpop.f32.mrb[0].mxu0
  %v466 = vadd.f32 %v79, %v465
  %v467 = vpop.f32.mrb[0].mxu0
  %468 = vdwg.mxu0
  %469 = vst [vmem:[%s3] sm:$0xff] %v294
  %470 = vst [vmem:[%s3 + $0x8] sm:$0xff] %v298
  %471 = vst [vmem:[%s3 + $0x10] sm:$0xff] %v304
  %472 = vst [vmem:[%s3 + $0x18] sm:$0xff] %v308
  %473 = vst [vmem:[%s3 + $0x20] sm:$0xff] %v314
  %474 = vst [vmem:[%s3 + $0x28] sm:$0xff] %v318
  %475 = vst [vmem:[%s3 + $0x30] sm:$0xff] %v324
  %476 = vst [vmem:[%s3 + $0x38] sm:$0xff] %v328
  %477 = vst [vmem:[%s3 + $0x40] sm:$0xff] %v334
  %478 = vst [vmem:[%s3 + $0x48] sm:$0xff] %v338
  %479 = vst [vmem:[%s3 + $0x50] sm:$0xff] %v344
  %480 = vst [vmem:[%s3 + $0x58] sm:$0xff] %v348
  %481 = vst [vmem:[%s3 + $0x60] sm:$0xff] %v354
  %482 = vst [vmem:[%s3 + $0x68] sm:$0xff] %v358
  %483 = vst [vmem:[%s3 + $0x70] sm:$0xff] %v364
  %484 = vst [vmem:[%s3 + $0x78] sm:$0xff] %v368
  %v485 = vpack.c.bf16 %v300, %v296
  %v486 = vpack.c.bf16 %v310, %v306
  %v487 = vpack.c.bf16 %v320, %v316
  %v488 = vpack.c.bf16 %v330, %v326
  %v489 = vpack.c.bf16 %v340, %v336
  %v490 = vpack.c.bf16 %v350, %v346
  %v491 = vpack.c.bf16 %v360, %v356
  %v492 = vpack.c.bf16 %v370, %v366
  %v501 = vunpack.c.l.b16 %v485
  %v502 = vunpack.c.h.b16 %v485
  %v503 = vunpack.c.l.b16 %v486
  %v504 = vunpack.c.h.b16 %v486
  %v505 = vunpack.c.l.b16 %v487
  %v506 = vunpack.c.h.b16 %v487
  %v507 = vunpack.c.l.b16 %v488
  %v508 = vunpack.c.h.b16 %v488
  %v509 = vunpack.c.l.b16 %v489
  %v510 = vunpack.c.h.b16 %v489
  %v511 = vunpack.c.l.b16 %v490
  %v512 = vunpack.c.h.b16 %v490
  %v513 = vunpack.c.l.b16 %v491
  %v514 = vunpack.c.h.b16 %v491
  %v515 = vunpack.c.l.b16 %v492
  %v516 = vunpack.c.h.b16 %v492
  %v517 = vpack.c.b16 %v501, %v501
  %v518 = vpack.c.b16 %v502, %v502
  %v519 = vpack.c.b16 %v503, %v503
  %v520 = vpack.c.b16 %v504, %v504
  %v521 = vpack.c.b16 %v505, %v505
  %v522 = vpack.c.b16 %v506, %v506
  %v523 = vpack.c.b16 %v507, %v507
  %v524 = vpack.c.b16 %v508, %v508
  %v525 = vpack.c.b16 %v509, %v509
  %v526 = vpack.c.b16 %v510, %v510
  %v527 = vpack.c.b16 %v511, %v511
  %v528 = vpack.c.b16 %v512, %v512
  %v529 = vpack.c.b16 %v513, %v513
  %v530 = vpack.c.b16 %v514, %v514
  %v531 = vpack.c.b16 %v515, %v515
  %v532 = vpack.c.b16 %v516, %v516
  %549 = vst [vmem:[%s4] sm:$0xf] %v517
  %550 = vst [vmem:[%s4 + $0x4] sm:$0xf] %v518
  %551 = vst [vmem:[%s4 + $0x8] sm:$0xf] %v519
  %552 = vst [vmem:[%s4 + $0xc] sm:$0xf] %v520
  %553 = vst [vmem:[%s4 + $0x10] sm:$0xf] %v521
  %554 = vst [vmem:[%s4 + $0x14] sm:$0xf] %v522
  %555 = vst [vmem:[%s4 + $0x18] sm:$0xf] %v523
  %556 = vst [vmem:[%s4 + $0x1c] sm:$0xf] %v524
  %557 = vst [vmem:[%s4 + $0x20] sm:$0xf] %v525
  %558 = vst [vmem:[%s4 + $0x24] sm:$0xf] %v526
  %559 = vst [vmem:[%s4 + $0x28] sm:$0xf] %v527
  %560 = vst [vmem:[%s4 + $0x2c] sm:$0xf] %v528
  %561 = vst [vmem:[%s4 + $0x30] sm:$0xf] %v529
  %562 = vst [vmem:[%s4 + $0x34] sm:$0xf] %v530
  %563 = vst [vmem:[%s4 + $0x38] sm:$0xf] %v531
  %564 = vst [vmem:[%s4 + $0x3c] sm:$0xf] %v532
  %v565 = vpack.c.bf16 %v410, %v407
  %v566 = vpack.c.bf16 %v418, %v415
  %v567 = vpack.c.bf16 %v426, %v423
  %v568 = vpack.c.bf16 %v434, %v431
  %v569 = vpack.c.bf16 %v442, %v439
  %v570 = vpack.c.bf16 %v450, %v447
  %v571 = vpack.c.bf16 %v458, %v455
  %v572 = vpack.c.bf16 %v466, %v463
  %v581 = vunpack.c.l.b16 %v565
  %v582 = vunpack.c.h.b16 %v565
  %v583 = vunpack.c.l.b16 %v566
  %v584 = vunpack.c.h.b16 %v566
  %v585 = vunpack.c.l.b16 %v567
  %v586 = vunpack.c.h.b16 %v567
  %v587 = vunpack.c.l.b16 %v568
  %v588 = vunpack.c.h.b16 %v568
  %v589 = vunpack.c.l.b16 %v569
  %v590 = vunpack.c.h.b16 %v569
  %v591 = vunpack.c.l.b16 %v570
  %v592 = vunpack.c.h.b16 %v570
  %v593 = vunpack.c.l.b16 %v571
  %v594 = vunpack.c.h.b16 %v571
  %v595 = vunpack.c.l.b16 %v572
  %v596 = vunpack.c.h.b16 %v572
  %v597 = vpack.c.b16 %v581, %v581
  %v598 = vpack.c.b16 %v582, %v582
  %v599 = vpack.c.b16 %v583, %v583
  %v600 = vpack.c.b16 %v584, %v584
  %v601 = vpack.c.b16 %v585, %v585
  %v602 = vpack.c.b16 %v586, %v586
  %v603 = vpack.c.b16 %v587, %v587
  %v604 = vpack.c.b16 %v588, %v588
  %v605 = vpack.c.b16 %v589, %v589
  %v606 = vpack.c.b16 %v590, %v590
  %v607 = vpack.c.b16 %v591, %v591
  %v608 = vpack.c.b16 %v592, %v592
  %v609 = vpack.c.b16 %v593, %v593
  %v610 = vpack.c.b16 %v594, %v594
  %v611 = vpack.c.b16 %v595, %v595
  %v612 = vpack.c.b16 %v596, %v596
  %629 = vst [vmem:[%s5] sm:$0xf] %v597
  %630 = vst [vmem:[%s5 + $0x4] sm:$0xf] %v598
  %631 = vst [vmem:[%s5 + $0x8] sm:$0xf] %v599
  %632 = vst [vmem:[%s5 + $0xc] sm:$0xf] %v600
  %633 = vst [vmem:[%s5 + $0x10] sm:$0xf] %v601
  %634 = vst [vmem:[%s5 + $0x14] sm:$0xf] %v602
  %635 = vst [vmem:[%s5 + $0x18] sm:$0xf] %v603
  %636 = vst [vmem:[%s5 + $0x1c] sm:$0xf] %v604
  %637 = vst [vmem:[%s5 + $0x20] sm:$0xf] %v605
  %638 = vst [vmem:[%s5 + $0x24] sm:$0xf] %v606
  %639 = vst [vmem:[%s5 + $0x28] sm:$0xf] %v607
  %640 = vst [vmem:[%s5 + $0x2c] sm:$0xf] %v608
  %641 = vst [vmem:[%s5 + $0x30] sm:$0xf] %v609
  %642 = vst [vmem:[%s5 + $0x34] sm:$0xf] %v610
  %643 = vst [vmem:[%s5 + $0x38] sm:$0xf] %v611
  %644 = vst [vmem:[%s5 + $0x3c] sm:$0xf] %v612
  // Predicated region
  $region14: #{_core_impl.2} parent=0 // pred_check
    _
  $region15: #{_core_impl.2} parent=0 // pred_check_branch
    %646 = sbr.rel (0) target = $region17
  $region16: #{_core_impl.2} parent=0 // pred_region
    _
  $region17: #{_core_impl.2} parent=0 // pred_fallthru
    _
  // Predicated region
  $region18: #{_core_impl.2} parent=0 // pred_check
    _
  $region19: #{_core_impl.2} parent=0 // pred_check_branch
    %648 = sbr.rel (0) target = $region21
  $region20: #{_core_impl.2} parent=0 // pred_region
    _
  $region21: #{_core_impl.2} parent=0 // pred_fallthru
    _
  // Predicated region
  $region22: #{_core_impl.2} parent=0 // pred_check
    _
  $region23: #{_core_impl.2} parent=0 // pred_check_branch
    %650 = sbr.rel (0) target = $region25
  $region24: #{_core_impl.2} parent=0 // pred_region
    _
  $region25: #{_core_impl.2} parent=0 // pred_fallthru
    _
  // Predicated region
  $region26: #{_core_impl.2} parent=0 // pred_check
    _
  $region27: #{_core_impl.2} parent=0 // pred_check_branch
    %652 = sbr.rel (0) target = $region29
  $region28: #{_core_impl.2} parent=0 // pred_region
    _
  $region29: #{_core_impl.2} parent=0 // pred_fallthru
    _
  // Predicated region
  $region30: #{_core_impl.2} parent=0 // pred_check
    _
  $region31: #{_core_impl.2} parent=0 // pred_check_branch
    %654 = sbr.rel (0) target = $region33
  $region32: #{_core_impl.2} parent=0 // pred_region
    _
  $region33: #{_core_impl.2} parent=0 // pred_fallthru
    _
  // Predicated region
  $region34: #{_core_impl.2} parent=0 // pred_check
    _
  $region35: #{_core_impl.2} parent=0 // pred_check_branch
    %656 = sbr.rel (0) target = $region37
  $region36: #{_core_impl.2} parent=0 // pred_region
    _
  $region37: #{_core_impl.2} parent=0 // pred_fallthru
    _

// kernel: _core_impl.3
$region0: #{_core_impl.3}
  #allocation0 [shape = 'u32[]', space=smem, size = 0x4, offset = 0x4, fixed_abs, tag = 'smem constant byte address 0x4 - core index']
  #allocation1 [shape = 'u32[144,128]{1,0:T(1,128)}', space=vmem, size = 0x12000, scoped, tag = 'internal scratch']
  %s0 = inlined_call_operand.vmem [shape: bf16[128,128], index: 0, kind: input, shape index: {}]
  %s1 = inlined_call_operand.vmem [shape: bf16[128,128], index: 1, kind: input, shape index: {}]
  %s2 = inlined_call_operand.vmem [shape: bf16[128,128], index: 2, kind: input, shape index: {}]
  %s3 = inlined_call_operand.vmem [shape: f32[128,128], index: 3, kind: input, shape index: {}]
  %s4 = inlined_call_operand.vmem [shape: bf16[128,128], index: 4, kind: input, shape index: {}]
  %s5 = inlined_call_operand.vmem [shape: bf16[128,128], index: 5, kind: input, shape index: {}]
  %s6 = inlined_call_operand.vmem [shape: f32[1,128], index: 6, kind: input, shape index: {}, may-alias: {6,8,10}]
  %s7 = inlined_call_operand.vmem [shape: bf16[128,128], index: 7, kind: input, shape index: {}]
  %s8 = inlined_call_operand.vmem [shape: f32[1,128], index: 8, kind: input, shape index: {}, may-alias: {6,8,10}]
  %s9 = inlined_call_operand.vmem [shape: bf16[128,128], index: 9, kind: input, shape index: {}]
  %s10 = inlined_call_operand.vmem [shape: f32[1,128], index: 10, kind: input, shape index: {}, may-alias: {6,8,10}]
  %s11 = inlined_call_operand.hbm [shape: f32[128,128], index: 11, kind: output, shape index: {}]
  %s12 = sld [smem:[#allocation0]]
  $region58: #{_core_impl.3} parent=0
    _
  %s14 = ssub.s32 1, %s12
  %s15 = scalar_select 0, %s14, %s12
  $region1: #{_core_impl.3} parent=0
    #allocation2 [shape = 'u8[65536]{0}', space=vmem, size = 0x10000, scoped, tag = 'output window, operand 0, single buffered']
    #allocation3 [shape = 's32[1]{0}', space=sflag, size = 0x4, scoped, tag = 'scoped memory for _core_impl.3']
    %16 = vsyncpa [#allocation3], 0
    // Predicated region
    $region2: #{_core_impl.3} parent=1 // pred_check
      _
    $region3: #{_core_impl.3} parent=1 // pred_check_branch
      %18 = sbr.rel (0) target = $region5
    $region4: #{_core_impl.3} parent=1 // pred_region
      _
    $region5: #{_core_impl.3} parent=1 // pred_fallthru
      _
    // Predicated region
    $region6: #{_core_impl.3} parent=1 // pred_check
      _
    $region7: #{_core_impl.3} parent=1 // pred_check_branch
      %20 = sbr.rel (0) target = $region9
    $region8: #{_core_impl.3} parent=1 // pred_region
      _
    $region9: #{_core_impl.3} parent=1 // pred_fallthru
      _
    // Predicated region
    $region10: #{_core_impl.3} parent=1 // pred_check
      _
    $region11: #{_core_impl.3} parent=1 // pred_check_branch
      %22 = sbr.rel (0) target = $region13
    $region12: #{_core_impl.3} parent=1 // pred_region
      _
    $region13: #{_core_impl.3} parent=1 // pred_fallthru
      _
    // Predicated region
    $region14: #{_core_impl.3} parent=1 // pred_check
      _
    $region15: #{_core_impl.3} parent=1 // pred_check_branch
      %24 = sbr.rel (0) target = $region17
    $region16: #{_core_impl.3} parent=1 // pred_region
      _
    $region17: #{_core_impl.3} parent=1 // pred_fallthru
      _
    // Predicated region
    $region18: #{_core_impl.3} parent=1 // pred_check
      _
    $region19: #{_core_impl.3} parent=1 // pred_check_branch
      %26 = sbr.rel (0) target = $region21
    $region20: #{_core_impl.3} parent=1 // pred_region
      _
    $region21: #{_core_impl.3} parent=1 // pred_fallthru
      _
    // Predicated region
    $region22: #{_core_impl.3} parent=1 // pred_check
      _
    $region23: #{_core_impl.3} parent=1 // pred_check_branch
      %28 = sbr.rel (0) target = $region25
    $region24: #{_core_impl.3} parent=1 // pred_region
      _
    $region25: #{_core_impl.3} parent=1 // pred_fallthru
      _
    // Predicated region
    $region26: #{_core_impl.3} parent=1 // pred_check
      _
    $region27: #{_core_impl.3} parent=1 // pred_check_branch
      %30 = sbr.rel (0) target = $region29
    $region28: #{_core_impl.3} parent=1 // pred_region
      _
    $region29: #{_core_impl.3} parent=1 // pred_fallthru
      _
    // Predicated region
    $region30: #{_core_impl.3} parent=1 // pred_check
      _
    $region31: #{_core_impl.3} parent=1 // pred_check_branch
      %32 = sbr.rel (0) target = $region33
    $region32: #{_core_impl.3} parent=1 // pred_region
      _
    $region33: #{_core_impl.3} parent=1 // pred_fallthru
      _
    // Predicated region
    $region34: #{_core_impl.3} parent=1 // pred_check
      _
    $region35: #{_core_impl.3} parent=1 // pred_check_branch
      %34 = sbr.rel (0) target = $region37
    $region36: #{_core_impl.3} parent=1 // pred_region
      _
    $region37: #{_core_impl.3} parent=1 // pred_fallthru
      _
    // Predicated region
    $region38: #{_core_impl.3} parent=1 // pred_check
      _
    $region39: #{_core_impl.3} parent=1 // pred_check_branch
      %36 = sbr.rel (0) target = $region41
    $region40: #{_core_impl.3} parent=1 // pred_region
      _
    $region41: #{_core_impl.3} parent=1 // pred_fallthru
      _
    // Predicated region
    $region42: #{_core_impl.3} parent=1 // pred_check
      _
    $region43: #{_core_impl.3} parent=1 // pred_check_branch
      %38 = sbr.rel (0) target = $region45
    $region44: #{_core_impl.3} parent=1 // pred_region
      _
    $region45: #{_core_impl.3} parent=1 // pred_fallthru
      _
    %p40 = scmp.eq.s32.totalorder 0, 0
    // Predicated region
    $region46: #{_core_impl.3} parent=1 // pred_check
      %p41 = pneg %p40
    $region47: #{_core_impl.3} parent=1 // pred_check_branch
      %43 = sbr.rel (%p41) target = $region49
    $region48: #{_core_impl.3} parent=1 // pred_region
      %v44 = vld [vmem:[%s3] sm:$0xff]
      %v45 = vld [vmem:[%s3 + $0x8] sm:$0xff]
      %v46 = vld [vmem:[%s3 + $0x10] sm:$0xff]
      %v47 = vld [vmem:[%s3 + $0x18] sm:$0xff]
      %v48 = vld [vmem:[%s3 + $0x20] sm:$0xff]
      %v49 = vld [vmem:[%s3 + $0x28] sm:$0xff]
      %v50 = vld [vmem:[%s3 + $0x30] sm:$0xff]
      %v51 = vld [vmem:[%s3 + $0x38] sm:$0xff]
      %v52 = vld [vmem:[%s3 + $0x40] sm:$0xff]
      %v53 = vld [vmem:[%s3 + $0x48] sm:$0xff]
      %v54 = vld [vmem:[%s3 + $0x50] sm:$0xff]
      %v55 = vld [vmem:[%s3 + $0x58] sm:$0xff]
      %v56 = vld [vmem:[%s3 + $0x60] sm:$0xff]
      %v57 = vld [vmem:[%s3 + $0x68] sm:$0xff]
      %v58 = vld [vmem:[%s3 + $0x70] sm:$0xff]
      %v59 = vld [vmem:[%s3 + $0x78] sm:$0xff]
      %v60 = vld [vmem:[%s10] sm:$0x1]
      %v62 = vlaneseq
      %v63 = vshrl.u32 %v62, 7
      %v64 = vsub.s32 0, %v63
      %v65 = vrot.slane %v60, %v64
      %v67 = vadd.f32 %v44, %v65
      %v68 = vadd.f32 %v45, %v65
      %v69 = vadd.f32 %v46, %v65
      %v70 = vadd.f32 %v47, %v65
      %v71 = vadd.f32 %v48, %v65
      %v72 = vadd.f32 %v49, %v65
      %v73 = vadd.f32 %v50, %v65
      %v74 = vadd.f32 %v51, %v65
      %v75 = vadd.f32 %v52, %v65
      %v76 = vadd.f32 %v53, %v65
      %v77 = vadd.f32 %v54, %v65
      %v78 = vadd.f32 %v55, %v65
      %v79 = vadd.f32 %v56, %v65
      %v80 = vadd.f32 %v57, %v65
      %v81 = vadd.f32 %v58, %v65
      %v82 = vadd.f32 %v59, %v65
      %83 = vst [vmem:[#allocation2] sm:$0xff] %v67
      %84 = vst [vmem:[#allocation2 + $0x8] sm:$0xff] %v68
      %85 = vst [vmem:[#allocation2 + $0x10] sm:$0xff] %v69
      %86 = vst [vmem:[#allocation2 + $0x18] sm:$0xff] %v70
      %87 = vst [vmem:[#allocation2 + $0x20] sm:$0xff] %v71
      %88 = vst [vmem:[#allocation2 + $0x28] sm:$0xff] %v72
      %89 = vst [vmem:[#allocation2 + $0x30] sm:$0xff] %v73
      %90 = vst [vmem:[#allocation2 + $0x38] sm:$0xff] %v74
      %91 = vst [vmem:[#allocation2 + $0x40] sm:$0xff] %v75
      %92 = vst [vmem:[#allocation2 + $0x48] sm:$0xff] %v76
      %93 = vst [vmem:[#allocation2 + $0x50] sm:$0xff] %v77
      %94 = vst [vmem:[#allocation2 + $0x58] sm:$0xff] %v78
      %95 = vst [vmem:[#allocation2 + $0x60] sm:$0xff] %v79
      %96 = vst [vmem:[#allocation2 + $0x68] sm:$0xff] %v80
      %97 = vst [vmem:[#allocation2 + $0x70] sm:$0xff] %v81
      %98 = vst [vmem:[#allocation2 + $0x78] sm:$0xff] %v82
    $region49: #{_core_impl.3} parent=1 // pred_fallthru
      _
    %v99 = vld [vmem:[%s0] sm:$0xf]
    %v100 = vld [vmem:[%s0 + $0x4] sm:$0xf]
    %v101 = vld [vmem:[%s0 + $0x8] sm:$0xf]
    %v102 = vld [vmem:[%s0 + $0xc] sm:$0xf]
    %v103 = vld [vmem:[%s0 + $0x10] sm:$0xf]
    %v104 = vld [vmem:[%s0 + $0x14] sm:$0xf]
    %v105 = vld [vmem:[%s0 + $0x18] sm:$0xf]
    %v106 = vld [vmem:[%s0 + $0x1c] sm:$0xf]
    %v107 = vld [vmem:[%s0 + $0x20] sm:$0xf]
    %v108 = vld [vmem:[%s0 + $0x24] sm:$0xf]
    %v109 = vld [vmem:[%s0 + $0x28] sm:$0xf]
    %v110 = vld [vmem:[%s0 + $0x2c] sm:$0xf]
    %v111 = vld [vmem:[%s0 + $0x30] sm:$0xf]
    %v112 = vld [vmem:[%s0 + $0x34] sm:$0xf]
    %v113 = vld [vmem:[%s0 + $0x38] sm:$0xf]
    %v114 = vld [vmem:[%s0 + $0x3c] sm:$0xf]
    %v115 = vld [vmem:[%s4] sm:$0xf]
    %v116 = vld [vmem:[%s4 + $0x4] sm:$0xf]
    %v117 = vld [vmem:[%s4 + $0x8] sm:$0xf]
    %v118 = vld [vmem:[%s4 + $0xc] sm:$0xf]
    %v119 = vld [vmem:[%s4 + $0x10] sm:$0xf]
    %v120 = vld [vmem:[%s4 + $0x14] sm:$0xf]
    %v121 = vld [vmem:[%s4 + $0x18] sm:$0xf]
    %v122 = vld [vmem:[%s4 + $0x1c] sm:$0xf]
    %v123 = vld [vmem:[%s4 + $0x20] sm:$0xf]
    %v124 = vld [vmem:[%s4 + $0x24] sm:$0xf]
    %v125 = vld [vmem:[%s4 + $0x28] sm:$0xf]
    %v126 = vld [vmem:[%s4 + $0x2c] sm:$0xf]
    %v127 = vld [vmem:[%s4 + $0x30] sm:$0xf]
    %v128 = vld [vmem:[%s4 + $0x34] sm:$0xf]
    %v129 = vld [vmem:[%s4 + $0x38] sm:$0xf]
    %v130 = vld [vmem:[%s4 + $0x3c] sm:$0xf]
    %v131 = vld [vmem:[%s1] sm:$0xf]
    %v132 = vld [vmem:[%s1 + $0x4] sm:$0xf]
    %v133 = vld [vmem:[%s1 + $0x8] sm:$0xf]
    %v134 = vld [vmem:[%s1 + $0xc] sm:$0xf]
    %v135 = vld [vmem:[%s1 + $0x10] sm:$0xf]
    %v136 = vld [vmem:[%s1 + $0x14] sm:$0xf]
    %v137 = vld [vmem:[%s1 + $0x18] sm:$0xf]
    %v138 = vld [vmem:[%s1 + $0x1c] sm:$0xf]
    %v139 = vld [vmem:[%s1 + $0x20] sm:$0xf]
    %v140 = vld [vmem:[%s1 + $0x24] sm:$0xf]
    %v141 = vld [vmem:[%s1 + $0x28] sm:$0xf]
    %v142 = vld [vmem:[%s1 + $0x2c] sm:$0xf]
    %v143 = vld [vmem:[%s1 + $0x30] sm:$0xf]
    %v144 = vld [vmem:[%s1 + $0x34] sm:$0xf]
    %v145 = vld [vmem:[%s1 + $0x38] sm:$0xf]
    %v146 = vld [vmem:[%s1 + $0x3c] sm:$0xf]
    %v147 = vld [vmem:[%s5] sm:$0xf]
    %v148 = vld [vmem:[%s5 + $0x4] sm:$0xf]
    %v149 = vld [vmem:[%s5 + $0x8] sm:$0xf]
    %v150 = vld [vmem:[%s5 + $0xc] sm:$0xf]
    %v151 = vld [vmem:[%s5 + $0x10] sm:$0xf]
    %v152 = vld [vmem:[%s5 + $0x14] sm:$0xf]
    %v153 = vld [vmem:[%s5 + $0x18] sm:$0xf]
    %v154 = vld [vmem:[%s5 + $0x1c] sm:$0xf]
    %v155 = vld [vmem:[%s5 + $0x20] sm:$0xf]
    %v156 = vld [vmem:[%s5 + $0x24] sm:$0xf]
    %v157 = vld [vmem:[%s5 + $0x28] sm:$0xf]
    %v158 = vld [vmem:[%s5 + $0x2c] sm:$0xf]
    %v159 = vld [vmem:[%s5 + $0x30] sm:$0xf]
    %v160 = vld [vmem:[%s5 + $0x34] sm:$0xf]
    %v161 = vld [vmem:[%s5 + $0x38] sm:$0xf]
    %v162 = vld [vmem:[%s5 + $0x3c] sm:$0xf]
    %v179 = vunpack.c.l.b16 %v131
    %v180 = vunpack.c.l.b16 %v132
    %v181 = vunpack.c.l.b16 %v133
    %v182 = vunpack.c.l.b16 %v134
    %v183 = vunpack.c.l.b16 %v135
    %v184 = vunpack.c.l.b16 %v136
    %v185 = vunpack.c.l.b16 %v137
    %v186 = vunpack.c.l.b16 %v138
    %v187 = vunpack.c.l.b16 %v139
    %v188 = vunpack.c.l.b16 %v140
    %v189 = vunpack.c.l.b16 %v141
    %v190 = vunpack.c.l.b16 %v142
    %v191 = vunpack.c.l.b16 %v143
    %v192 = vunpack.c.l.b16 %v144
    %v193 = vunpack.c.l.b16 %v145
    %v194 = vunpack.c.l.b16 %v146
    %v195 = vpack.c.b16 %v180, %v179
    %v196 = vpack.c.b16 %v182, %v181
    %v197 = vpack.c.b16 %v184, %v183
    %v198 = vpack.c.b16 %v186, %v185
    %v199 = vpack.c.b16 %v188, %v187
    %v200 = vpack.c.b16 %v190, %v189
    %v201 = vpack.c.b16 %v192, %v191
    %v202 = vpack.c.b16 %v194, %v193
    %v227 = vunpack.c.l.b16 %v147
    %v228 = vunpack.c.l.b16 %v148
    %v229 = vunpack.c.l.b16 %v149
    %v230 = vunpack.c.l.b16 %v150
    %v231 = vunpack.c.l.b16 %v151
    %v232 = vunpack.c.l.b16 %v152
    %v233 = vunpack.c.l.b16 %v153
    %v234 = vunpack.c.l.b16 %v154
    %v235 = vunpack.c.l.b16 %v155
    %v236 = vunpack.c.l.b16 %v156
    %v237 = vunpack.c.l.b16 %v157
    %v238 = vunpack.c.l.b16 %v158
    %v239 = vunpack.c.l.b16 %v159
    %v240 = vunpack.c.l.b16 %v160
    %v241 = vunpack.c.l.b16 %v161
    %v242 = vunpack.c.l.b16 %v162
    %v243 = vpack.c.b16 %v228, %v227
    %v244 = vpack.c.b16 %v230, %v229
    %v245 = vpack.c.b16 %v232, %v231
    %v246 = vpack.c.b16 %v234, %v233
    %v247 = vpack.c.b16 %v236, %v235
    %v248 = vpack.c.b16 %v238, %v237
    %v249 = vpack.c.b16 %v240, %v239
    %v250 = vpack.c.b16 %v242, %v241
    %259 = vmatprep.subr.bf16.mxu0 0
    %260 = vmatpush1.bf16.msra.mxu0 %v243
    %261 = vmatprep.subr.bf16.mxu0 0
    %262 = vmatpush1.bf16.msra.mxu0 %v244
    %263 = vmatprep.subr.bf16.mxu0 0
    %264 = vmatpush1.bf16.msra.mxu0 %v245
    %265 = vmatprep.subr.bf16.mxu0 0
    %266 = vmatpush1.bf16.msra.mxu0 %v246
    %267 = vmatprep.subr.bf16.mxu0 0
    %268 = vmatpush1.bf16.msra.mxu0 %v247
    %269 = vmatprep.subr.bf16.mxu0 0
    %270 = vmatpush1.bf16.msra.mxu0 %v248
    %271 = vmatprep.subr.bf16.mxu0 0
    %272 = vmatpush1.bf16.msra.mxu0 %v249
    %273 = vmatprep.subr.bf16.mxu0 0
    %274 = vmatpush1.bf16.msra.mxu0 %v250
    %275 = vmatprep.subr.bf16.mxu0 0
    %276 = vmatpush1.bf16.msra.mxu0 0
    %277 = vmatprep.subr.bf16.mxu0 0
    %278 = vmatpush1.bf16.msra.mxu0 0
    %279 = vmatprep.subr.bf16.mxu0 0
    %280 = vmatpush1.bf16.msra.mxu0 0
    %281 = vmatprep.subr.bf16.mxu0 0
    %282 = vmatpush1.bf16.msra.mxu0 0
    %283 = vmatprep.subr.bf16.mxu0 0
    %284 = vmatpush1.bf16.msra.mxu0 0
    %285 = vmatprep.subr.bf16.mxu0 0
    %286 = vmatpush1.bf16.msra.mxu0 0
    %287 = vmatprep.subr.bf16.mxu0 0
    %288 = vmatpush1.bf16.msra.mxu0 0
    %289 = vmatprep.subr.bf16.mxu0 0
    %290 = vmatpush1.bf16.msra.mxu0 0
    %291 = vmatprep.mubr.bf16.mxu0 0
    %292 = vmatmul.mubr.bf16.gmra.mrb[0].mxu0 %v195
    %v293 = vpop.f32.mrb[0].mxu0
    %v294 = vadd.f32 0.0, %v293
    %v295 = vpop.f32.mrb[0].mxu0
    %v296 = vpop.f32.mrb[0].mxu0
    %v297 = vadd.f32 0.0, %v296
    %v298 = vpop.f32.mrb[0].mxu0
    %299 = vmatprep.mubr.bf16.mxu0 0
    %300 = vmatmul.mubr.bf16.gmra.mrb[0].mxu0 %v196
    %v301 = vpop.f32.mrb[0].mxu0
    %v302 = vadd.f32 0.0, %v301
    %v303 = vpop.f32.mrb[0].mxu0
    %v304 = vpop.f32.mrb[0].mxu0
    %v305 = vadd.f32 0.0, %v304
    %v306 = vpop.f32.mrb[0].mxu0
    %307 = vmatprep.mubr.bf16.mxu0 0
    %308 = vmatmul.mubr.bf16.gmra.mrb[0].mxu0 %v197
    %v309 = vpop.f32.mrb[0].mxu0
    %v310 = vadd.f32 0.0, %v309
    %v311 = vpop.f32.mrb[0].mxu0
    %v312 = vpop.f32.mrb[0].mxu0
    %v313 = vadd.f32 0.0, %v312
    %v314 = vpop.f32.mrb[0].mxu0
    %315 = vmatprep.mubr.bf16.mxu0 0
    %316 = vmatmul.mubr.bf16.gmra.mrb[0].mxu0 %v198
    %v317 = vpop.f32.mrb[0].mxu0
    %v318 = vadd.f32 0.0, %v317
    %v319 = vpop.f32.mrb[0].mxu0
    %v320 = vpop.f32.mrb[0].mxu0
    %v321 = vadd.f32 0.0, %v320
    %v322 = vpop.f32.mrb[0].mxu0
    %323 = vmatprep.mubr.bf16.mxu0 0
    %324 = vmatmul.mubr.bf16.gmra.mrb[0].mxu0 %v199
    %v325 = vpop.f32.mrb[0].mxu0
    %v326 = vadd.f32 0.0, %v325
    %v327 = vpop.f32.mrb[0].mxu0
    %v328 = vpop.f32.mrb[0].mxu0
    %v329 = vadd.f32 0.0, %v328
    %v330 = vpop.f32.mrb[0].mxu0
    %331 = vmatprep.mubr.bf16.mxu0 0
    %332 = vmatmul.mubr.bf16.gmra.mrb[0].mxu0 %v200
    %v333 = vpop.f32.mrb[0].mxu0
    %v334 = vadd.f32 0.0, %v333
    %v335 = vpop.f32.mrb[0].mxu0
    %v336 = vpop.f32.mrb[0].mxu0
    %v337 = vadd.f32 0.0, %v336
    %v338 = vpop.f32.mrb[0].mxu0
    %339 = vmatprep.mubr.bf16.mxu0 0
    %340 = vmatmul.mubr.bf16.gmra.mrb[0].mxu0 %v201
    %v341 = vpop.f32.mrb[0].mxu0
    %v342 = vadd.f32 0.0, %v341
    %v343 = vpop.f32.mrb[0].mxu0
    %v344 = vpop.f32.mrb[0].mxu0
    %v345 = vadd.f32 0.0, %v344
    %v346 = vpop.f32.mrb[0].mxu0
    %347 = vmatprep.mubr.bf16.mxu0 0
    %348 = vmatmul.mubr.bf16.gmra.mrb[0].mxu0 %v202
    %v349 = vpop.f32.mrb[0].mxu0
    %v350 = vadd.f32 0.0, %v349
    %v351 = vpop.f32.mrb[0].mxu0
    %v352 = vpop.f32.mrb[0].mxu0
    %v353 = vadd.f32 0.0, %v352
    %v354 = vpop.f32.mrb[0].mxu0
    %355 = vdwg.mxu0
    %v372 = vunpack.c.l.b16 %v99
    %v373 = vunpack.c.l.b16 %v100
    %v374 = vunpack.c.l.b16 %v101
    %v375 = vunpack.c.l.b16 %v102
    %v376 = vunpack.c.l.b16 %v103
    %v377 = vunpack.c.l.b16 %v104
    %v378 = vunpack.c.l.b16 %v105
    %v379 = vunpack.c.l.b16 %v106
    %v380 = vunpack.c.l.b16 %v107
    %v381 = vunpack.c.l.b16 %v108
    %v382 = vunpack.c.l.b16 %v109
    %v383 = vunpack.c.l.b16 %v110
    %v384 = vunpack.c.l.b16 %v111
    %v385 = vunpack.c.l.b16 %v112
    %v386 = vunpack.c.l.b16 %v113
    %v387 = vunpack.c.l.b16 %v114
    %v388 = vpack.c.b16 %v373, %v372
    %v389 = vpack.c.b16 %v375, %v374
    %v390 = vpack.c.b16 %v377, %v376
    %v391 = vpack.c.b16 %v379, %v378
    %v392 = vpack.c.b16 %v381, %v380
    %v393 = vpack.c.b16 %v383, %v382
    %v394 = vpack.c.b16 %v385, %v384
    %v395 = vpack.c.b16 %v387, %v386
    %v420 = vunpack.c.l.b16 %v115
    %v421 = vunpack.c.l.b16 %v116
    %v422 = vunpack.c.l.b16 %v117
    %v423 = vunpack.c.l.b16 %v118
    %v424 = vunpack.c.l.b16 %v119
    %v425 = vunpack.c.l.b16 %v120
    %v426 = vunpack.c.l.b16 %v121
    %v427 = vunpack.c.l.b16 %v122
    %v428 = vunpack.c.l.b16 %v123
    %v429 = vunpack.c.l.b16 %v124
    %v430 = vunpack.c.l.b16 %v125
    %v431 = vunpack.c.l.b16 %v126
    %v432 = vunpack.c.l.b16 %v127
    %v433 = vunpack.c.l.b16 %v128
    %v434 = vunpack.c.l.b16 %v129
    %v435 = vunpack.c.l.b16 %v130
    %v436 = vpack.c.b16 %v421, %v420
    %v437 = vpack.c.b16 %v423, %v422
    %v438 = vpack.c.b16 %v425, %v424
    %v439 = vpack.c.b16 %v427, %v426
    %v440 = vpack.c.b16 %v429, %v428
    %v441 = vpack.c.b16 %v431, %v430
    %v442 = vpack.c.b16 %v433, %v432
    %v443 = vpack.c.b16 %v435, %v434
    %452 = vmatprep.subr.bf16.mxu0 0
    %453 = vmatpush1.bf16.msra.mxu0 %v436
    %454 = vmatprep.subr.bf16.mxu0 0
    %455 = vmatpush1.bf16.msra.mxu0 %v437
    %456 = vmatprep.subr.bf16.mxu0 0
    %457 = vmatpush1.bf16.msra.mxu0 %v438
    %458 = vmatprep.subr.bf16.mxu0 0
    %459 = vmatpush1.bf16.msra.mxu0 %v439
    %460 = vmatprep.subr.bf16.mxu0 0
    %461 = vmatpush1.bf16.msra.mxu0 %v440
    %462 = vmatprep.subr.bf16.mxu0 0
    %463 = vmatpush1.bf16.msra.mxu0 %v441
    %464 = vmatprep.subr.bf16.mxu0 0
    %465 = vmatpush1.bf16.msra.mxu0 %v442
    %466 = vmatprep.subr.bf16.mxu0 0
    %467 = vmatpush1.bf16.msra.mxu0 %v443
    %468 = vmatprep.subr.bf16.mxu0 0
    %469 = vmatpush1.bf16.msra.mxu0 0
    %470 = vmatprep.subr.bf16.mxu0 0
    %471 = vmatpush1.bf16.msra.mxu0 0
    %472 = vmatprep.subr.bf16.mxu0 0
    %473 = vmatpush1.bf16.msra.mxu0 0
    %474 = vmatprep.subr.bf16.mxu0 0
    %475 = vmatpush1.bf16.msra.mxu0 0
    %476 = vmatprep.subr.bf16.mxu0 0
    %477 = vmatpush1.bf16.msra.mxu0 0
    %478 = vmatprep.subr.bf16.mxu0 0
    %479 = vmatpush1.bf16.msra.mxu0 0
    %480 = vmatprep.subr.bf16.mxu0 0
    %481 = vmatpush1.bf16.msra.mxu0 0
    %482 = vmatprep.subr.bf16.mxu0 0
    %483 = vmatpush1.bf16.msra.mxu0 0
    %484 = vmatprep.mubr.bf16.mxu0 0
    %485 = vmatmul.mubr.bf16.gmra.mrb[0].mxu0 %v388
    %v486 = vpop.f32.mrb[0].mxu0
    %v487 = vadd.f32 %v294, %v486
    %v488 = vpop.f32.mrb[0].mxu0
    %v489 = vpop.f32.mrb[0].mxu0
    %v490 = vadd.f32 %v297, %v489
    %v491 = vpop.f32.mrb[0].mxu0
    %492 = vmatprep.mubr.bf16.mxu0 0
    %493 = vmatmul.mubr.bf16.gmra.mrb[0].mxu0 %v389
    %v494 = vpop.f32.mrb[0].mxu0
    %v495 = vadd.f32 %v302, %v494
    %v496 = vpop.f32.mrb[0].mxu0
    %v497 = vpop.f32.mrb[0].mxu0
    %v498 = vadd.f32 %v305, %v497
    %v499 = vpop.f32.mrb[0].mxu0
    %500 = vmatprep.mubr.bf16.mxu0 0
    %501 = vmatmul.mubr.bf16.gmra.mrb[0].mxu0 %v390
    %v502 = vpop.f32.mrb[0].mxu0
    %v503 = vadd.f32 %v310, %v502
    %v504 = vpop.f32.mrb[0].mxu0
    %v505 = vpop.f32.mrb[0].mxu0
    %v506 = vadd.f32 %v313, %v505
    %v507 = vpop.f32.mrb[0].mxu0
    %508 = vmatprep.mubr.bf16.mxu0 0
    %509 = vmatmul.mubr.bf16.gmra.mrb[0].mxu0 %v391
    %v510 = vpop.f32.mrb[0].mxu0
    %v511 = vadd.f32 %v318, %v510
    %v512 = vpop.f32.mrb[0].mxu0
    %v513 = vpop.f32.mrb[0].mxu0
    %v514 = vadd.f32 %v321, %v513
    %v515 = vpop.f32.mrb[0].mxu0
    %516 = vmatprep.mubr.bf16.mxu0 0
    %517 = vmatmul.mubr.bf16.gmra.mrb[0].mxu0 %v392
    %v518 = vpop.f32.mrb[0].mxu0
    %v519 = vadd.f32 %v326, %v518
    %v520 = vpop.f32.mrb[0].mxu0
    %v521 = vpop.f32.mrb[0].mxu0
    %v522 = vadd.f32 %v329, %v521
    %v523 = vpop.f32.mrb[0].mxu0
    %524 = vmatprep.mubr.bf16.mxu0 0
    %525 = vmatmul.mubr.bf16.gmra.mrb[0].mxu0 %v393
    %v526 = vpop.f32.mrb[0].mxu0
    %v527 = vadd.f32 %v334, %v526
    %v528 = vpop.f32.mrb[0].mxu0
    %v529 = vpop.f32.mrb[0].mxu0
    %v530 = vadd.f32 %v337, %v529
    %v531 = vpop.f32.mrb[0].mxu0
    %532 = vmatprep.mubr.bf16.mxu0 0
    %533 = vmatmul.mubr.bf16.gmra.mrb[0].mxu0 %v394
    %v534 = vpop.f32.mrb[0].mxu0
    %v535 = vadd.f32 %v342, %v534
    %v536 = vpop.f32.mrb[0].mxu0
    %v537 = vpop.f32.mrb[0].mxu0
    %v538 = vadd.f32 %v345, %v537
    %v539 = vpop.f32.mrb[0].mxu0
    %540 = vmatprep.mubr.bf16.mxu0 0
    %541 = vmatmul.mubr.bf16.gmra.mrb[0].mxu0 %v395
    %v542 = vpop.f32.mrb[0].mxu0
    %v543 = vadd.f32 %v350, %v542
    %v544 = vpop.f32.mrb[0].mxu0
    %v545 = vpop.f32.mrb[0].mxu0
    %v546 = vadd.f32 %v353, %v545
    %v547 = vpop.f32.mrb[0].mxu0
    %548 = vdwg.mxu0
    %v549 = vld [vmem:[%s6] sm:$0x1]
    %v551 = vlaneseq
    %v552 = vshrl.u32 %v551, 7
    %v553 = vsub.s32 0, %v552
    %v554 = vrot.slane %v549, %v553
    %v556 = vadd.f32 %v487, %v554
    %v557 = vadd.f32 %v490, %v554
    %v558 = vadd.f32 %v495, %v554
    %v559 = vadd.f32 %v498, %v554
    %v560 = vadd.f32 %v503, %v554
    %v561 = vadd.f32 %v506, %v554
    %v562 = vadd.f32 %v511, %v554
    %v563 = vadd.f32 %v514, %v554
    %v564 = vadd.f32 %v519, %v554
    %v565 = vadd.f32 %v522, %v554
    %v566 = vadd.f32 %v527, %v554
    %v567 = vadd.f32 %v530, %v554
    %v568 = vadd.f32 %v535, %v554
    %v569 = vadd.f32 %v538, %v554
    %v570 = vadd.f32 %v543, %v554
    %v571 = vadd.f32 %v546, %v554
    %v572 = vld [vmem:[%s2] sm:$0xf]
    %v573 = vld [vmem:[%s2 + $0x4] sm:$0xf]
    %v574 = vld [vmem:[%s2 + $0x8] sm:$0xf]
    %v575 = vld [vmem:[%s2 + $0xc] sm:$0xf]
    %v576 = vld [vmem:[%s2 + $0x10] sm:$0xf]
    %v577 = vld [vmem:[%s2 + $0x14] sm:$0xf]
    %v578 = vld [vmem:[%s2 + $0x18] sm:$0xf]
    %v579 = vld [vmem:[%s2 + $0x1c] sm:$0xf]
    %v580 = vld [vmem:[%s2 + $0x20] sm:$0xf]
    %v581 = vld [vmem:[%s2 + $0x24] sm:$0xf]
    %v582 = vld [vmem:[%s2 + $0x28] sm:$0xf]
    %v583 = vld [vmem:[%s2 + $0x2c] sm:$0xf]
    %v584 = vld [vmem:[%s2 + $0x30] sm:$0xf]
    %v585 = vld [vmem:[%s2 + $0x34] sm:$0xf]
    %v586 = vld [vmem:[%s2 + $0x38] sm:$0xf]
    %v587 = vld [vmem:[%s2 + $0x3c] sm:$0xf]
    %v588 = vld [vmem:[%s7] sm:$0xf]
    %v589 = vld [vmem:[%s7 + $0x4] sm:$0xf]
    %v590 = vld [vmem:[%s7 + $0x8] sm:$0xf]
    %v591 = vld [vmem:[%s7 + $0xc] sm:$0xf]
    %v592 = vld [vmem:[%s7 + $0x10] sm:$0xf]
    %v593 = vld [vmem:[%s7 + $0x14] sm:$0xf]
    %v594 = vld [vmem:[%s7 + $0x18] sm:$0xf]
    %v595 = vld [vmem:[%s7 + $0x1c] sm:$0xf]
    %v596 = vld [vmem:[%s7 + $0x20] sm:$0xf]
    %v597 = vld [vmem:[%s7 + $0x24] sm:$0xf]
    %v598 = vld [vmem:[%s7 + $0x28] sm:$0xf]
    %v599 = vld [vmem:[%s7 + $0x2c] sm:$0xf]
    %v600 = vld [vmem:[%s7 + $0x30] sm:$0xf]
    %v601 = vld [vmem:[%s7 + $0x34] sm:$0xf]
    %v602 = vld [vmem:[%s7 + $0x38] sm:$0xf]
    %v603 = vld [vmem:[%s7 + $0x3c] sm:$0xf]
    %v604 = vld [vmem:[%s8] sm:$0x1]
    %v606 = vlaneseq
    %v607 = vshrl.u32 %v606, 7
    %v608 = vsub.s32 0, %v607
    %v609 = vrot.slane %v604, %v608
    %v627 = vunpack.c.l.b16 %v572
    %v628 = vunpack.c.l.b16 %v573
    %v629 = vunpack.c.l.b16 %v574
    %v630 = vunpack.c.l.b16 %v575
    %v631 = vunpack.c.l.b16 %v576
    %v632 = vunpack.c.l.b16 %v577
    %v633 = vunpack.c.l.b16 %v578
    %v634 = vunpack.c.l.b16 %v579
    %v635 = vunpack.c.l.b16 %v580
    %v636 = vunpack.c.l.b16 %v581
    %v637 = vunpack.c.l.b16 %v582
    %v638 = vunpack.c.l.b16 %v583
    %v639 = vunpack.c.l.b16 %v584
    %v640 = vunpack.c.l.b16 %v585
    %v641 = vunpack.c.l.b16 %v586
    %v642 = vunpack.c.l.b16 %v587
    %v643 = vpack.c.b16 %v628, %v627
    %v644 = vpack.c.b16 %v630, %v629
    %v645 = vpack.c.b16 %v632, %v631
    %v646 = vpack.c.b16 %v634, %v633
    %v647 = vpack.c.b16 %v636, %v635
    %v648 = vpack.c.b16 %v638, %v637
    %v649 = vpack.c.b16 %v640, %v639
    %v650 = vpack.c.b16 %v642, %v641
    %v675 = vunpack.c.l.b16 %v588
    %v676 = vunpack.c.l.b16 %v589
    %v677 = vunpack.c.l.b16 %v590
    %v678 = vunpack.c.l.b16 %v591
    %v679 = vunpack.c.l.b16 %v592
    %v680 = vunpack.c.l.b16 %v593
    %v681 = vunpack.c.l.b16 %v594
    %v682 = vunpack.c.l.b16 %v595
    %v683 = vunpack.c.l.b16 %v596
    %v684 = vunpack.c.l.b16 %v597
    %v685 = vunpack.c.l.b16 %v598
    %v686 = vunpack.c.l.b16 %v599
    %v687 = vunpack.c.l.b16 %v600
    %v688 = vunpack.c.l.b16 %v601
    %v689 = vunpack.c.l.b16 %v602
    %v690 = vunpack.c.l.b16 %v603
    %v691 = vpack.c.b16 %v676, %v675
    %v692 = vpack.c.b16 %v678, %v677
    %v693 = vpack.c.b16 %v680, %v679
    %v694 = vpack.c.b16 %v682, %v681
    %v695 = vpack.c.b16 %v684, %v683
    %v696 = vpack.c.b16 %v686, %v685
    %v697 = vpack.c.b16 %v688, %v687
    %v698 = vpack.c.b16 %v690, %v689
    %707 = vmatprep.subr.bf16.mxu0 0
    %708 = vmatpush1.bf16.msra.mxu0 %v691
    %709 = vmatprep.subr.bf16.mxu0 0
    %710 = vmatpush1.bf16.msra.mxu0 %v692
    %711 = vmatprep.subr.bf16.mxu0 0
    %712 = vmatpush1.bf16.msra.mxu0 %v693
    %713 = vmatprep.subr.bf16.mxu0 0
    %714 = vmatpush1.bf16.msra.mxu0 %v694
    %715 = vmatprep.subr.bf16.mxu0 0
    %716 = vmatpush1.bf16.msra.mxu0 %v695
    %717 = vmatprep.subr.bf16.mxu0 0
    %718 = vmatpush1.bf16.msra.mxu0 %v696
    %719 = vmatprep.subr.bf16.mxu0 0
    %720 = vmatpush1.bf16.msra.mxu0 %v697
    %721 = vmatprep.subr.bf16.mxu0 0
    %722 = vmatpush1.bf16.msra.mxu0 %v698
    %723 = vmatprep.subr.bf16.mxu0 0
    %724 = vmatpush1.bf16.msra.mxu0 0
    %725 = vmatprep.subr.bf16.mxu0 0
    %726 = vmatpush1.bf16.msra.mxu0 0
    %727 = vmatprep.subr.bf16.mxu0 0
    %728 = vmatpush1.bf16.msra.mxu0 0
    %729 = vmatprep.subr.bf16.mxu0 0
    %730 = vmatpush1.bf16.msra.mxu0 0
    %731 = vmatprep.subr.bf16.mxu0 0
    %732 = vmatpush1.bf16.msra.mxu0 0
    %733 = vmatprep.subr.bf16.mxu0 0
    %734 = vmatpush1.bf16.msra.mxu0 0
    %735 = vmatprep.subr.bf16.mxu0 0
    %736 = vmatpush1.bf16.msra.mxu0 0
    %737 = vmatprep.subr.bf16.mxu0 0
    %738 = vmatpush1.bf16.msra.mxu0 0
    %739 = vmatprep.mubr.bf16.mxu0 0
    %740 = vmatmul.mubr.bf16.gmra.mrb[0].mxu0 %v643
    %v741 = vpop.f32.mrb[0].mxu0
    %v742 = vadd.f32 %v609, %v741
    %v743 = vpop.f32.mrb[0].mxu0
    %v744 = vpop.f32.mrb[0].mxu0
    %v745 = vadd.f32 %v609, %v744
    %v746 = vpop.f32.mrb[0].mxu0
    %747 = vmatprep.mubr.bf16.mxu0 0
    %748 = vmatmul.mubr.bf16.gmra.mrb[0].mxu0 %v644
    %v749 = vpop.f32.mrb[0].mxu0
    %v750 = vadd.f32 %v609, %v749
    %v751 = vpop.f32.mrb[0].mxu0
    %v752 = vpop.f32.mrb[0].mxu0
    %v753 = vadd.f32 %v609, %v752
    %v754 = vpop.f32.mrb[0].mxu0
    %755 = vmatprep.mubr.bf16.mxu0 0
    %756 = vmatmul.mubr.bf16.gmra.mrb[0].mxu0 %v645
    %v757 = vpop.f32.mrb[0].mxu0
    %v758 = vadd.f32 %v609, %v757
    %v759 = vpop.f32.mrb[0].mxu0
    %v760 = vpop.f32.mrb[0].mxu0
    %v761 = vadd.f32 %v609, %v760
    %v762 = vpop.f32.mrb[0].mxu0
    %763 = vmatprep.mubr.bf16.mxu0 0
    %764 = vmatmul.mubr.bf16.gmra.mrb[0].mxu0 %v646
    %v765 = vpop.f32.mrb[0].mxu0
    %v766 = vadd.f32 %v609, %v765
    %v767 = vpop.f32.mrb[0].mxu0
    %v768 = vpop.f32.mrb[0].mxu0
    %v769 = vadd.f32 %v609, %v768
    %v770 = vpop.f32.mrb[0].mxu0
    %771 = vmatprep.mubr.bf16.mxu0 0
    %772 = vmatmul.mubr.bf16.gmra.mrb[0].mxu0 %v647
    %v773 = vpop.f32.mrb[0].mxu0
    %v774 = vadd.f32 %v609, %v773
    %v775 = vpop.f32.mrb[0].mxu0
    %v776 = vpop.f32.mrb[0].mxu0
    %v777 = vadd.f32 %v609, %v776
    %v778 = vpop.f32.mrb[0].mxu0
    %779 = vmatprep.mubr.bf16.mxu0 0
    %780 = vmatmul.mubr.bf16.gmra.mrb[0].mxu0 %v648
    %v781 = vpop.f32.mrb[0].mxu0
    %v782 = vadd.f32 %v609, %v781
    %v783 = vpop.f32.mrb[0].mxu0
    %v784 = vpop.f32.mrb[0].mxu0
    %v785 = vadd.f32 %v609, %v784
    %v786 = vpop.f32.mrb[0].mxu0
    %787 = vmatprep.mubr.bf16.mxu0 0
    %788 = vmatmul.mubr.bf16.gmra.mrb[0].mxu0 %v649
    %v789 = vpop.f32.mrb[0].mxu0
    %v790 = vadd.f32 %v609, %v789
    %v791 = vpop.f32.mrb[0].mxu0
    %v792 = vpop.f32.mrb[0].mxu0
    %v793 = vadd.f32 %v609, %v792
    %v794 = vpop.f32.mrb[0].mxu0
    %795 = vmatprep.mubr.bf16.mxu0 0
    %796 = vmatmul.mubr.bf16.gmra.mrb[0].mxu0 %v650
    %v797 = vpop.f32.mrb[0].mxu0
    %v798 = vadd.f32 %v609, %v797
    %v799 = vpop.f32.mrb[0].mxu0
    %v800 = vpop.f32.mrb[0].mxu0
    %v801 = vadd.f32 %v609, %v800
    %v802 = vpop.f32.mrb[0].mxu0
    %803 = vdwg.mxu0
    %v804 = vmul.f32 %v556, %v742
    %v805 = vmul.f32 %v557, %v745
    %v806 = vmul.f32 %v558, %v750
    %v807 = vmul.f32 %v559, %v753
    %v808 = vmul.f32 %v560, %v758
    %v809 = vmul.f32 %v561, %v761
    %v810 = vmul.f32 %v562, %v766
    %v811 = vmul.f32 %v563, %v769
    %v812 = vmul.f32 %v564, %v774
    %v813 = vmul.f32 %v565, %v777
    %v814 = vmul.f32 %v566, %v782
    %v815 = vmul.f32 %v567, %v785
    %v816 = vmul.f32 %v568, %v790
    %v817 = vmul.f32 %v569, %v793
    %v818 = vmul.f32 %v570, %v798
    %v819 = vmul.f32 %v571, %v801
    %v820 = vpack.c.bf16 %v805, %v804
    %v821 = vpack.c.bf16 %v807, %v806
    %v822 = vpack.c.bf16 %v809, %v808
    %v823 = vpack.c.bf16 %v811, %v810
    %v824 = vpack.c.bf16 %v813, %v812
    %v825 = vpack.c.bf16 %v815, %v814
    %v826 = vpack.c.bf16 %v817, %v816
    %v827 = vpack.c.bf16 %v819, %v818
    %v828 = vld [vmem:[#allocation2] sm:$0xff]
    %v829 = vld [vmem:[#allocation2 + $0x8] sm:$0xff]
    %v830 = vld [vmem:[#allocation2 + $0x10] sm:$0xff]
    %v831 = vld [vmem:[#allocation2 + $0x18] sm:$0xff]
    %v832 = vld [vmem:[#allocation2 + $0x20] sm:$0xff]
    %v833 = vld [vmem:[#allocation2 + $0x28] sm:$0xff]
    %v834 = vld [vmem:[#allocation2 + $0x30] sm:$0xff]
    %v835 = vld [vmem:[#allocation2 + $0x38] sm:$0xff]
    %v836 = vld [vmem:[#allocation2 + $0x40] sm:$0xff]
    %v837 = vld [vmem:[#allocation2 + $0x48] sm:$0xff]
    %v838 = vld [vmem:[#allocation2 + $0x50] sm:$0xff]
    %v839 = vld [vmem:[#allocation2 + $0x58] sm:$0xff]
    %v840 = vld [vmem:[#allocation2 + $0x60] sm:$0xff]
    %v841 = vld [vmem:[#allocation2 + $0x68] sm:$0xff]
    %v842 = vld [vmem:[#allocation2 + $0x70] sm:$0xff]
    %v843 = vld [vmem:[#allocation2 + $0x78] sm:$0xff]
    %v844 = vld [vmem:[%s9] sm:$0xf]
    %v845 = vld [vmem:[%s9 + $0x4] sm:$0xf]
    %v846 = vld [vmem:[%s9 + $0x8] sm:$0xf]
    %v847 = vld [vmem:[%s9 + $0xc] sm:$0xf]
    %v848 = vld [vmem:[%s9 + $0x10] sm:$0xf]
    %v849 = vld [vmem:[%s9 + $0x14] sm:$0xf]
    %v850 = vld [vmem:[%s9 + $0x18] sm:$0xf]
    %v851 = vld [vmem:[%s9 + $0x1c] sm:$0xf]
    %v852 = vld [vmem:[%s9 + $0x20] sm:$0xf]
    %v853 = vld [vmem:[%s9 + $0x24] sm:$0xf]
    %v854 = vld [vmem:[%s9 + $0x28] sm:$0xf]
    %v855 = vld [vmem:[%s9 + $0x2c] sm:$0xf]
    %v856 = vld [vmem:[%s9 + $0x30] sm:$0xf]
    %v857 = vld [vmem:[%s9 + $0x34] sm:$0xf]
    %v858 = vld [vmem:[%s9 + $0x38] sm:$0xf]
    %v859 = vld [vmem:[%s9 + $0x3c] sm:$0xf]
    %v876 = vunpack.c.l.b16 %v844
    %v877 = vunpack.c.l.b16 %v845
    %v878 = vunpack.c.l.b16 %v846
    %v879 = vunpack.c.l.b16 %v847
    %v880 = vunpack.c.l.b16 %v848
    %v881 = vunpack.c.l.b16 %v849
    %v882 = vunpack.c.l.b16 %v850
    %v883 = vunpack.c.l.b16 %v851
    %v884 = vunpack.c.l.b16 %v852
    %v885 = vunpack.c.l.b16 %v853
    %v886 = vunpack.c.l.b16 %v854
    %v887 = vunpack.c.l.b16 %v855
    %v888 = vunpack.c.l.b16 %v856
    %v889 = vunpack.c.l.b16 %v857
    %v890 = vunpack.c.l.b16 %v858
    %v891 = vunpack.c.l.b16 %v859
    %v892 = vpack.c.b16 %v877, %v876
    %v893 = vpack.c.b16 %v879, %v878
    %v894 = vpack.c.b16 %v881, %v880
    %v895 = vpack.c.b16 %v883, %v882
    %v896 = vpack.c.b16 %v885, %v884
    %v897 = vpack.c.b16 %v887, %v886
    %v898 = vpack.c.b16 %v889, %v888
    %v899 = vpack.c.b16 %v891, %v890
    %908 = vmatprep.subr.bf16.mxu0 0
    %909 = vmatpush1.bf16.msra.mxu0 %v892
    %910 = vmatprep.subr.bf16.mxu0 0
    %911 = vmatpush1.bf16.msra.mxu0 %v893
    %912 = vmatprep.subr.bf16.mxu0 0
    %913 = vmatpush1.bf16.msra.mxu0 %v894
    %914 = vmatprep.subr.bf16.mxu0 0
    %915 = vmatpush1.bf16.msra.mxu0 %v895
    %916 = vmatprep.subr.bf16.mxu0 0
    %917 = vmatpush1.bf16.msra.mxu0 %v896
    %918 = vmatprep.subr.bf16.mxu0 0
    %919 = vmatpush1.bf16.msra.mxu0 %v897
    %920 = vmatprep.subr.bf16.mxu0 0
    %921 = vmatpush1.bf16.msra.mxu0 %v898
    %922 = vmatprep.subr.bf16.mxu0 0
    %923 = vmatpush1.bf16.msra.mxu0 %v899
    %924 = vmatprep.subr.bf16.mxu0 0
    %925 = vmatpush1.bf16.msra.mxu0 0
    %926 = vmatprep.subr.bf16.mxu0 0
    %927 = vmatpush1.bf16.msra.mxu0 0
    %928 = vmatprep.subr.bf16.mxu0 0
    %929 = vmatpush1.bf16.msra.mxu0 0
    %930 = vmatprep.subr.bf16.mxu0 0
    %931 = vmatpush1.bf16.msra.mxu0 0
    %932 = vmatprep.subr.bf16.mxu0 0
    %933 = vmatpush1.bf16.msra.mxu0 0
    %934 = vmatprep.subr.bf16.mxu0 0
    %935 = vmatpush1.bf16.msra.mxu0 0
    %936 = vmatprep.subr.bf16.mxu0 0
    %937 = vmatpush1.bf16.msra.mxu0 0
    %938 = vmatprep.subr.bf16.mxu0 0
    %939 = vmatpush1.bf16.msra.mxu0 0
    %940 = vmatprep.mubr.bf16.mxu0 0
    %941 = vmatmul.mubr.bf16.gmra.mrb[0].mxu0 %v820
    %v942 = vpop.f32.mrb[0].mxu0
    %v943 = vadd.f32 0.0, %v942
    %v944 = vpop.f32.mrb[0].mxu0
    %v945 = vpop.f32.mrb[0].mxu0
    %v946 = vadd.f32 0.0, %v945
    %v947 = vpop.f32.mrb[0].mxu0
    %948 = vmatprep.mubr.bf16.mxu0 0
    %949 = vmatmul.mubr.bf16.gmra.mrb[0].mxu0 %v821
    %v950 = vpop.f32.mrb[0].mxu0
    %v951 = vadd.f32 0.0, %v950
    %v952 = vpop.f32.mrb[0].mxu0
    %v953 = vpop.f32.mrb[0].mxu0
    %v954 = vadd.f32 0.0, %v953
    %v955 = vpop.f32.mrb[0].mxu0
    %956 = vmatprep.mubr.bf16.mxu0 0
    %957 = vmatmul.mubr.bf16.gmra.mrb[0].mxu0 %v822
    %v958 = vpop.f32.mrb[0].mxu0
    %v959 = vadd.f32 0.0, %v958
    %v960 = vpop.f32.mrb[0].mxu0
    %v961 = vpop.f32.mrb[0].mxu0
    %v962 = vadd.f32 0.0, %v961
    %v963 = vpop.f32.mrb[0].mxu0
    %964 = vmatprep.mubr.bf16.mxu0 0
    %965 = vmatmul.mubr.bf16.gmra.mrb[0].mxu0 %v823
    %v966 = vpop.f32.mrb[0].mxu0
    %v967 = vadd.f32 0.0, %v966
    %v968 = vpop.f32.mrb[0].mxu0
    %v969 = vpop.f32.mrb[0].mxu0
    %v970 = vadd.f32 0.0, %v969
    %v971 = vpop.f32.mrb[0].mxu0
    %972 = vmatprep.mubr.bf16.mxu0 0
    %973 = vmatmul.mubr.bf16.gmra.mrb[0].mxu0 %v824
    %v974 = vpop.f32.mrb[0].mxu0
    %v975 = vadd.f32 0.0, %v974
    %v976 = vpop.f32.mrb[0].mxu0
    %v977 = vpop.f32.mrb[0].mxu0
    %v978 = vadd.f32 0.0, %v977
    %v979 = vpop.f32.mrb[0].mxu0
    %980 = vmatprep.mubr.bf16.mxu0 0
    %981 = vmatmul.mubr.bf16.gmra.mrb[0].mxu0 %v825
    %v982 = vpop.f32.mrb[0].mxu0
    %v983 = vadd.f32 0.0, %v982
    %v984 = vpop.f32.mrb[0].mxu0
    %v985 = vpop.f32.mrb[0].mxu0
    %v986 = vadd.f32 0.0, %v985
    %v987 = vpop.f32.mrb[0].mxu0
    %988 = vmatprep.mubr.bf16.mxu0 0
    %989 = vmatmul.mubr.bf16.gmra.mrb[0].mxu0 %v826
    %v990 = vpop.f32.mrb[0].mxu0
    %v991 = vadd.f32 0.0, %v990
    %v992 = vpop.f32.mrb[0].mxu0
    %v993 = vpop.f32.mrb[0].mxu0
    %v994 = vadd.f32 0.0, %v993
    %v995 = vpop.f32.mrb[0].mxu0
    %996 = vmatprep.mubr.bf16.mxu0 0
    %997 = vmatmul.mubr.bf16.gmra.mrb[0].mxu0 %v827
    %v998 = vpop.f32.mrb[0].mxu0
    %v999 = vadd.f32 0.0, %v998
    %v1000 = vpop.f32.mrb[0].mxu0
    %v1001 = vpop.f32.mrb[0].mxu0
    %v1002 = vadd.f32 0.0, %v1001
    %v1003 = vpop.f32.mrb[0].mxu0
    %1004 = vdwg.mxu0
    %v1005 = vadd.f32 %v828, %v943
    %v1006 = vadd.f32 %v829, %v946
    %v1007 = vadd.f32 %v830, %v951
    %v1008 = vadd.f32 %v831, %v954
    %v1009 = vadd.f32 %v832, %v959
    %v1010 = vadd.f32 %v833, %v962
    %v1011 = vadd.f32 %v834, %v967
    %v1012 = vadd.f32 %v835, %v970
    %v1013 = vadd.f32 %v836, %v975
    %v1014 = vadd.f32 %v837, %v978
    %v1015 = vadd.f32 %v838, %v983
    %v1016 = vadd.f32 %v839, %v986
    %v1017 = vadd.f32 %v840, %v991
    %v1018 = vadd.f32 %v841, %v994
    %v1019 = vadd.f32 %v842, %v999
    %v1020 = vadd.f32 %v843, %v1002
    %1021 = vst [vmem:[#allocation2] sm:$0xff] %v1005
    %1022 = vst [vmem:[#allocation2 + $0x8] sm:$0xff] %v1006
    %1023 = vst [vmem:[#allocation2 + $0x10] sm:$0xff] %v1007
    %1024 = vst [vmem:[#allocation2 + $0x18] sm:$0xff] %v1008
    %1025 = vst [vmem:[#allocation2 + $0x20] sm:$0xff] %v1009
    %1026 = vst [vmem:[#allocation2 + $0x28] sm:$0xff] %v1010
    %1027 = vst [vmem:[#allocation2 + $0x30] sm:$0xff] %v1011
    %1028 = vst [vmem:[#allocation2 + $0x38] sm:$0xff] %v1012
    %1029 = vst [vmem:[#allocation2 + $0x40] sm:$0xff] %v1013
    %1030 = vst [vmem:[#allocation2 + $0x48] sm:$0xff] %v1014
    %1031 = vst [vmem:[#allocation2 + $0x50] sm:$0xff] %v1015
    %1032 = vst [vmem:[#allocation2 + $0x58] sm:$0xff] %v1016
    %1033 = vst [vmem:[#allocation2 + $0x60] sm:$0xff] %v1017
    %1034 = vst [vmem:[#allocation2 + $0x68] sm:$0xff] %v1018
    %1035 = vst [vmem:[#allocation2 + $0x70] sm:$0xff] %v1019
    %1036 = vst [vmem:[#allocation2 + $0x78] sm:$0xff] %v1020
    // Predicated region
    $region50: #{_core_impl.3} parent=1 // pred_check
      _
    $region51: #{_core_impl.3} parent=1 // pred_check_branch
      %1038 = sbr.rel (0) target = $region53
    $region52: #{_core_impl.3} parent=1 // pred_region
      %s1040 = ssub.s32 2048, 2048
      %1041 = vsyncadd [#allocation3], %s1040
      %s1042 = sshll.u32 [#allocation2], 4
      %s1043 = int_to_ptr.vmem [resolvable:$true] %s1042
      %1048 = dma.vmem_to_hbm [thread:$0]  %s1043, 2048, %s11, [#allocation3], 128, 128, 8
    $region53: #{_core_impl.3} parent=1 // pred_fallthru
      _
    // Predicated region
    $region54: #{_core_impl.3} parent=1 // pred_check
      _
    $region55: #{_core_impl.3} parent=1 // pred_check_branch
      %1050 = sbr.rel (0) target = $region57
    $region56: #{_core_impl.3} parent=1 // pred_region
      %1051 = dma.done [#allocation3], 2048
    $region57: #{_core_impl.3} parent=1 // pred_fallthru
      _
    %1052 = vsyncpa [#allocation3], 1

</llo_original>
